<compile_context>
chip_gen: v7x
topology: tpu7x:2x2x1
jax: 0.10.0
libtpu: 0.0.40
codegen_flags: <defaults>
</compile_context>

<pallas_src>
import math
import jax
import jax.numpy as jnp
from jax import lax
from jax.experimental import pallas as pl
from jax.experimental.pallas import tpu as pltpu

# ---- small, module-consistent hyperparameters ----
F_IN = 512        # frontend feature dim (module hard-codes Linear(512, attention_dim))
D = 32            # attention_dim
H = 4             # attention_heads
DK = D // H
FF = 64           # linear_units
NUM_BLOCKS = 2    # num_blocks (kept small)
EPS = 1e-12       # espnet LayerNorm eps


def _layernorm(x, g, b):
    mu = jnp.mean(x, axis=-1, keepdims=True)
    var = jnp.mean((x - mu) ** 2, axis=-1, keepdims=True)
    return (x - mu) * lax.rsqrt(var + EPS) * g + b


# ---------------- fused Pallas kernel ----------------
# vec_ref rows per layer: 0=ln1g 1=ln1b 2=ln2g 3=ln2b 4=bo 5=b2

def encoder_kernel(x_ref, m_ref, embw_ref, pe_ref,
                   wqkv_ref, bqkv_ref, wo_ref, w1_ref, b1_ref, w2_ref,
                   vec_ref, after_ref, o_ref):
    x = x_ref[0]                                   # (T, F_IN)
    mask = m_ref[0]                                # (1, T) over keys; 1=valid, 0=pad
    bias = (mask - 1.0) * 1e9                      # additive mask bias: 0 / -1e9

    # embed: Linear(512, D) * sqrt(D) + (b*sqrt(D) + pe) -- scale/bias folded in wrapper
    h = jnp.dot(x, embw_ref[...], preferred_element_type=jnp.float32) + pe_ref[...]

    scale = jnp.float32(1.0 / math.sqrt(DK))

    for l in range(NUM_BLOCKS):                    # static unrolled layer loop
        vl = vec_ref[l]                            # (6, D)
        ln1g, ln1b = vl[0:1, :], vl[1:2, :]
        ln2g, ln2b = vl[2:3, :], vl[3:4, :]
        bo, b2 = vl[4:5, :], vl[5:6, :]
        wo_l = wo_ref[l]                           # (D, D)

        # --- multi-headed self-attention sublayer (pre-LN) ---
        xn = _layernorm(h, ln1g, ln1b)
        qkv = jnp.dot(xn, wqkv_ref[l],
                      preferred_element_type=jnp.float32) + bqkv_ref[l]   # (T, 3D)
        q = qkv[:, 0:D]
        k = qkv[:, D:2 * D]
        v = qkv[:, 2 * D:3 * D]

        att = jnp.zeros_like(h)                    # (T, D) accumulator over heads
        for hh in range(H):                        # static unrolled head loop
            sl = slice(hh * DK, (hh + 1) * DK)
            scores = lax.dot_general(q[:, sl], k[:, sl], (((1,), (1,)), ((), ())),
                                     preferred_element_type=jnp.float32) * scale
            scores = scores + bias                 # (T, T)
            smax = jnp.max(scores, axis=-1, keepdims=True)
            e = jnp.exp(scores - smax)
            denom = jnp.sum(e, axis=-1, keepdims=True)
            p = e * pl.reciprocal(denom, approx=True)
            p = p * mask                           # espnet: zero attn at padded keys
            ctx = jnp.dot(p, v[:, sl], preferred_element_type=jnp.float32)   # (T, DK)
            att = att + jnp.dot(ctx, wo_l[sl, :],
                                preferred_element_type=jnp.float32)          # (T, D)
        h = h + att + bo

        # --- position-wise feed-forward sublayer (pre-LN, ReLU) ---
        xn2 = _layernorm(h, ln2g, ln2b)
        h1 = jnp.maximum(
            jnp.dot(xn2, w1_ref[l], preferred_element_type=jnp.float32) + b1_ref[l], 0.0)
        h = h + jnp.dot(h1, w2_ref[l], preferred_element_type=jnp.float32) + b2

    # final `after_norm` LayerNorm
    o_ref[0] = _layernorm(h, after_ref[0:1, :], after_ref[1:2, :])


# ---------------- glue: params, positional encoding, packing, wrapper ----------------

def positional_encoding(T, d):
    pos = jnp.arange(T, dtype=jnp.float32)[:, None]
    div = jnp.exp(jnp.arange(0, d, 2, dtype=jnp.float32) * (-math.log(10000.0) / d))
    pe = jnp.zeros((T, d), jnp.float32)
    pe = pe.at[:, 0::2].set(jnp.sin(pos * div))
    pe = pe.at[:, 1::2].set(jnp.cos(pos * div))
    return pe


def init_params(key):
    def dense(k, fan_in, fan_out):
        kw, kb = jax.random.split(k)
        w = jax.random.normal(kw, (fan_in, fan_out), jnp.float32) * 0.02
        b = jax.random.normal(kb, (1, fan_out), jnp.float32) * 0.02
        return w, b

    keys = jax.random.split(key, NUM_BLOCKS + 1)
    embed_w, embed_b = dense(keys[0], F_IN, D)
    layers = []
    for i in range(NUM_BLOCKS):
        ks = jax.random.split(keys[i + 1], 6)
        wq, bq = dense(ks[0], D, D)
        wk, bk = dense(ks[1], D, D)
        wv, bv = dense(ks[2], D, D)
        wo, bo = dense(ks[3], D, D)
        w1, b1 = dense(ks[4], D, FF)
        w2, b2 = dense(ks[5], FF, D)
        layers.append(dict(
            ln1g=jnp.ones((1, D), jnp.float32), ln1b=jnp.zeros((1, D), jnp.float32),
            wq=wq, bq=bq, wk=wk, bk=bk, wv=wv, bv=bv, wo=wo, bo=bo,
            ln2g=jnp.ones((1, D), jnp.float32), ln2b=jnp.zeros((1, D), jnp.float32),
            w1=w1, b1=b1, w2=w2, b2=b2))
    return dict(embed_w=embed_w, embed_b=embed_b, layers=layers,
                after_g=jnp.ones((1, D), jnp.float32),
                after_b=jnp.zeros((1, D), jnp.float32))


def pack_params(params, T):
    """Fold the positional-encoding scale into the embed weights and stack all
    per-layer weights/vectors along a leading NUM_BLOCKS axis."""
    sqrt_d = math.sqrt(D)
    pe = positional_encoding(T, D)
    emb_w = params['embed_w'] * sqrt_d                      # (F_IN, D)
    pe_plus = pe + params['embed_b'] * sqrt_d               # (T, D)

    wqkv, bqkv, wo, w1, b1, w2, vecs = [], [], [], [], [], [], []
    for lp in params['layers']:
        wqkv.append(jnp.concatenate([lp['wq'], lp['wk'], lp['wv']], axis=1))   # (D, 3D)
        bqkv.append(jnp.concatenate([lp['bq'], lp['bk'], lp['bv']], axis=1))   # (1, 3D)
        wo.append(lp['wo'])
        w1.append(lp['w1'])
        b1.append(lp['b1'])
        w2.append(lp['w2'])
        vecs.append(jnp.concatenate([lp['ln1g'], lp['ln1b'],
                                     lp['ln2g'], lp['ln2b'],
                                     lp['bo'], lp['b2']], axis=0))             # (6, D)

    return dict(
        emb_w=emb_w, pe_plus=pe_plus,
        wqkv=jnp.stack(wqkv), bqkv=jnp.stack(bqkv),
        wo=jnp.stack(wo), w1=jnp.stack(w1), b1=jnp.stack(b1), w2=jnp.stack(w2),
        vecs=jnp.stack(vecs),
        after=jnp.concatenate([params['after_g'], params['after_b']], axis=0))  # (2, D)


def encoder_forward(xs, masks, packed):
    B, T, _ = xs.shape

    def fullspec(a):
        nd = a.ndim
        return pl.BlockSpec(a.shape, lambda b, _nd=nd: (0,) * _nd)

    weights = [packed['emb_w'], packed['pe_plus'],
               packed['wqkv'], packed['bqkv'], packed['wo'],
               packed['w1'], packed['b1'], packed['w2'],
               packed['vecs'], packed['after']]

    ys = pl.pallas_call(
        encoder_kernel,
        out_shape=jax.ShapeDtypeStruct((B, T, D), jnp.float32),
        grid=(B,),
        in_specs=[pl.BlockSpec((1, T, F_IN), lambda b: (b, 0, 0)),
                  pl.BlockSpec((1, 1, T), lambda b: (b, 0, 0))]
                 + [fullspec(a) for a in weights],
        out_specs=pl.BlockSpec((1, T, D), lambda b: (b, 0, 0)),
        compiler_params=pltpu.CompilerParams(dimension_semantics=("parallel",)),
    )(xs, masks, *weights)

    # real espnet subsamples masks in the conv frontend (not implemented here)
    return ys, masks


if __name__ == "__main__":
    key = jax.random.PRNGKey(0)
    kx, kp = jax.random.split(key)
    B, T = 2, 8
    xs = jax.random.normal(kx, (B, T, F_IN), jnp.float32)   # frontend output features
    masks = jnp.ones((B, 1, T), jnp.float32)                 # all frames valid
    params = init_params(kp)
    packed = pack_params(params, T)

    ys, out_masks = encoder_forward(xs, masks, packed)
    jax.block_until_ready(ys)
    assert ys.shape == (B, T, D) and out_masks.shape == (B, 1, T)
    assert bool(jnp.all(jnp.isfinite(ys)))
    print("KERNEL_OK")
</pallas_src>

<mosaic_0001>
module attributes {stable_mosaic.version = 11 : i64} {
  func.func @encoder_kernel(%arg0: i32, %arg1: memref<1x8x512xf32, #tpu.memory_space<vmem>>, %arg2: memref<1x1x8xf32, #tpu.memory_space<vmem>>, %arg3: memref<512x32xf32, #tpu.memory_space<vmem>>, %arg4: memref<8x32xf32, #tpu.memory_space<vmem>>, %arg5: memref<2x32x96xf32, #tpu.memory_space<vmem>>, %arg6: memref<2x1x96xf32, #tpu.memory_space<vmem>>, %arg7: memref<2x32x32xf32, #tpu.memory_space<vmem>>, %arg8: memref<2x32x64xf32, #tpu.memory_space<vmem>>, %arg9: memref<2x1x64xf32, #tpu.memory_space<vmem>>, %arg10: memref<2x64x32xf32, #tpu.memory_space<vmem>>, %arg11: memref<2x6x32xf32, #tpu.memory_space<vmem>>, %arg12: memref<2x32xf32, #tpu.memory_space<vmem>>, %arg13: memref<1x8x32xf32, #tpu.memory_space<vmem>>) attributes {dimension_semantics = [#tpu.dimension_semantics<parallel>], iteration_bounds = array<i64: 2>, scalar_prefetch = 0 : i64, scratch_operands = 0 : i64, tpu.core_type = #tpu.core_type<tc>, window_params = [{transform_indices = @transform_0, window_bounds = array<i64: 1, 8, 512>}, {transform_indices = @transform_1, window_bounds = array<i64: 1, 1, 8>}, {pipeline_mode = #tpu.pipeline_mode<synchronous>, transform_indices = @transform_2, window_bounds = array<i64: 512, 32>}, {pipeline_mode = #tpu.pipeline_mode<synchronous>, transform_indices = @transform_3, window_bounds = array<i64: 8, 32>}, {pipeline_mode = #tpu.pipeline_mode<synchronous>, transform_indices = @transform_4, window_bounds = array<i64: 2, 32, 96>}, {pipeline_mode = #tpu.pipeline_mode<synchronous>, transform_indices = @transform_5, window_bounds = array<i64: 2, 1, 96>}, {pipeline_mode = #tpu.pipeline_mode<synchronous>, transform_indices = @transform_6, window_bounds = array<i64: 2, 32, 32>}, {pipeline_mode = #tpu.pipeline_mode<synchronous>, transform_indices = @transform_7, window_bounds = array<i64: 2, 32, 64>}, {pipeline_mode = #tpu.pipeline_mode<synchronous>, transform_indices = @transform_8, window_bounds = array<i64: 2, 1, 64>}, {pipeline_mode = #tpu.pipeline_mode<synchronous>, transform_indices = @transform_9, window_bounds = array<i64: 2, 64, 32>}, {pipeline_mode = #tpu.pipeline_mode<synchronous>, transform_indices = @transform_10, window_bounds = array<i64: 2, 6, 32>}, {pipeline_mode = #tpu.pipeline_mode<synchronous>, transform_indices = @transform_11, window_bounds = array<i64: 2, 32>}, {transform_indices = @transform_12, window_bounds = array<i64: 1, 8, 32>}]} {
    %c0 = arith.constant 0 : index
    %c0_0 = arith.constant 0 : index
    %c0_1 = arith.constant 0 : index
    %0 = vector.load %arg1[%c0, %c0_0, %c0_1] : memref<1x8x512xf32, #tpu.memory_space<vmem>>, vector<1x8x512xf32>
    %1 = vector.shape_cast %0 : vector<1x8x512xf32> to vector<8x512xf32>
    %c0_2 = arith.constant 0 : index
    %c0_3 = arith.constant 0 : index
    %c0_4 = arith.constant 0 : index
    %2 = vector.load %arg2[%c0_2, %c0_3, %c0_4] : memref<1x1x8xf32, #tpu.memory_space<vmem>>, vector<1x1x8xf32>
    %3 = vector.shape_cast %2 : vector<1x1x8xf32> to vector<1x8xf32>
    %cst = arith.constant 1.000000e+00 : f32
    %4 = vector.broadcast %cst : f32 to vector<1x8xf32>
    %5 = arith.subf %3, %4 : vector<1x8xf32>
    %cst_5 = arith.constant 1.000000e+09 : f32
    %6 = vector.broadcast %cst_5 : f32 to vector<1x8xf32>
    %7 = arith.mulf %5, %6 : vector<1x8xf32>
    %c0_6 = arith.constant 0 : index
    %c0_7 = arith.constant 0 : index
    %8 = vector.load %arg3[%c0_6, %c0_7] : memref<512x32xf32, #tpu.memory_space<vmem>>, vector<512x32xf32>
    %cst_8 = arith.constant dense<0.000000e+00> : vector<8x32xf32>
    %9 = tpu.matmul %1, %8, %cst_8 {dimension_numbers = #tpu.dot_dimension_numbers<[1], [0], [0], [1], [0, 0, 1, 1], [], []>} : vector<8x512xf32>, vector<512x32xf32>, vector<8x32xf32> -> vector<8x32xf32>
    %c0_9 = arith.constant 0 : index
    %c0_10 = arith.constant 0 : index
    %10 = vector.load %arg4[%c0_9, %c0_10] : memref<8x32xf32, #tpu.memory_space<vmem>>, vector<8x32xf32>
    %11 = arith.addf %9, %10 : vector<8x32xf32>
    %c0_11 = arith.constant 0 : index
    %c0_12 = arith.constant 0 : index
    %c0_13 = arith.constant 0 : index
    %12 = vector.load %arg11[%c0_11, %c0_12, %c0_13] : memref<2x6x32xf32, #tpu.memory_space<vmem>>, vector<1x6x32xf32>
    %13 = vector.shape_cast %12 : vector<1x6x32xf32> to vector<6x32xf32>
    %14 = vector.extract_strided_slice %13 {offsets = [0, 0], sizes = [1, 32], strides = [1, 1]} : vector<6x32xf32> to vector<1x32xf32>
    %15 = vector.extract_strided_slice %13 {offsets = [1, 0], sizes = [1, 32], strides = [1, 1]} : vector<6x32xf32> to vector<1x32xf32>
    %16 = vector.extract_strided_slice %13 {offsets = [2, 0], sizes = [1, 32], strides = [1, 1]} : vector<6x32xf32> to vector<1x32xf32>
    %17 = vector.extract_strided_slice %13 {offsets = [3, 0], sizes = [1, 32], strides = [1, 1]} : vector<6x32xf32> to vector<1x32xf32>
    %18 = vector.extract_strided_slice %13 {offsets = [4, 0], sizes = [1, 32], strides = [1, 1]} : vector<6x32xf32> to vector<1x32xf32>
    %19 = vector.extract_strided_slice %13 {offsets = [5, 0], sizes = [1, 32], strides = [1, 1]} : vector<6x32xf32> to vector<1x32xf32>
    %c0_14 = arith.constant 0 : index
    %c0_15 = arith.constant 0 : index
    %c0_16 = arith.constant 0 : index
    %20 = vector.load %arg7[%c0_14, %c0_15, %c0_16] : memref<2x32x32xf32, #tpu.memory_space<vmem>>, vector<1x32x32xf32>
    %21 = vector.shape_cast %20 : vector<1x32x32xf32> to vector<32x32xf32>
    %cst_17 = arith.constant dense<0.000000e+00> : vector<8xf32>
    %22 = vector.multi_reduction <add>, %11, %cst_17 [1] : vector<8x32xf32> to vector<8xf32>
    %23 = vector.shape_cast %22 : vector<8xf32> to vector<8x1xf32>
    %cst_18 = arith.constant 3.200000e+01 : f32
    %24 = vector.broadcast %cst_18 : f32 to vector<8x1xf32>
    %25 = arith.divf %23, %24 : vector<8x1xf32>
    %26 = vector.broadcast %25 : vector<8x1xf32> to vector<8x32xf32>
    %27 = arith.subf %11, %26 : vector<8x32xf32>
    %28 = arith.mulf %27, %27 : vector<8x32xf32>
    %cst_19 = arith.constant dense<0.000000e+00> : vector<8xf32>
    %29 = vector.multi_reduction <add>, %28, %cst_19 [1] : vector<8x32xf32> to vector<8xf32>
    %30 = vector.shape_cast %29 : vector<8xf32> to vector<8x1xf32>
    %cst_20 = arith.constant 3.200000e+01 : f32
    %31 = vector.broadcast %cst_20 : f32 to vector<8x1xf32>
    %32 = arith.divf %30, %31 : vector<8x1xf32>
    %33 = vector.broadcast %25 : vector<8x1xf32> to vector<8x32xf32>
    %34 = arith.subf %11, %33 : vector<8x32xf32>
    %cst_21 = arith.constant 9.99999996E-13 : f32
    %35 = vector.broadcast %cst_21 : f32 to vector<8x1xf32>
    %36 = arith.addf %32, %35 : vector<8x1xf32>
    %37 = math.rsqrt %36 : vector<8x1xf32>
    %38 = vector.broadcast %37 : vector<8x1xf32> to vector<8x32xf32>
    %39 = arith.mulf %34, %38 : vector<8x32xf32>
    %40 = vector.broadcast %14 : vector<1x32xf32> to vector<8x32xf32>
    %41 = arith.mulf %39, %40 : vector<8x32xf32>
    %42 = vector.broadcast %15 : vector<1x32xf32> to vector<8x32xf32>
    %43 = arith.addf %41, %42 : vector<8x32xf32>
    %c0_22 = arith.constant 0 : index
    %c0_23 = arith.constant 0 : index
    %c0_24 = arith.constant 0 : index
    %44 = vector.load %arg5[%c0_22, %c0_23, %c0_24] : memref<2x32x96xf32, #tpu.memory_space<vmem>>, vector<1x32x96xf32>
    %45 = vector.shape_cast %44 : vector<1x32x96xf32> to vector<32x96xf32>
    %cst_25 = arith.constant dense<0.000000e+00> : vector<8x96xf32>
    %46 = tpu.matmul %43, %45, %cst_25 {dimension_numbers = #tpu.dot_dimension_numbers<[1], [0], [0], [1], [0, 0, 1, 1], [], []>} : vector<8x32xf32>, vector<32x96xf32>, vector<8x96xf32> -> vector<8x96xf32>
    %c0_26 = arith.constant 0 : index
    %c0_27 = arith.constant 0 : index
    %c0_28 = arith.constant 0 : index
    %47 = vector.load %arg6[%c0_26, %c0_27, %c0_28] : memref<2x1x96xf32, #tpu.memory_space<vmem>>, vector<1x1x96xf32>
    %48 = vector.shape_cast %47 : vector<1x1x96xf32> to vector<1x96xf32>
    %49 = vector.broadcast %48 : vector<1x96xf32> to vector<8x96xf32>
    %50 = arith.addf %46, %49 : vector<8x96xf32>
    %51 = vector.extract_strided_slice %50 {offsets = [0, 0], sizes = [8, 32], strides = [1, 1]} : vector<8x96xf32> to vector<8x32xf32>
    %52 = vector.extract_strided_slice %50 {offsets = [0, 32], sizes = [8, 32], strides = [1, 1]} : vector<8x96xf32> to vector<8x32xf32>
    %53 = vector.extract_strided_slice %50 {offsets = [0, 64], sizes = [8, 32], strides = [1, 1]} : vector<8x96xf32> to vector<8x32xf32>
    %cst_29 = arith.constant 0.000000e+00 : f32
    %54 = vector.broadcast %cst_29 : f32 to vector<8x32xf32>
    %55 = vector.extract_strided_slice %51 {offsets = [0, 0], sizes = [8, 8], strides = [1, 1]} : vector<8x32xf32> to vector<8x8xf32>
    %56 = vector.extract_strided_slice %52 {offsets = [0, 0], sizes = [8, 8], strides = [1, 1]} : vector<8x32xf32> to vector<8x8xf32>
    %cst_30 = arith.constant dense<0.000000e+00> : vector<8x8xf32>
    %57 = tpu.matmul %55, %56, %cst_30 {dimension_numbers = #tpu.dot_dimension_numbers<[1], [1], [0], [0], [0, 0, 1, 0], [], []>} : vector<8x8xf32>, vector<8x8xf32>, vector<8x8xf32> -> vector<8x8xf32>
    %cst_31 = arith.constant 0.353553385 : f32
    %58 = vector.broadcast %cst_31 : f32 to vector<8x8xf32>
    %59 = arith.mulf %57, %58 : vector<8x8xf32>
    %60 = vector.broadcast %7 : vector<1x8xf32> to vector<8x8xf32>
    %61 = arith.addf %59, %60 : vector<8x8xf32>
    %cst_32 = arith.constant dense<0xFF800000> : vector<8xf32>
    %62 = vector.multi_reduction <maximumf>, %61, %cst_32 [1] : vector<8x8xf32> to vector<8xf32>
    %63 = vector.shape_cast %62 : vector<8xf32> to vector<8x1xf32>
    %64 = vector.broadcast %63 : vector<8x1xf32> to vector<8x8xf32>
    %65 = arith.subf %61, %64 : vector<8x8xf32>
    %66 = math.exp %65 : vector<8x8xf32>
    %cst_33 = arith.constant dense<0.000000e+00> : vector<8xf32>
    %67 = vector.multi_reduction <add>, %66, %cst_33 [1] : vector<8x8xf32> to vector<8xf32>
    %68 = vector.shape_cast %67 : vector<8xf32> to vector<8x1xf32>
    %69 = tpu.reciprocal %68 {approx = true} : vector<8x1xf32> -> vector<8x1xf32>
    %70 = vector.broadcast %69 : vector<8x1xf32> to vector<8x8xf32>
    %71 = arith.mulf %66, %70 : vector<8x8xf32>
    %72 = vector.broadcast %3 : vector<1x8xf32> to vector<8x8xf32>
    %73 = arith.mulf %71, %72 : vector<8x8xf32>
    %74 = vector.extract_strided_slice %53 {offsets = [0, 0], sizes = [8, 8], strides = [1, 1]} : vector<8x32xf32> to vector<8x8xf32>
    %cst_34 = arith.constant dense<0.000000e+00> : vector<8x8xf32>
    %75 = tpu.matmul %73, %74, %cst_34 {dimension_numbers = #tpu.dot_dimension_numbers<[1], [0], [0], [1], [0, 0, 1, 1], [], []>} : vector<8x8xf32>, vector<8x8xf32>, vector<8x8xf32> -> vector<8x8xf32>
    %76 = vector.extract_strided_slice %21 {offsets = [0, 0], sizes = [8, 32], strides = [1, 1]} : vector<32x32xf32> to vector<8x32xf32>
    %cst_35 = arith.constant dense<0.000000e+00> : vector<8x32xf32>
    %77 = tpu.matmul %75, %76, %cst_35 {dimension_numbers = #tpu.dot_dimension_numbers<[1], [0], [0], [1], [0, 0, 1, 1], [], []>} : vector<8x8xf32>, vector<8x32xf32>, vector<8x32xf32> -> vector<8x32xf32>
    %78 = arith.addf %54, %77 : vector<8x32xf32>
    %79 = vector.extract_strided_slice %51 {offsets = [0, 8], sizes = [8, 8], strides = [1, 1]} : vector<8x32xf32> to vector<8x8xf32>
    %80 = vector.extract_strided_slice %52 {offsets = [0, 8], sizes = [8, 8], strides = [1, 1]} : vector<8x32xf32> to vector<8x8xf32>
    %cst_36 = arith.constant dense<0.000000e+00> : vector<8x8xf32>
    %81 = tpu.matmul %79, %80, %cst_36 {dimension_numbers = #tpu.dot_dimension_numbers<[1], [1], [0], [0], [0, 0, 1, 0], [], []>} : vector<8x8xf32>, vector<8x8xf32>, vector<8x8xf32> -> vector<8x8xf32>
    %cst_37 = arith.constant 0.353553385 : f32
    %82 = vector.broadcast %cst_37 : f32 to vector<8x8xf32>
    %83 = arith.mulf %81, %82 : vector<8x8xf32>
    %84 = vector.broadcast %7 : vector<1x8xf32> to vector<8x8xf32>
    %85 = arith.addf %83, %84 : vector<8x8xf32>
    %cst_38 = arith.constant dense<0xFF800000> : vector<8xf32>
    %86 = vector.multi_reduction <maximumf>, %85, %cst_38 [1] : vector<8x8xf32> to vector<8xf32>
    %87 = vector.shape_cast %86 : vector<8xf32> to vector<8x1xf32>
    %88 = vector.broadcast %87 : vector<8x1xf32> to vector<8x8xf32>
    %89 = arith.subf %85, %88 : vector<8x8xf32>
    %90 = math.exp %89 : vector<8x8xf32>
    %cst_39 = arith.constant dense<0.000000e+00> : vector<8xf32>
    %91 = vector.multi_reduction <add>, %90, %cst_39 [1] : vector<8x8xf32> to vector<8xf32>
    %92 = vector.shape_cast %91 : vector<8xf32> to vector<8x1xf32>
    %93 = tpu.reciprocal %92 {approx = true} : vector<8x1xf32> -> vector<8x1xf32>
    %94 = vector.broadcast %93 : vector<8x1xf32> to vector<8x8xf32>
    %95 = arith.mulf %90, %94 : vector<8x8xf32>
    %96 = vector.broadcast %3 : vector<1x8xf32> to vector<8x8xf32>
    %97 = arith.mulf %95, %96 : vector<8x8xf32>
    %98 = vector.extract_strided_slice %53 {offsets = [0, 8], sizes = [8, 8], strides = [1, 1]} : vector<8x32xf32> to vector<8x8xf32>
    %cst_40 = arith.constant dense<0.000000e+00> : vector<8x8xf32>
    %99 = tpu.matmul %97, %98, %cst_40 {dimension_numbers = #tpu.dot_dimension_numbers<[1], [0], [0], [1], [0, 0, 1, 1], [], []>} : vector<8x8xf32>, vector<8x8xf32>, vector<8x8xf32> -> vector<8x8xf32>
    %100 = vector.extract_strided_slice %21 {offsets = [8, 0], sizes = [8, 32], strides = [1, 1]} : vector<32x32xf32> to vector<8x32xf32>
    %cst_41 = arith.constant dense<0.000000e+00> : vector<8x32xf32>
    %101 = tpu.matmul %99, %100, %cst_41 {dimension_numbers = #tpu.dot_dimension_numbers<[1], [0], [0], [1], [0, 0, 1, 1], [], []>} : vector<8x8xf32>, vector<8x32xf32>, vector<8x32xf32> -> vector<8x32xf32>
    %102 = arith.addf %78, %101 : vector<8x32xf32>
    %103 = vector.extract_strided_slice %51 {offsets = [0, 16], sizes = [8, 8], strides = [1, 1]} : vector<8x32xf32> to vector<8x8xf32>
    %104 = vector.extract_strided_slice %52 {offsets = [0, 16], sizes = [8, 8], strides = [1, 1]} : vector<8x32xf32> to vector<8x8xf32>
    %cst_42 = arith.constant dense<0.000000e+00> : vector<8x8xf32>
    %105 = tpu.matmul %103, %104, %cst_42 {dimension_numbers = #tpu.dot_dimension_numbers<[1], [1], [0], [0], [0, 0, 1, 0], [], []>} : vector<8x8xf32>, vector<8x8xf32>, vector<8x8xf32> -> vector<8x8xf32>
    %cst_43 = arith.constant 0.353553385 : f32
    %106 = vector.broadcast %cst_43 : f32 to vector<8x8xf32>
    %107 = arith.mulf %105, %106 : vector<8x8xf32>
    %108 = vector.broadcast %7 : vector<1x8xf32> to vector<8x8xf32>
    %109 = arith.addf %107, %108 : vector<8x8xf32>
    %cst_44 = arith.constant dense<0xFF800000> : vector<8xf32>
    %110 = vector.multi_reduction <maximumf>, %109, %cst_44 [1] : vector<8x8xf32> to vector<8xf32>
    %111 = vector.shape_cast %110 : vector<8xf32> to vector<8x1xf32>
    %112 = vector.broadcast %111 : vector<8x1xf32> to vector<8x8xf32>
    %113 = arith.subf %109, %112 : vector<8x8xf32>
    %114 = math.exp %113 : vector<8x8xf32>
    %cst_45 = arith.constant dense<0.000000e+00> : vector<8xf32>
    %115 = vector.multi_reduction <add>, %114, %cst_45 [1] : vector<8x8xf32> to vector<8xf32>
    %116 = vector.shape_cast %115 : vector<8xf32> to vector<8x1xf32>
    %117 = tpu.reciprocal %116 {approx = true} : vector<8x1xf32> -> vector<8x1xf32>
    %118 = vector.broadcast %117 : vector<8x1xf32> to vector<8x8xf32>
    %119 = arith.mulf %114, %118 : vector<8x8xf32>
    %120 = vector.broadcast %3 : vector<1x8xf32> to vector<8x8xf32>
    %121 = arith.mulf %119, %120 : vector<8x8xf32>
    %122 = vector.extract_strided_slice %53 {offsets = [0, 16], sizes = [8, 8], strides = [1, 1]} : vector<8x32xf32> to vector<8x8xf32>
    %cst_46 = arith.constant dense<0.000000e+00> : vector<8x8xf32>
    %123 = tpu.matmul %121, %122, %cst_46 {dimension_numbers = #tpu.dot_dimension_numbers<[1], [0], [0], [1], [0, 0, 1, 1], [], []>} : vector<8x8xf32>, vector<8x8xf32>, vector<8x8xf32> -> vector<8x8xf32>
    %124 = vector.extract_strided_slice %21 {offsets = [16, 0], sizes = [8, 32], strides = [1, 1]} : vector<32x32xf32> to vector<8x32xf32>
    %cst_47 = arith.constant dense<0.000000e+00> : vector<8x32xf32>
    %125 = tpu.matmul %123, %124, %cst_47 {dimension_numbers = #tpu.dot_dimension_numbers<[1], [0], [0], [1], [0, 0, 1, 1], [], []>} : vector<8x8xf32>, vector<8x32xf32>, vector<8x32xf32> -> vector<8x32xf32>
    %126 = arith.addf %102, %125 : vector<8x32xf32>
    %127 = vector.extract_strided_slice %51 {offsets = [0, 24], sizes = [8, 8], strides = [1, 1]} : vector<8x32xf32> to vector<8x8xf32>
    %128 = vector.extract_strided_slice %52 {offsets = [0, 24], sizes = [8, 8], strides = [1, 1]} : vector<8x32xf32> to vector<8x8xf32>
    %cst_48 = arith.constant dense<0.000000e+00> : vector<8x8xf32>
    %129 = tpu.matmul %127, %128, %cst_48 {dimension_numbers = #tpu.dot_dimension_numbers<[1], [1], [0], [0], [0, 0, 1, 0], [], []>} : vector<8x8xf32>, vector<8x8xf32>, vector<8x8xf32> -> vector<8x8xf32>
    %cst_49 = arith.constant 0.353553385 : f32
    %130 = vector.broadcast %cst_49 : f32 to vector<8x8xf32>
    %131 = arith.mulf %129, %130 : vector<8x8xf32>
    %132 = vector.broadcast %7 : vector<1x8xf32> to vector<8x8xf32>
    %133 = arith.addf %131, %132 : vector<8x8xf32>
    %cst_50 = arith.constant dense<0xFF800000> : vector<8xf32>
    %134 = vector.multi_reduction <maximumf>, %133, %cst_50 [1] : vector<8x8xf32> to vector<8xf32>
    %135 = vector.shape_cast %134 : vector<8xf32> to vector<8x1xf32>
    %136 = vector.broadcast %135 : vector<8x1xf32> to vector<8x8xf32>
    %137 = arith.subf %133, %136 : vector<8x8xf32>
    %138 = math.exp %137 : vector<8x8xf32>
    %cst_51 = arith.constant dense<0.000000e+00> : vector<8xf32>
    %139 = vector.multi_reduction <add>, %138, %cst_51 [1] : vector<8x8xf32> to vector<8xf32>
    %140 = vector.shape_cast %139 : vector<8xf32> to vector<8x1xf32>
    %141 = tpu.reciprocal %140 {approx = true} : vector<8x1xf32> -> vector<8x1xf32>
    %142 = vector.broadcast %141 : vector<8x1xf32> to vector<8x8xf32>
    %143 = arith.mulf %138, %142 : vector<8x8xf32>
    %144 = vector.broadcast %3 : vector<1x8xf32> to vector<8x8xf32>
    %145 = arith.mulf %143, %144 : vector<8x8xf32>
    %146 = vector.extract_strided_slice %53 {offsets = [0, 24], sizes = [8, 8], strides = [1, 1]} : vector<8x32xf32> to vector<8x8xf32>
    %cst_52 = arith.constant dense<0.000000e+00> : vector<8x8xf32>
    %147 = tpu.matmul %145, %146, %cst_52 {dimension_numbers = #tpu.dot_dimension_numbers<[1], [0], [0], [1], [0, 0, 1, 1], [], []>} : vector<8x8xf32>, vector<8x8xf32>, vector<8x8xf32> -> vector<8x8xf32>
    %148 = vector.extract_strided_slice %21 {offsets = [24, 0], sizes = [8, 32], strides = [1, 1]} : vector<32x32xf32> to vector<8x32xf32>
    %cst_53 = arith.constant dense<0.000000e+00> : vector<8x32xf32>
    %149 = tpu.matmul %147, %148, %cst_53 {dimension_numbers = #tpu.dot_dimension_numbers<[1], [0], [0], [1], [0, 0, 1, 1], [], []>} : vector<8x8xf32>, vector<8x32xf32>, vector<8x32xf32> -> vector<8x32xf32>
    %150 = arith.addf %126, %149 : vector<8x32xf32>
    %151 = arith.addf %11, %150 : vector<8x32xf32>
    %152 = vector.broadcast %18 : vector<1x32xf32> to vector<8x32xf32>
    %153 = arith.addf %151, %152 : vector<8x32xf32>
    %cst_54 = arith.constant dense<0.000000e+00> : vector<8xf32>
    %154 = vector.multi_reduction <add>, %153, %cst_54 [1] : vector<8x32xf32> to vector<8xf32>
    %155 = vector.shape_cast %154 : vector<8xf32> to vector<8x1xf32>
    %cst_55 = arith.constant 3.200000e+01 : f32
    %156 = vector.broadcast %cst_55 : f32 to vector<8x1xf32>
    %157 = arith.divf %155, %156 : vector<8x1xf32>
    %158 = vector.broadcast %157 : vector<8x1xf32> to vector<8x32xf32>
    %159 = arith.subf %153, %158 : vector<8x32xf32>
    %160 = arith.mulf %159, %159 : vector<8x32xf32>
    %cst_56 = arith.constant dense<0.000000e+00> : vector<8xf32>
    %161 = vector.multi_reduction <add>, %160, %cst_56 [1] : vector<8x32xf32> to vector<8xf32>
    %162 = vector.shape_cast %161 : vector<8xf32> to vector<8x1xf32>
    %cst_57 = arith.constant 3.200000e+01 : f32
    %163 = vector.broadcast %cst_57 : f32 to vector<8x1xf32>
    %164 = arith.divf %162, %163 : vector<8x1xf32>
    %165 = vector.broadcast %157 : vector<8x1xf32> to vector<8x32xf32>
    %166 = arith.subf %153, %165 : vector<8x32xf32>
    %cst_58 = arith.constant 9.99999996E-13 : f32
    %167 = vector.broadcast %cst_58 : f32 to vector<8x1xf32>
    %168 = arith.addf %164, %167 : vector<8x1xf32>
    %169 = math.rsqrt %168 : vector<8x1xf32>
    %170 = vector.broadcast %169 : vector<8x1xf32> to vector<8x32xf32>
    %171 = arith.mulf %166, %170 : vector<8x32xf32>
    %172 = vector.broadcast %16 : vector<1x32xf32> to vector<8x32xf32>
    %173 = arith.mulf %171, %172 : vector<8x32xf32>
    %174 = vector.broadcast %17 : vector<1x32xf32> to vector<8x32xf32>
    %175 = arith.addf %173, %174 : vector<8x32xf32>
    %c0_59 = arith.constant 0 : index
    %c0_60 = arith.constant 0 : index
    %c0_61 = arith.constant 0 : index
    %176 = vector.load %arg8[%c0_59, %c0_60, %c0_61] : memref<2x32x64xf32, #tpu.memory_space<vmem>>, vector<1x32x64xf32>
    %177 = vector.shape_cast %176 : vector<1x32x64xf32> to vector<32x64xf32>
    %cst_62 = arith.constant dense<0.000000e+00> : vector<8x64xf32>
    %178 = tpu.matmul %175, %177, %cst_62 {dimension_numbers = #tpu.dot_dimension_numbers<[1], [0], [0], [1], [0, 0, 1, 1], [], []>} : vector<8x32xf32>, vector<32x64xf32>, vector<8x64xf32> -> vector<8x64xf32>
    %c0_63 = arith.constant 0 : index
    %c0_64 = arith.constant 0 : index
    %c0_65 = arith.constant 0 : index
    %179 = vector.load %arg9[%c0_63, %c0_64, %c0_65] : memref<2x1x64xf32, #tpu.memory_space<vmem>>, vector<1x1x64xf32>
    %180 = vector.shape_cast %179 : vector<1x1x64xf32> to vector<1x64xf32>
    %181 = vector.broadcast %180 : vector<1x64xf32> to vector<8x64xf32>
    %182 = arith.addf %178, %181 : vector<8x64xf32>
    %cst_66 = arith.constant 0.000000e+00 : f32
    %183 = vector.broadcast %cst_66 : f32 to vector<8x64xf32>
    %184 = arith.maximumf %182, %183 : vector<8x64xf32>
    %c0_67 = arith.constant 0 : index
    %c0_68 = arith.constant 0 : index
    %c0_69 = arith.constant 0 : index
    %185 = vector.load %arg10[%c0_67, %c0_68, %c0_69] : memref<2x64x32xf32, #tpu.memory_space<vmem>>, vector<1x64x32xf32>
    %186 = vector.shape_cast %185 : vector<1x64x32xf32> to vector<64x32xf32>
    %cst_70 = arith.constant dense<0.000000e+00> : vector<8x32xf32>
    %187 = tpu.matmul %184, %186, %cst_70 {dimension_numbers = #tpu.dot_dimension_numbers<[1], [0], [0], [1], [0, 0, 1, 1], [], []>} : vector<8x64xf32>, vector<64x32xf32>, vector<8x32xf32> -> vector<8x32xf32>
    %188 = arith.addf %153, %187 : vector<8x32xf32>
    %189 = vector.broadcast %19 : vector<1x32xf32> to vector<8x32xf32>
    %190 = arith.addf %188, %189 : vector<8x32xf32>
    %c1 = arith.constant 1 : index
    %c0_71 = arith.constant 0 : index
    %c0_72 = arith.constant 0 : index
    %191 = vector.load %arg11[%c1, %c0_71, %c0_72] : memref<2x6x32xf32, #tpu.memory_space<vmem>>, vector<1x6x32xf32>
    %192 = vector.shape_cast %191 : vector<1x6x32xf32> to vector<6x32xf32>
    %193 = vector.extract_strided_slice %192 {offsets = [0, 0], sizes = [1, 32], strides = [1, 1]} : vector<6x32xf32> to vector<1x32xf32>
    %194 = vector.extract_strided_slice %192 {offsets = [1, 0], sizes = [1, 32], strides = [1, 1]} : vector<6x32xf32> to vector<1x32xf32>
    %195 = vector.extract_strided_slice %192 {offsets = [2, 0], sizes = [1, 32], strides = [1, 1]} : vector<6x32xf32> to vector<1x32xf32>
    %196 = vector.extract_strided_slice %192 {offsets = [3, 0], sizes = [1, 32], strides = [1, 1]} : vector<6x32xf32> to vector<1x32xf32>
    %197 = vector.extract_strided_slice %192 {offsets = [4, 0], sizes = [1, 32], strides = [1, 1]} : vector<6x32xf32> to vector<1x32xf32>
    %198 = vector.extract_strided_slice %192 {offsets = [5, 0], sizes = [1, 32], strides = [1, 1]} : vector<6x32xf32> to vector<1x32xf32>
    %c1_73 = arith.constant 1 : index
    %c0_74 = arith.constant 0 : index
    %c0_75 = arith.constant 0 : index
    %199 = vector.load %arg7[%c1_73, %c0_74, %c0_75] : memref<2x32x32xf32, #tpu.memory_space<vmem>>, vector<1x32x32xf32>
    %200 = vector.shape_cast %199 : vector<1x32x32xf32> to vector<32x32xf32>
    %cst_76 = arith.constant dense<0.000000e+00> : vector<8xf32>
    %201 = vector.multi_reduction <add>, %190, %cst_76 [1] : vector<8x32xf32> to vector<8xf32>
    %202 = vector.shape_cast %201 : vector<8xf32> to vector<8x1xf32>
    %cst_77 = arith.constant 3.200000e+01 : f32
    %203 = vector.broadcast %cst_77 : f32 to vector<8x1xf32>
    %204 = arith.divf %202, %203 : vector<8x1xf32>
    %205 = vector.broadcast %204 : vector<8x1xf32> to vector<8x32xf32>
    %206 = arith.subf %190, %205 : vector<8x32xf32>
    %207 = arith.mulf %206, %206 : vector<8x32xf32>
    %cst_78 = arith.constant dense<0.000000e+00> : vector<8xf32>
    %208 = vector.multi_reduction <add>, %207, %cst_78 [1] : vector<8x32xf32> to vector<8xf32>
    %209 = vector.shape_cast %208 : vector<8xf32> to vector<8x1xf32>
    %cst_79 = arith.constant 3.200000e+01 : f32
    %210 = vector.broadcast %cst_79 : f32 to vector<8x1xf32>
    %211 = arith.divf %209, %210 : vector<8x1xf32>
    %212 = vector.broadcast %204 : vector<8x1xf32> to vector<8x32xf32>
    %213 = arith.subf %190, %212 : vector<8x32xf32>
    %cst_80 = arith.constant 9.99999996E-13 : f32
    %214 = vector.broadcast %cst_80 : f32 to vector<8x1xf32>
    %215 = arith.addf %211, %214 : vector<8x1xf32>
    %216 = math.rsqrt %215 : vector<8x1xf32>
    %217 = vector.broadcast %216 : vector<8x1xf32> to vector<8x32xf32>
    %218 = arith.mulf %213, %217 : vector<8x32xf32>
    %219 = vector.broadcast %193 : vector<1x32xf32> to vector<8x32xf32>
    %220 = arith.mulf %218, %219 : vector<8x32xf32>
    %221 = vector.broadcast %194 : vector<1x32xf32> to vector<8x32xf32>
    %222 = arith.addf %220, %221 : vector<8x32xf32>
    %c1_81 = arith.constant 1 : index
    %c0_82 = arith.constant 0 : index
    %c0_83 = arith.constant 0 : index
    %223 = vector.load %arg5[%c1_81, %c0_82, %c0_83] : memref<2x32x96xf32, #tpu.memory_space<vmem>>, vector<1x32x96xf32>
    %224 = vector.shape_cast %223 : vector<1x32x96xf32> to vector<32x96xf32>
    %cst_84 = arith.constant dense<0.000000e+00> : vector<8x96xf32>
    %225 = tpu.matmul %222, %224, %cst_84 {dimension_numbers = #tpu.dot_dimension_numbers<[1], [0], [0], [1], [0, 0, 1, 1], [], []>} : vector<8x32xf32>, vector<32x96xf32>, vector<8x96xf32> -> vector<8x96xf32>
    %c1_85 = arith.constant 1 : index
    %c0_86 = arith.constant 0 : index
    %c0_87 = arith.constant 0 : index
    %226 = vector.load %arg6[%c1_85, %c0_86, %c0_87] : memref<2x1x96xf32, #tpu.memory_space<vmem>>, vector<1x1x96xf32>
    %227 = vector.shape_cast %226 : vector<1x1x96xf32> to vector<1x96xf32>
    %228 = vector.broadcast %227 : vector<1x96xf32> to vector<8x96xf32>
    %229 = arith.addf %225, %228 : vector<8x96xf32>
    %230 = vector.extract_strided_slice %229 {offsets = [0, 0], sizes = [8, 32], strides = [1, 1]} : vector<8x96xf32> to vector<8x32xf32>
    %231 = vector.extract_strided_slice %229 {offsets = [0, 32], sizes = [8, 32], strides = [1, 1]} : vector<8x96xf32> to vector<8x32xf32>
    %232 = vector.extract_strided_slice %229 {offsets = [0, 64], sizes = [8, 32], strides = [1, 1]} : vector<8x96xf32> to vector<8x32xf32>
    %cst_88 = arith.constant 0.000000e+00 : f32
    %233 = vector.broadcast %cst_88 : f32 to vector<8x32xf32>
    %234 = vector.extract_strided_slice %230 {offsets = [0, 0], sizes = [8, 8], strides = [1, 1]} : vector<8x32xf32> to vector<8x8xf32>
    %235 = vector.extract_strided_slice %231 {offsets = [0, 0], sizes = [8, 8], strides = [1, 1]} : vector<8x32xf32> to vector<8x8xf32>
    %cst_89 = arith.constant dense<0.000000e+00> : vector<8x8xf32>
    %236 = tpu.matmul %234, %235, %cst_89 {dimension_numbers = #tpu.dot_dimension_numbers<[1], [1], [0], [0], [0, 0, 1, 0], [], []>} : vector<8x8xf32>, vector<8x8xf32>, vector<8x8xf32> -> vector<8x8xf32>
    %cst_90 = arith.constant 0.353553385 : f32
    %237 = vector.broadcast %cst_90 : f32 to vector<8x8xf32>
    %238 = arith.mulf %236, %237 : vector<8x8xf32>
    %239 = vector.broadcast %7 : vector<1x8xf32> to vector<8x8xf32>
    %240 = arith.addf %238, %239 : vector<8x8xf32>
    %cst_91 = arith.constant dense<0xFF800000> : vector<8xf32>
    %241 = vector.multi_reduction <maximumf>, %240, %cst_91 [1] : vector<8x8xf32> to vector<8xf32>
    %242 = vector.shape_cast %241 : vector<8xf32> to vector<8x1xf32>
    %243 = vector.broadcast %242 : vector<8x1xf32> to vector<8x8xf32>
    %244 = arith.subf %240, %243 : vector<8x8xf32>
    %245 = math.exp %244 : vector<8x8xf32>
    %cst_92 = arith.constant dense<0.000000e+00> : vector<8xf32>
    %246 = vector.multi_reduction <add>, %245, %cst_92 [1] : vector<8x8xf32> to vector<8xf32>
    %247 = vector.shape_cast %246 : vector<8xf32> to vector<8x1xf32>
    %248 = tpu.reciprocal %247 {approx = true} : vector<8x1xf32> -> vector<8x1xf32>
    %249 = vector.broadcast %248 : vector<8x1xf32> to vector<8x8xf32>
    %250 = arith.mulf %245, %249 : vector<8x8xf32>
    %251 = vector.broadcast %3 : vector<1x8xf32> to vector<8x8xf32>
    %252 = arith.mulf %250, %251 : vector<8x8xf32>
    %253 = vector.extract_strided_slice %232 {offsets = [0, 0], sizes = [8, 8], strides = [1, 1]} : vector<8x32xf32> to vector<8x8xf32>
    %cst_93 = arith.constant dense<0.000000e+00> : vector<8x8xf32>
    %254 = tpu.matmul %252, %253, %cst_93 {dimension_numbers = #tpu.dot_dimension_numbers<[1], [0], [0], [1], [0, 0, 1, 1], [], []>} : vector<8x8xf32>, vector<8x8xf32>, vector<8x8xf32> -> vector<8x8xf32>
    %255 = vector.extract_strided_slice %200 {offsets = [0, 0], sizes = [8, 32], strides = [1, 1]} : vector<32x32xf32> to vector<8x32xf32>
    %cst_94 = arith.constant dense<0.000000e+00> : vector<8x32xf32>
    %256 = tpu.matmul %254, %255, %cst_94 {dimension_numbers = #tpu.dot_dimension_numbers<[1], [0], [0], [1], [0, 0, 1, 1], [], []>} : vector<8x8xf32>, vector<8x32xf32>, vector<8x32xf32> -> vector<8x32xf32>
    %257 = arith.addf %233, %256 : vector<8x32xf32>
    %258 = vector.extract_strided_slice %230 {offsets = [0, 8], sizes = [8, 8], strides = [1, 1]} : vector<8x32xf32> to vector<8x8xf32>
    %259 = vector.extract_strided_slice %231 {offsets = [0, 8], sizes = [8, 8], strides = [1, 1]} : vector<8x32xf32> to vector<8x8xf32>
    %cst_95 = arith.constant dense<0.000000e+00> : vector<8x8xf32>
    %260 = tpu.matmul %258, %259, %cst_95 {dimension_numbers = #tpu.dot_dimension_numbers<[1], [1], [0], [0], [0, 0, 1, 0], [], []>} : vector<8x8xf32>, vector<8x8xf32>, vector<8x8xf32> -> vector<8x8xf32>
    %cst_96 = arith.constant 0.353553385 : f32
    %261 = vector.broadcast %cst_96 : f32 to vector<8x8xf32>
    %262 = arith.mulf %260, %261 : vector<8x8xf32>
    %263 = vector.broadcast %7 : vector<1x8xf32> to vector<8x8xf32>
    %264 = arith.addf %262, %263 : vector<8x8xf32>
    %cst_97 = arith.constant dense<0xFF800000> : vector<8xf32>
    %265 = vector.multi_reduction <maximumf>, %264, %cst_97 [1] : vector<8x8xf32> to vector<8xf32>
    %266 = vector.shape_cast %265 : vector<8xf32> to vector<8x1xf32>
    %267 = vector.broadcast %266 : vector<8x1xf32> to vector<8x8xf32>
    %268 = arith.subf %264, %267 : vector<8x8xf32>
    %269 = math.exp %268 : vector<8x8xf32>
    %cst_98 = arith.constant dense<0.000000e+00> : vector<8xf32>
    %270 = vector.multi_reduction <add>, %269, %cst_98 [1] : vector<8x8xf32> to vector<8xf32>
    %271 = vector.shape_cast %270 : vector<8xf32> to vector<8x1xf32>
    %272 = tpu.reciprocal %271 {approx = true} : vector<8x1xf32> -> vector<8x1xf32>
    %273 = vector.broadcast %272 : vector<8x1xf32> to vector<8x8xf32>
    %274 = arith.mulf %269, %273 : vector<8x8xf32>
    %275 = vector.broadcast %3 : vector<1x8xf32> to vector<8x8xf32>
    %276 = arith.mulf %274, %275 : vector<8x8xf32>
    %277 = vector.extract_strided_slice %232 {offsets = [0, 8], sizes = [8, 8], strides = [1, 1]} : vector<8x32xf32> to vector<8x8xf32>
    %cst_99 = arith.constant dense<0.000000e+00> : vector<8x8xf32>
    %278 = tpu.matmul %276, %277, %cst_99 {dimension_numbers = #tpu.dot_dimension_numbers<[1], [0], [0], [1], [0, 0, 1, 1], [], []>} : vector<8x8xf32>, vector<8x8xf32>, vector<8x8xf32> -> vector<8x8xf32>
    %279 = vector.extract_strided_slice %200 {offsets = [8, 0], sizes = [8, 32], strides = [1, 1]} : vector<32x32xf32> to vector<8x32xf32>
    %cst_100 = arith.constant dense<0.000000e+00> : vector<8x32xf32>
    %280 = tpu.matmul %278, %279, %cst_100 {dimension_numbers = #tpu.dot_dimension_numbers<[1], [0], [0], [1], [0, 0, 1, 1], [], []>} : vector<8x8xf32>, vector<8x32xf32>, vector<8x32xf32> -> vector<8x32xf32>
    %281 = arith.addf %257, %280 : vector<8x32xf32>
    %282 = vector.extract_strided_slice %230 {offsets = [0, 16], sizes = [8, 8], strides = [1, 1]} : vector<8x32xf32> to vector<8x8xf32>
    %283 = vector.extract_strided_slice %231 {offsets = [0, 16], sizes = [8, 8], strides = [1, 1]} : vector<8x32xf32> to vector<8x8xf32>
    %cst_101 = arith.constant dense<0.000000e+00> : vector<8x8xf32>
    %284 = tpu.matmul %282, %283, %cst_101 {dimension_numbers = #tpu.dot_dimension_numbers<[1], [1], [0], [0], [0, 0, 1, 0], [], []>} : vector<8x8xf32>, vector<8x8xf32>, vector<8x8xf32> -> vector<8x8xf32>
    %cst_102 = arith.constant 0.353553385 : f32
    %285 = vector.broadcast %cst_102 : f32 to vector<8x8xf32>
    %286 = arith.mulf %284, %285 : vector<8x8xf32>
    %287 = vector.broadcast %7 : vector<1x8xf32> to vector<8x8xf32>
    %288 = arith.addf %286, %287 : vector<8x8xf32>
    %cst_103 = arith.constant dense<0xFF800000> : vector<8xf32>
    %289 = vector.multi_reduction <maximumf>, %288, %cst_103 [1] : vector<8x8xf32> to vector<8xf32>
    %290 = vector.shape_cast %289 : vector<8xf32> to vector<8x1xf32>
    %291 = vector.broadcast %290 : vector<8x1xf32> to vector<8x8xf32>
    %292 = arith.subf %288, %291 : vector<8x8xf32>
    %293 = math.exp %292 : vector<8x8xf32>
    %cst_104 = arith.constant dense<0.000000e+00> : vector<8xf32>
    %294 = vector.multi_reduction <add>, %293, %cst_104 [1] : vector<8x8xf32> to vector<8xf32>
    %295 = vector.shape_cast %294 : vector<8xf32> to vector<8x1xf32>
    %296 = tpu.reciprocal %295 {approx = true} : vector<8x1xf32> -> vector<8x1xf32>
    %297 = vector.broadcast %296 : vector<8x1xf32> to vector<8x8xf32>
    %298 = arith.mulf %293, %297 : vector<8x8xf32>
    %299 = vector.broadcast %3 : vector<1x8xf32> to vector<8x8xf32>
    %300 = arith.mulf %298, %299 : vector<8x8xf32>
    %301 = vector.extract_strided_slice %232 {offsets = [0, 16], sizes = [8, 8], strides = [1, 1]} : vector<8x32xf32> to vector<8x8xf32>
    %cst_105 = arith.constant dense<0.000000e+00> : vector<8x8xf32>
    %302 = tpu.matmul %300, %301, %cst_105 {dimension_numbers = #tpu.dot_dimension_numbers<[1], [0], [0], [1], [0, 0, 1, 1], [], []>} : vector<8x8xf32>, vector<8x8xf32>, vector<8x8xf32> -> vector<8x8xf32>
    %303 = vector.extract_strided_slice %200 {offsets = [16, 0], sizes = [8, 32], strides = [1, 1]} : vector<32x32xf32> to vector<8x32xf32>
    %cst_106 = arith.constant dense<0.000000e+00> : vector<8x32xf32>
    %304 = tpu.matmul %302, %303, %cst_106 {dimension_numbers = #tpu.dot_dimension_numbers<[1], [0], [0], [1], [0, 0, 1, 1], [], []>} : vector<8x8xf32>, vector<8x32xf32>, vector<8x32xf32> -> vector<8x32xf32>
    %305 = arith.addf %281, %304 : vector<8x32xf32>
    %306 = vector.extract_strided_slice %230 {offsets = [0, 24], sizes = [8, 8], strides = [1, 1]} : vector<8x32xf32> to vector<8x8xf32>
    %307 = vector.extract_strided_slice %231 {offsets = [0, 24], sizes = [8, 8], strides = [1, 1]} : vector<8x32xf32> to vector<8x8xf32>
    %cst_107 = arith.constant dense<0.000000e+00> : vector<8x8xf32>
    %308 = tpu.matmul %306, %307, %cst_107 {dimension_numbers = #tpu.dot_dimension_numbers<[1], [1], [0], [0], [0, 0, 1, 0], [], []>} : vector<8x8xf32>, vector<8x8xf32>, vector<8x8xf32> -> vector<8x8xf32>
    %cst_108 = arith.constant 0.353553385 : f32
    %309 = vector.broadcast %cst_108 : f32 to vector<8x8xf32>
    %310 = arith.mulf %308, %309 : vector<8x8xf32>
    %311 = vector.broadcast %7 : vector<1x8xf32> to vector<8x8xf32>
    %312 = arith.addf %310, %311 : vector<8x8xf32>
    %cst_109 = arith.constant dense<0xFF800000> : vector<8xf32>
    %313 = vector.multi_reduction <maximumf>, %312, %cst_109 [1] : vector<8x8xf32> to vector<8xf32>
    %314 = vector.shape_cast %313 : vector<8xf32> to vector<8x1xf32>
    %315 = vector.broadcast %314 : vector<8x1xf32> to vector<8x8xf32>
    %316 = arith.subf %312, %315 : vector<8x8xf32>
    %317 = math.exp %316 : vector<8x8xf32>
    %cst_110 = arith.constant dense<0.000000e+00> : vector<8xf32>
    %318 = vector.multi_reduction <add>, %317, %cst_110 [1] : vector<8x8xf32> to vector<8xf32>
    %319 = vector.shape_cast %318 : vector<8xf32> to vector<8x1xf32>
    %320 = tpu.reciprocal %319 {approx = true} : vector<8x1xf32> -> vector<8x1xf32>
    %321 = vector.broadcast %320 : vector<8x1xf32> to vector<8x8xf32>
    %322 = arith.mulf %317, %321 : vector<8x8xf32>
    %323 = vector.broadcast %3 : vector<1x8xf32> to vector<8x8xf32>
    %324 = arith.mulf %322, %323 : vector<8x8xf32>
    %325 = vector.extract_strided_slice %232 {offsets = [0, 24], sizes = [8, 8], strides = [1, 1]} : vector<8x32xf32> to vector<8x8xf32>
    %cst_111 = arith.constant dense<0.000000e+00> : vector<8x8xf32>
    %326 = tpu.matmul %324, %325, %cst_111 {dimension_numbers = #tpu.dot_dimension_numbers<[1], [0], [0], [1], [0, 0, 1, 1], [], []>} : vector<8x8xf32>, vector<8x8xf32>, vector<8x8xf32> -> vector<8x8xf32>
    %327 = vector.extract_strided_slice %200 {offsets = [24, 0], sizes = [8, 32], strides = [1, 1]} : vector<32x32xf32> to vector<8x32xf32>
    %cst_112 = arith.constant dense<0.000000e+00> : vector<8x32xf32>
    %328 = tpu.matmul %326, %327, %cst_112 {dimension_numbers = #tpu.dot_dimension_numbers<[1], [0], [0], [1], [0, 0, 1, 1], [], []>} : vector<8x8xf32>, vector<8x32xf32>, vector<8x32xf32> -> vector<8x32xf32>
    %329 = arith.addf %305, %328 : vector<8x32xf32>
    %330 = arith.addf %190, %329 : vector<8x32xf32>
    %331 = vector.broadcast %197 : vector<1x32xf32> to vector<8x32xf32>
    %332 = arith.addf %330, %331 : vector<8x32xf32>
    %cst_113 = arith.constant dense<0.000000e+00> : vector<8xf32>
    %333 = vector.multi_reduction <add>, %332, %cst_113 [1] : vector<8x32xf32> to vector<8xf32>
    %334 = vector.shape_cast %333 : vector<8xf32> to vector<8x1xf32>
    %cst_114 = arith.constant 3.200000e+01 : f32
    %335 = vector.broadcast %cst_114 : f32 to vector<8x1xf32>
    %336 = arith.divf %334, %335 : vector<8x1xf32>
    %337 = vector.broadcast %336 : vector<8x1xf32> to vector<8x32xf32>
    %338 = arith.subf %332, %337 : vector<8x32xf32>
    %339 = arith.mulf %338, %338 : vector<8x32xf32>
    %cst_115 = arith.constant dense<0.000000e+00> : vector<8xf32>
    %340 = vector.multi_reduction <add>, %339, %cst_115 [1] : vector<8x32xf32> to vector<8xf32>
    %341 = vector.shape_cast %340 : vector<8xf32> to vector<8x1xf32>
    %cst_116 = arith.constant 3.200000e+01 : f32
    %342 = vector.broadcast %cst_116 : f32 to vector<8x1xf32>
    %343 = arith.divf %341, %342 : vector<8x1xf32>
    %344 = vector.broadcast %336 : vector<8x1xf32> to vector<8x32xf32>
    %345 = arith.subf %332, %344 : vector<8x32xf32>
    %cst_117 = arith.constant 9.99999996E-13 : f32
    %346 = vector.broadcast %cst_117 : f32 to vector<8x1xf32>
    %347 = arith.addf %343, %346 : vector<8x1xf32>
    %348 = math.rsqrt %347 : vector<8x1xf32>
    %349 = vector.broadcast %348 : vector<8x1xf32> to vector<8x32xf32>
    %350 = arith.mulf %345, %349 : vector<8x32xf32>
    %351 = vector.broadcast %195 : vector<1x32xf32> to vector<8x32xf32>
    %352 = arith.mulf %350, %351 : vector<8x32xf32>
    %353 = vector.broadcast %196 : vector<1x32xf32> to vector<8x32xf32>
    %354 = arith.addf %352, %353 : vector<8x32xf32>
    %c1_118 = arith.constant 1 : index
    %c0_119 = arith.constant 0 : index
    %c0_120 = arith.constant 0 : index
    %355 = vector.load %arg8[%c1_118, %c0_119, %c0_120] : memref<2x32x64xf32, #tpu.memory_space<vmem>>, vector<1x32x64xf32>
    %356 = vector.shape_cast %355 : vector<1x32x64xf32> to vector<32x64xf32>
    %cst_121 = arith.constant dense<0.000000e+00> : vector<8x64xf32>
    %357 = tpu.matmul %354, %356, %cst_121 {dimension_numbers = #tpu.dot_dimension_numbers<[1], [0], [0], [1], [0, 0, 1, 1], [], []>} : vector<8x32xf32>, vector<32x64xf32>, vector<8x64xf32> -> vector<8x64xf32>
    %c1_122 = arith.constant 1 : index
    %c0_123 = arith.constant 0 : index
    %c0_124 = arith.constant 0 : index
    %358 = vector.load %arg9[%c1_122, %c0_123, %c0_124] : memref<2x1x64xf32, #tpu.memory_space<vmem>>, vector<1x1x64xf32>
    %359 = vector.shape_cast %358 : vector<1x1x64xf32> to vector<1x64xf32>
    %360 = vector.broadcast %359 : vector<1x64xf32> to vector<8x64xf32>
    %361 = arith.addf %357, %360 : vector<8x64xf32>
    %cst_125 = arith.constant 0.000000e+00 : f32
    %362 = vector.broadcast %cst_125 : f32 to vector<8x64xf32>
    %363 = arith.maximumf %361, %362 : vector<8x64xf32>
    %c1_126 = arith.constant 1 : index
    %c0_127 = arith.constant 0 : index
    %c0_128 = arith.constant 0 : index
    %364 = vector.load %arg10[%c1_126, %c0_127, %c0_128] : memref<2x64x32xf32, #tpu.memory_space<vmem>>, vector<1x64x32xf32>
    %365 = vector.shape_cast %364 : vector<1x64x32xf32> to vector<64x32xf32>
    %cst_129 = arith.constant dense<0.000000e+00> : vector<8x32xf32>
    %366 = tpu.matmul %363, %365, %cst_129 {dimension_numbers = #tpu.dot_dimension_numbers<[1], [0], [0], [1], [0, 0, 1, 1], [], []>} : vector<8x64xf32>, vector<64x32xf32>, vector<8x32xf32> -> vector<8x32xf32>
    %367 = arith.addf %332, %366 : vector<8x32xf32>
    %368 = vector.broadcast %198 : vector<1x32xf32> to vector<8x32xf32>
    %369 = arith.addf %367, %368 : vector<8x32xf32>
    %c0_130 = arith.constant 0 : index
    %c0_131 = arith.constant 0 : index
    %370 = vector.load %arg12[%c0_130, %c0_131] : memref<2x32xf32, #tpu.memory_space<vmem>>, vector<1x32xf32>
    %c1_132 = arith.constant 1 : index
    %c0_133 = arith.constant 0 : index
    %371 = vector.load %arg12[%c1_132, %c0_133] : memref<2x32xf32, #tpu.memory_space<vmem>>, vector<1x32xf32>
    %cst_134 = arith.constant dense<0.000000e+00> : vector<8xf32>
    %372 = vector.multi_reduction <add>, %369, %cst_134 [1] : vector<8x32xf32> to vector<8xf32>
    %373 = vector.shape_cast %372 : vector<8xf32> to vector<8x1xf32>
    %cst_135 = arith.constant 3.200000e+01 : f32
    %374 = vector.broadcast %cst_135 : f32 to vector<8x1xf32>
    %375 = arith.divf %373, %374 : vector<8x1xf32>
    %376 = vector.broadcast %375 : vector<8x1xf32> to vector<8x32xf32>
    %377 = arith.subf %369, %376 : vector<8x32xf32>
    %378 = arith.mulf %377, %377 : vector<8x32xf32>
    %cst_136 = arith.constant dense<0.000000e+00> : vector<8xf32>
    %379 = vector.multi_reduction <add>, %378, %cst_136 [1] : vector<8x32xf32> to vector<8xf32>
    %380 = vector.shape_cast %379 : vector<8xf32> to vector<8x1xf32>
    %cst_137 = arith.constant 3.200000e+01 : f32
    %381 = vector.broadcast %cst_137 : f32 to vector<8x1xf32>
    %382 = arith.divf %380, %381 : vector<8x1xf32>
    %383 = vector.broadcast %375 : vector<8x1xf32> to vector<8x32xf32>
    %384 = arith.subf %369, %383 : vector<8x32xf32>
    %cst_138 = arith.constant 9.99999996E-13 : f32
    %385 = vector.broadcast %cst_138 : f32 to vector<8x1xf32>
    %386 = arith.addf %382, %385 : vector<8x1xf32>
    %387 = math.rsqrt %386 : vector<8x1xf32>
    %388 = vector.broadcast %387 : vector<8x1xf32> to vector<8x32xf32>
    %389 = arith.mulf %384, %388 : vector<8x32xf32>
    %390 = vector.broadcast %370 : vector<1x32xf32> to vector<8x32xf32>
    %391 = arith.mulf %389, %390 : vector<8x32xf32>
    %392 = vector.broadcast %371 : vector<1x32xf32> to vector<8x32xf32>
    %393 = arith.addf %391, %392 : vector<8x32xf32>
    %c0_139 = arith.constant 0 : index
    %c0_140 = arith.constant 0 : index
    %c0_141 = arith.constant 0 : index
    %394 = vector.load %arg13[%c0_139, %c0_140, %c0_141] : memref<1x8x32xf32, #tpu.memory_space<vmem>>, vector<1x8x32xf32>
    %395 = vector.shape_cast %394 : vector<1x8x32xf32> to vector<8x32xf32>
    %396 = vector.shape_cast %393 : vector<8x32xf32> to vector<1x8x32xf32>
    tpu.vector_store %arg13[%c0_139, %c0_140, %c0_141], %396 {strides = array<i32>} : memref<1x8x32xf32, #tpu.memory_space<vmem>>, vector<1x8x32xf32>,
    return
  }
  func.func @transform_0(%arg0: i32) -> (i32, i32, i32) {
    %c0_i32 = arith.constant 0 : i32
    %c0_i32_0 = arith.constant 0 : i32
    %c0_i32_1 = arith.constant 0 : i32
    return %arg0, %c0_i32, %c0_i32_0 : i32, i32, i32
  }
  func.func @transform_1(%arg0: i32) -> (i32, i32, i32) {
    %c0_i32 = arith.constant 0 : i32
    %c0_i32_0 = arith.constant 0 : i32
    %c0_i32_1 = arith.constant 0 : i32
    return %arg0, %c0_i32, %c0_i32_0 : i32, i32, i32
  }
  func.func @transform_2(%arg0: i32) -> (i32, i32) {
    %c0_i32 = arith.constant 0 : i32
    %c0_i32_0 = arith.constant 0 : i32
    %c0_i32_1 = arith.constant 0 : i32
    return %c0_i32, %c0_i32_0 : i32, i32
  }
  func.func @transform_3(%arg0: i32) -> (i32, i32) {
    %c0_i32 = arith.constant 0 : i32
    %c0_i32_0 = arith.constant 0 : i32
    %c0_i32_1 = arith.constant 0 : i32
    return %c0_i32, %c0_i32_0 : i32, i32
  }
  func.func @transform_4(%arg0: i32) -> (i32, i32, i32) {
    %c0_i32 = arith.constant 0 : i32
    %c0_i32_0 = arith.constant 0 : i32
    %c0_i32_1 = arith.constant 0 : i32
    %c0_i32_2 = arith.constant 0 : i32
    return %c0_i32, %c0_i32_0, %c0_i32_1 : i32, i32, i32
  }
  func.func @transform_5(%arg0: i32) -> (i32, i32, i32) {
    %c0_i32 = arith.constant 0 : i32
    %c0_i32_0 = arith.constant 0 : i32
    %c0_i32_1 = arith.constant 0 : i32
    %c0_i32_2 = arith.constant 0 : i32
    return %c0_i32, %c0_i32_0, %c0_i32_1 : i32, i32, i32
  }
  func.func @transform_6(%arg0: i32) -> (i32, i32, i32) {
    %c0_i32 = arith.constant 0 : i32
    %c0_i32_0 = arith.constant 0 : i32
    %c0_i32_1 = arith.constant 0 : i32
    %c0_i32_2 = arith.constant 0 : i32
    return %c0_i32, %c0_i32_0, %c0_i32_1 : i32, i32, i32
  }
  func.func @transform_7(%arg0: i32) -> (i32, i32, i32) {
    %c0_i32 = arith.constant 0 : i32
    %c0_i32_0 = arith.constant 0 : i32
    %c0_i32_1 = arith.constant 0 : i32
    %c0_i32_2 = arith.constant 0 : i32
    return %c0_i32, %c0_i32_0, %c0_i32_1 : i32, i32, i32
  }
  func.func @transform_8(%arg0: i32) -> (i32, i32, i32) {
    %c0_i32 = arith.constant 0 : i32
    %c0_i32_0 = arith.constant 0 : i32
    %c0_i32_1 = arith.constant 0 : i32
    %c0_i32_2 = arith.constant 0 : i32
    return %c0_i32, %c0_i32_0, %c0_i32_1 : i32, i32, i32
  }
  func.func @transform_9(%arg0: i32) -> (i32, i32, i32) {
    %c0_i32 = arith.constant 0 : i32
    %c0_i32_0 = arith.constant 0 : i32
    %c0_i32_1 = arith.constant 0 : i32
    %c0_i32_2 = arith.constant 0 : i32
    return %c0_i32, %c0_i32_0, %c0_i32_1 : i32, i32, i32
  }
  func.func @transform_10(%arg0: i32) -> (i32, i32, i32) {
    %c0_i32 = arith.constant 0 : i32
    %c0_i32_0 = arith.constant 0 : i32
    %c0_i32_1 = arith.constant 0 : i32
    %c0_i32_2 = arith.constant 0 : i32
    return %c0_i32, %c0_i32_0, %c0_i32_1 : i32, i32, i32
  }
  func.func @transform_11(%arg0: i32) -> (i32, i32) {
    %c0_i32 = arith.constant 0 : i32
    %c0_i32_0 = arith.constant 0 : i32
    %c0_i32_1 = arith.constant 0 : i32
    return %c0_i32, %c0_i32_0 : i32, i32
  }
  func.func @transform_12(%arg0: i32) -> (i32, i32, i32) {
    %c0_i32 = arith.constant 0 : i32
    %c0_i32_0 = arith.constant 0 : i32
    %c0_i32_1 = arith.constant 0 : i32
    return %arg0, %c0_i32, %c0_i32_0 : i32, i32, i32
  }
}

</mosaic_0001>

<llo_original>
// kernel: tpu_custom_call.1
$region0: #{tpu_custom_call.1}
  #allocation0 [shape = 'u32[]', space=smem, size = 0x4, offset = 0x4, fixed_abs, tag = 'smem constant byte address 0x4 - core index']
  #allocation1 [shape = 'u32[144,128]{1,0:T(1,128)}', space=vmem, size = 0x12000, scoped, tag = 'internal scratch']
  %s0 = inlined_call_operand.vmem [shape: f32[2,8,512], index: 0, kind: input, shape index: {}]
  %s1 = inlined_call_operand.vmem [shape: f32[2,1,8], index: 1, kind: input, shape index: {}]
  %s2 = inlined_call_operand.vmem [shape: f32[512,32], index: 2, kind: input, shape index: {}]
  %s3 = inlined_call_operand.vmem [shape: f32[8,32], index: 3, kind: input, shape index: {}]
  %s4 = inlined_call_operand.vmem [shape: f32[2,32,96], index: 4, kind: input, shape index: {}]
  %s5 = inlined_call_operand.vmem [shape: f32[2,1,96], index: 5, kind: input, shape index: {}]
  %s6 = inlined_call_operand.vmem [shape: f32[2,32,32], index: 6, kind: input, shape index: {}]
  %s7 = inlined_call_operand.vmem [shape: f32[2,32,64], index: 7, kind: input, shape index: {}]
  %s8 = inlined_call_operand.vmem [shape: f32[2,1,64], index: 8, kind: input, shape index: {}]
  %s9 = inlined_call_operand.vmem [shape: f32[2,64,32], index: 9, kind: input, shape index: {}]
  %s10 = inlined_call_operand.vmem [shape: f32[2,6,32], index: 10, kind: input, shape index: {}]
  %s11 = inlined_call_operand.vmem [shape: f32[2,32], index: 11, kind: input, shape index: {}]
  %s12 = inlined_call_operand.hbm [shape: f32[2,8,32], index: 12, kind: output, shape index: {}]
  %s13 = sld [smem:[#allocation0]]
  $region81: #{tpu_custom_call.1} parent=0
    _
  %s15 = ssub.s32 1, %s13
  %s16 = scalar_select 0, %s15, %s13
  $region1: #{tpu_custom_call.1} parent=0
    #allocation2 [shape = 'u8[8192]{0}', space=vmem, size = 0x2000, scoped, tag = 'output window, operand 0']
    #allocation3 [shape = 's32[2]{0}', space=sflag, size = 0x8, scoped, tag = 'scoped memory for tpu_custom_call.1']
    %17 = vsyncpa [#allocation3], 0
    %s18 = scalar_lea.sflag [#allocation3], 1
    %19 = vsyncpa %s18, 0
    loop: start=0, step=1, limit=4
    $region2: #{tpu_custom_call.1} parent=1 // loop_pre_header
      _
    $region3: #{tpu_custom_call.1} parent=1 // loop_header
      %s21 = sphi 0, %s25
      %p22 = scmp.ge.s32.totalorder %s21, 4
      %s31 = sphi 0, %s33
      %s34 = sphi 0, %s31
      %s35 = sphi 0, %s34
      %s51 = sphi 0, %s35
      %s57 = sphi 0, %s59
      %s60 = sphi 0, %s57
      %s61 = sphi 0, %s60
      %s77 = sphi 0, %s61
      %s81 = sphi 0, %s81
      %s83 = sphi 0, %s81
      %s84 = sphi 0, %s83
      %s98 = sphi 0, %s84
      %s102 = sphi 0, %s102
      %s104 = sphi 0, %s102
      %s105 = sphi 0, %s104
      %s119 = sphi 0, %s105
      %s123 = sphi 0, %s123
      %s125 = sphi 0, %s123
      %s126 = sphi 0, %s125
      %s140 = sphi 0, %s126
      %s144 = sphi 0, %s144
      %s146 = sphi 0, %s144
      %s147 = sphi 0, %s146
      %s161 = sphi 0, %s147
      %s165 = sphi 0, %s165
      %s167 = sphi 0, %s165
      %s168 = sphi 0, %s167
      %s182 = sphi 0, %s168
      %s186 = sphi 0, %s186
      %s188 = sphi 0, %s186
      %s189 = sphi 0, %s188
      %s203 = sphi 0, %s189
      %s207 = sphi 0, %s207
      %s209 = sphi 0, %s207
      %s210 = sphi 0, %s209
      %s224 = sphi 0, %s210
      %s228 = sphi 0, %s228
      %s230 = sphi 0, %s228
      %s231 = sphi 0, %s230
      %s245 = sphi 0, %s231
      %s249 = sphi 0, %s249
      %s251 = sphi 0, %s249
      %s252 = sphi 0, %s251
      %s266 = sphi 0, %s252
      %s270 = sphi 0, %s270
      %s272 = sphi 0, %s270
      %s273 = sphi 0, %s272
      %s287 = sphi 0, %s273
      %s293 = sphi 0, %s295
      %s296 = sphi 0, %s293
      %s297 = sphi 0, %s296
      %s313 = sphi 0, %s297
    $region4: #{tpu_custom_call.1} parent=1 // loop_header_branch
      %24 = sbr.rel (%p22) target = $region8
    $region5: #{tpu_custom_call.1} parent=1 // loop_body
      %s26 = ssub.s32 %s21, 1
      %s27 = ssub.s32 %s21, 2
      %s28 = sadd.s32 %s21, 1
      %s29 = ssub.s32 %s21, %s28
      %p30 = scmp.eq.s32.totalorder %s29, 0
      %s32 = sadd.s32 %s31, 1
      %s33 = scalar_select %p30, %s31, %s32
      %p36 = pneg %p30
      %p37 = scmp.eq.s32.totalorder %s21, 1
      %p38 = por %p36, %p37
      %p39 = scmp.ne.s32.totalorder %s31, %s34
      %p40 = scmp.eq.s32.totalorder %s21, 0
      %p41 = por %p39, %p40
      %p42 = scmp.ne.s32.totalorder %s31, %s34
      %p43 = scmp.eq.s32.totalorder %s26, 1
      %p44 = por %p42, %p43
      %p45 = scmp.ne.s32.totalorder %s34, %s35
      %p46 = scmp.eq.s32.totalorder %s26, 0
      %p47 = por %p45, %p46
      %p48 = scmp.ne.s32.totalorder %s34, %s35
      %p49 = scmp.eq.s32.totalorder %s27, 1
      %p50 = por %p48, %p49
      %p52 = scmp.ne.s32.totalorder %s35, %s51
      %p53 = scmp.eq.s32.totalorder %s27, 0
      %p54 = por %p52, %p53
      %s55 = ssub.s32 %s21, %s28
      %p56 = scmp.eq.s32.totalorder %s55, 0
      %s58 = sadd.s32 %s57, 1
      %s59 = scalar_select %p56, %s57, %s58
      %p62 = pneg %p56
      %p63 = scmp.eq.s32.totalorder %s21, 1
      %p64 = por %p62, %p63
      %p65 = scmp.ne.s32.totalorder %s57, %s60
      %p66 = scmp.eq.s32.totalorder %s21, 0
      %p67 = por %p65, %p66
      %p68 = scmp.ne.s32.totalorder %s57, %s60
      %p69 = scmp.eq.s32.totalorder %s26, 1
      %p70 = por %p68, %p69
      %p71 = scmp.ne.s32.totalorder %s60, %s61
      %p72 = scmp.eq.s32.totalorder %s26, 0
      %p73 = por %p71, %p72
      %p74 = scmp.ne.s32.totalorder %s60, %s61
      %p75 = scmp.eq.s32.totalorder %s27, 1
      %p76 = por %p74, %p75
      %p78 = scmp.ne.s32.totalorder %s61, %s77
      %p79 = scmp.eq.s32.totalorder %s27, 0
      %p80 = por %p78, %p79
      %s82 = sadd.s32 %s81, 1
      %p85 = scmp.eq.s32.totalorder %s21, 1
      %p86 = scmp.ne.s32.totalorder %s81, %s83
      %p87 = scmp.eq.s32.totalorder %s21, 0
      %p88 = por %p86, %p87
      %p89 = scmp.ne.s32.totalorder %s81, %s83
      %p90 = scmp.eq.s32.totalorder %s26, 1
      %p91 = por %p89, %p90
      %p92 = scmp.ne.s32.totalorder %s83, %s84
      %p93 = scmp.eq.s32.totalorder %s26, 0
      %p94 = por %p92, %p93
      %p95 = scmp.ne.s32.totalorder %s83, %s84
      %p96 = scmp.eq.s32.totalorder %s27, 1
      %p97 = por %p95, %p96
      %p99 = scmp.ne.s32.totalorder %s84, %s98
      %p100 = scmp.eq.s32.totalorder %s27, 0
      %p101 = por %p99, %p100
      %s103 = sadd.s32 %s102, 1
      %p106 = scmp.eq.s32.totalorder %s21, 1
      %p107 = scmp.ne.s32.totalorder %s102, %s104
      %p108 = scmp.eq.s32.totalorder %s21, 0
      %p109 = por %p107, %p108
      %p110 = scmp.ne.s32.totalorder %s102, %s104
      %p111 = scmp.eq.s32.totalorder %s26, 1
      %p112 = por %p110, %p111
      %p113 = scmp.ne.s32.totalorder %s104, %s105
      %p114 = scmp.eq.s32.totalorder %s26, 0
      %p115 = por %p113, %p114
      %p116 = scmp.ne.s32.totalorder %s104, %s105
      %p117 = scmp.eq.s32.totalorder %s27, 1
      %p118 = por %p116, %p117
      %p120 = scmp.ne.s32.totalorder %s105, %s119
      %p121 = scmp.eq.s32.totalorder %s27, 0
      %p122 = por %p120, %p121
      %s124 = sadd.s32 %s123, 1
      %p127 = scmp.eq.s32.totalorder %s21, 1
      %p128 = scmp.ne.s32.totalorder %s123, %s125
      %p129 = scmp.eq.s32.totalorder %s21, 0
      %p130 = por %p128, %p129
      %p131 = scmp.ne.s32.totalorder %s123, %s125
      %p132 = scmp.eq.s32.totalorder %s26, 1
      %p133 = por %p131, %p132
      %p134 = scmp.ne.s32.totalorder %s125, %s126
      %p135 = scmp.eq.s32.totalorder %s26, 0
      %p136 = por %p134, %p135
      %p137 = scmp.ne.s32.totalorder %s125, %s126
      %p138 = scmp.eq.s32.totalorder %s27, 1
      %p139 = por %p137, %p138
      %p141 = scmp.ne.s32.totalorder %s126, %s140
      %p142 = scmp.eq.s32.totalorder %s27, 0
      %p143 = por %p141, %p142
      %s145 = sadd.s32 %s144, 1
      %p148 = scmp.eq.s32.totalorder %s21, 1
      %p149 = scmp.ne.s32.totalorder %s144, %s146
      %p150 = scmp.eq.s32.totalorder %s21, 0
      %p151 = por %p149, %p150
      %p152 = scmp.ne.s32.totalorder %s144, %s146
      %p153 = scmp.eq.s32.totalorder %s26, 1
      %p154 = por %p152, %p153
      %p155 = scmp.ne.s32.totalorder %s146, %s147
      %p156 = scmp.eq.s32.totalorder %s26, 0
      %p157 = por %p155, %p156
      %p158 = scmp.ne.s32.totalorder %s146, %s147
      %p159 = scmp.eq.s32.totalorder %s27, 1
      %p160 = por %p158, %p159
      %p162 = scmp.ne.s32.totalorder %s147, %s161
      %p163 = scmp.eq.s32.totalorder %s27, 0
      %p164 = por %p162, %p163
      %s166 = sadd.s32 %s165, 1
      %p169 = scmp.eq.s32.totalorder %s21, 1
      %p170 = scmp.ne.s32.totalorder %s165, %s167
      %p171 = scmp.eq.s32.totalorder %s21, 0
      %p172 = por %p170, %p171
      %p173 = scmp.ne.s32.totalorder %s165, %s167
      %p174 = scmp.eq.s32.totalorder %s26, 1
      %p175 = por %p173, %p174
      %p176 = scmp.ne.s32.totalorder %s167, %s168
      %p177 = scmp.eq.s32.totalorder %s26, 0
      %p178 = por %p176, %p177
      %p179 = scmp.ne.s32.totalorder %s167, %s168
      %p180 = scmp.eq.s32.totalorder %s27, 1
      %p181 = por %p179, %p180
      %p183 = scmp.ne.s32.totalorder %s168, %s182
      %p184 = scmp.eq.s32.totalorder %s27, 0
      %p185 = por %p183, %p184
      %s187 = sadd.s32 %s186, 1
      %p190 = scmp.eq.s32.totalorder %s21, 1
      %p191 = scmp.ne.s32.totalorder %s186, %s188
      %p192 = scmp.eq.s32.totalorder %s21, 0
      %p193 = por %p191, %p192
      %p194 = scmp.ne.s32.totalorder %s186, %s188
      %p195 = scmp.eq.s32.totalorder %s26, 1
      %p196 = por %p194, %p195
      %p197 = scmp.ne.s32.totalorder %s188, %s189
      %p198 = scmp.eq.s32.totalorder %s26, 0
      %p199 = por %p197, %p198
      %p200 = scmp.ne.s32.totalorder %s188, %s189
      %p201 = scmp.eq.s32.totalorder %s27, 1
      %p202 = por %p200, %p201
      %p204 = scmp.ne.s32.totalorder %s189, %s203
      %p205 = scmp.eq.s32.totalorder %s27, 0
      %p206 = por %p204, %p205
      %s208 = sadd.s32 %s207, 1
      %p211 = scmp.eq.s32.totalorder %s21, 1
      %p212 = scmp.ne.s32.totalorder %s207, %s209
      %p213 = scmp.eq.s32.totalorder %s21, 0
      %p214 = por %p212, %p213
      %p215 = scmp.ne.s32.totalorder %s207, %s209
      %p216 = scmp.eq.s32.totalorder %s26, 1
      %p217 = por %p215, %p216
      %p218 = scmp.ne.s32.totalorder %s209, %s210
      %p219 = scmp.eq.s32.totalorder %s26, 0
      %p220 = por %p218, %p219
      %p221 = scmp.ne.s32.totalorder %s209, %s210
      %p222 = scmp.eq.s32.totalorder %s27, 1
      %p223 = por %p221, %p222
      %p225 = scmp.ne.s32.totalorder %s210, %s224
      %p226 = scmp.eq.s32.totalorder %s27, 0
      %p227 = por %p225, %p226
      %s229 = sadd.s32 %s228, 1
      %p232 = scmp.eq.s32.totalorder %s21, 1
      %p233 = scmp.ne.s32.totalorder %s228, %s230
      %p234 = scmp.eq.s32.totalorder %s21, 0
      %p235 = por %p233, %p234
      %p236 = scmp.ne.s32.totalorder %s228, %s230
      %p237 = scmp.eq.s32.totalorder %s26, 1
      %p238 = por %p236, %p237
      %p239 = scmp.ne.s32.totalorder %s230, %s231
      %p240 = scmp.eq.s32.totalorder %s26, 0
      %p241 = por %p239, %p240
      %p242 = scmp.ne.s32.totalorder %s230, %s231
      %p243 = scmp.eq.s32.totalorder %s27, 1
      %p244 = por %p242, %p243
      %p246 = scmp.ne.s32.totalorder %s231, %s245
      %p247 = scmp.eq.s32.totalorder %s27, 0
      %p248 = por %p246, %p247
      %s250 = sadd.s32 %s249, 1
      %p253 = scmp.eq.s32.totalorder %s21, 1
      %p254 = scmp.ne.s32.totalorder %s249, %s251
      %p255 = scmp.eq.s32.totalorder %s21, 0
      %p256 = por %p254, %p255
      %p257 = scmp.ne.s32.totalorder %s249, %s251
      %p258 = scmp.eq.s32.totalorder %s26, 1
      %p259 = por %p257, %p258
      %p260 = scmp.ne.s32.totalorder %s251, %s252
      %p261 = scmp.eq.s32.totalorder %s26, 0
      %p262 = por %p260, %p261
      %p263 = scmp.ne.s32.totalorder %s251, %s252
      %p264 = scmp.eq.s32.totalorder %s27, 1
      %p265 = por %p263, %p264
      %p267 = scmp.ne.s32.totalorder %s252, %s266
      %p268 = scmp.eq.s32.totalorder %s27, 0
      %p269 = por %p267, %p268
      %s271 = sadd.s32 %s270, 1
      %p274 = scmp.eq.s32.totalorder %s21, 1
      %p275 = scmp.ne.s32.totalorder %s270, %s272
      %p276 = scmp.eq.s32.totalorder %s21, 0
      %p277 = por %p275, %p276
      %p278 = scmp.ne.s32.totalorder %s270, %s272
      %p279 = scmp.eq.s32.totalorder %s26, 1
      %p280 = por %p278, %p279
      %p281 = scmp.ne.s32.totalorder %s272, %s273
      %p282 = scmp.eq.s32.totalorder %s26, 0
      %p283 = por %p281, %p282
      %p284 = scmp.ne.s32.totalorder %s272, %s273
      %p285 = scmp.eq.s32.totalorder %s27, 1
      %p286 = por %p284, %p285
      %p288 = scmp.ne.s32.totalorder %s273, %s287
      %p289 = scmp.eq.s32.totalorder %s27, 0
      %p290 = por %p288, %p289
      %s291 = ssub.s32 %s21, %s28
      %p292 = scmp.eq.s32.totalorder %s291, 0
      %s294 = sadd.s32 %s293, 1
      %s295 = scalar_select %p292, %s293, %s294
      %p298 = pneg %p292
      %p299 = scmp.eq.s32.totalorder %s21, 1
      %p300 = por %p298, %p299
      %p301 = scmp.ne.s32.totalorder %s293, %s296
      %p302 = scmp.eq.s32.totalorder %s21, 0
      %p303 = por %p301, %p302
      %p304 = scmp.ne.s32.totalorder %s293, %s296
      %p305 = scmp.eq.s32.totalorder %s26, 1
      %p306 = por %p304, %p305
      %p307 = scmp.ne.s32.totalorder %s296, %s297
      %p308 = scmp.eq.s32.totalorder %s26, 0
      %p309 = por %p307, %p308
      %p310 = scmp.ne.s32.totalorder %s296, %s297
      %p311 = scmp.eq.s32.totalorder %s27, 1
      %p312 = por %p310, %p311
      %p314 = scmp.ne.s32.totalorder %s297, %s313
      %p315 = scmp.eq.s32.totalorder %s27, 0
      %p316 = por %p314, %p315
      %p317 = scmp.le.s32.totalorder 1, %s21
      %p318 = scmp.lt.s32.totalorder %s21, 3
      %p319 = pnand %p317, %p318
      %p320 = pneg %p319
      // Predicated region
      $region9: #{tpu_custom_call.1} parent=5 // pred_check
        _
      $region10: #{tpu_custom_call.1} parent=5 // pred_check_branch
        %322 = sbr.rel (%p319) target = $region12
      $region11: #{tpu_custom_call.1} parent=5 // pred_region
        %s323 = ssub.s32 %s21, 1
        // Predicated region
        $region13: #{tpu_custom_call.1} parent=11 // pred_check
          %p324 = pneg %p94
        $region14: #{tpu_custom_call.1} parent=11 // pred_check_branch
          %326 = sbr.rel (%p324) target = $region16
        $region15: #{tpu_custom_call.1} parent=11 // pred_region
          _
        $region16: #{tpu_custom_call.1} parent=11 // pred_fallthru
          _
        // Predicated region
        $region17: #{tpu_custom_call.1} parent=11 // pred_check
          %p327 = pneg %p115
        $region18: #{tpu_custom_call.1} parent=11 // pred_check_branch
          %329 = sbr.rel (%p327) target = $region20
        $region19: #{tpu_custom_call.1} parent=11 // pred_region
          _
        $region20: #{tpu_custom_call.1} parent=11 // pred_fallthru
          _
        // Predicated region
        $region21: #{tpu_custom_call.1} parent=11 // pred_check
          %p330 = pneg %p136
        $region22: #{tpu_custom_call.1} parent=11 // pred_check_branch
          %332 = sbr.rel (%p330) target = $region24
        $region23: #{tpu_custom_call.1} parent=11 // pred_region
          _
        $region24: #{tpu_custom_call.1} parent=11 // pred_fallthru
          _
        // Predicated region
        $region25: #{tpu_custom_call.1} parent=11 // pred_check
          %p333 = pneg %p157
        $region26: #{tpu_custom_call.1} parent=11 // pred_check_branch
          %335 = sbr.rel (%p333) target = $region28
        $region27: #{tpu_custom_call.1} parent=11 // pred_region
          _
        $region28: #{tpu_custom_call.1} parent=11 // pred_fallthru
          _
        // Predicated region
        $region29: #{tpu_custom_call.1} parent=11 // pred_check
          %p336 = pneg %p178
        $region30: #{tpu_custom_call.1} parent=11 // pred_check_branch
          %338 = sbr.rel (%p336) target = $region32
        $region31: #{tpu_custom_call.1} parent=11 // pred_region
          _
        $region32: #{tpu_custom_call.1} parent=11 // pred_fallthru
          _
        // Predicated region
        $region33: #{tpu_custom_call.1} parent=11 // pred_check
          %p339 = pneg %p199
        $region34: #{tpu_custom_call.1} parent=11 // pred_check_branch
          %341 = sbr.rel (%p339) target = $region36
        $region35: #{tpu_custom_call.1} parent=11 // pred_region
          _
        $region36: #{tpu_custom_call.1} parent=11 // pred_fallthru
          _
        // Predicated region
        $region37: #{tpu_custom_call.1} parent=11 // pred_check
          %p342 = pneg %p220
        $region38: #{tpu_custom_call.1} parent=11 // pred_check_branch
          %344 = sbr.rel (%p342) target = $region40
        $region39: #{tpu_custom_call.1} parent=11 // pred_region
          _
        $region40: #{tpu_custom_call.1} parent=11 // pred_fallthru
          _
        // Predicated region
        $region41: #{tpu_custom_call.1} parent=11 // pred_check
          %p345 = pneg %p241
        $region42: #{tpu_custom_call.1} parent=11 // pred_check_branch
          %347 = sbr.rel (%p345) target = $region44
        $region43: #{tpu_custom_call.1} parent=11 // pred_region
          _
        $region44: #{tpu_custom_call.1} parent=11 // pred_fallthru
          _
        // Predicated region
        $region45: #{tpu_custom_call.1} parent=11 // pred_check
          %p348 = pneg %p262
        $region46: #{tpu_custom_call.1} parent=11 // pred_check_branch
          %350 = sbr.rel (%p348) target = $region48
        $region47: #{tpu_custom_call.1} parent=11 // pred_region
          _
        $region48: #{tpu_custom_call.1} parent=11 // pred_fallthru
          _
        // Predicated region
        $region49: #{tpu_custom_call.1} parent=11 // pred_check
          %p351 = pneg %p283
        $region50: #{tpu_custom_call.1} parent=11 // pred_check_branch
          %353 = sbr.rel (%p351) target = $region52
        $region51: #{tpu_custom_call.1} parent=11 // pred_region
          _
        $region52: #{tpu_custom_call.1} parent=11 // pred_fallthru
          _
      $region12: #{tpu_custom_call.1} parent=5 // pred_fallthru
        _
      %p354 = scmp.lt.s32.totalorder %s21, 2
      // Predicated region
      $region53: #{tpu_custom_call.1} parent=5 // pred_check
        %p355 = pneg %p354
      $region54: #{tpu_custom_call.1} parent=5 // pred_check_branch
        %357 = sbr.rel (%p355) target = $region56
      $region55: #{tpu_custom_call.1} parent=5 // pred_region
        // Predicated region
        $region57: #{tpu_custom_call.1} parent=55 // pred_check
          %p358 = pneg %p41
        $region58: #{tpu_custom_call.1} parent=55 // pred_check_branch
          %360 = sbr.rel (%p358) target = $region60
        $region59: #{tpu_custom_call.1} parent=55 // pred_region
          %p361 = scmp.lt.s32.totalorder %s21, 1
          %s362 = scalar_select %p361, %s21, 1
          %s363 = smul.addr %s362, 4
          %s364 = smul.addr %s363, 8
          %s365 = scalar_lea.vmem %s0, %s364
        $region60: #{tpu_custom_call.1} parent=55 // pred_fallthru
          _
        // Predicated region
        $region61: #{tpu_custom_call.1} parent=55 // pred_check
          %p366 = pneg %p67
        $region62: #{tpu_custom_call.1} parent=55 // pred_check_branch
          %368 = sbr.rel (%p366) target = $region64
        $region63: #{tpu_custom_call.1} parent=55 // pred_region
          %p369 = scmp.lt.s32.totalorder %s21, 1
          %s370 = scalar_select %p369, %s21, 1
          %s371 = scalar_lea.vmem %s1, %s370
        $region64: #{tpu_custom_call.1} parent=55 // pred_fallthru
          _
      $region56: #{tpu_custom_call.1} parent=5 // pred_fallthru
        _
      %p372 = scmp.le.s32.totalorder 1, %s21
      %p373 = scmp.lt.s32.totalorder %s21, 3
      %p374 = pnand %p372, %p373
      %p375 = pneg %p374
      // Predicated region
      $region65: #{tpu_custom_call.1} parent=5 // pred_check
        _
      $region66: #{tpu_custom_call.1} parent=5 // pred_check_branch
        %377 = sbr.rel (%p374) target = $region68
      $region67: #{tpu_custom_call.1} parent=5 // pred_region
        %s378 = ssub.s32 %s21, 1
        %p379 = scmp.lt.s32.totalorder %s26, 1
        %s380 = scalar_select %p379, %s26, 1
        %s381 = smul.addr %s380, 4
        %s382 = smul.addr %s381, 8
        %s383 = scalar_lea.vmem %s0, %s382
        %p384 = pneg %p47
        %p385 = pneg %p44
        %p386 = scmp.lt.s32.totalorder %s26, 1
        %s387 = scalar_select %p386, %s26, 1
        %s388 = scalar_lea.vmem %s1, %s387
        %p389 = pneg %p73
        %p390 = pneg %p70
        %p391 = pneg %p94
        %p392 = pneg %p91
        %p393 = pneg %p115
        %p394 = pneg %p112
        %p395 = pneg %p136
        %p396 = pneg %p133
        %p397 = pneg %p157
        %p398 = pneg %p154
        %p399 = pneg %p178
        %p400 = pneg %p175
        %p401 = pneg %p199
        %p402 = pneg %p196
        %p403 = pneg %p220
        %p404 = pneg %p217
        %p405 = pneg %p241
        %p406 = pneg %p238
        %p407 = pneg %p262
        %p408 = pneg %p259
        %p409 = pneg %p283
        %p410 = pneg %p280
        %p411 = pneg %p309
        %p412 = pneg %p306
        %s413 = sand.u32 %s296, 1
        %s414 = scalar_lea.sflag [#allocation3], %s413
        %s415 = sand.u32 %s296, 1
        %s416 = smul.addr %s415, 8
        %s417 = scalar_lea.vmem [#allocation2], %s416
        %p418 = scmp.lt.s32.totalorder %s26, 1
        %s419 = scalar_select %p418, %s26, 1
        %s420 = smul.addr %s419, 4
        %s421 = smul.addr %s420, 8
        %s422 = scalar_lea.vmem %s0, %s421
        %p423 = scmp.lt.s32.totalorder %s26, 1
        %s424 = scalar_select %p423, %s26, 1
        %s425 = scalar_lea.vmem %s1, %s424
        %v426 = vld [vmem:[%s422] sm:$0xff]
        %v427 = vld [vmem:[%s422 + $0x8] sm:$0xff]
        %v428 = vld [vmem:[%s422 + $0x10] sm:$0xff]
        %v429 = vld [vmem:[%s422 + $0x18] sm:$0xff]
        %v430 = vld [vmem:[%s425] sm:$0x1]
        %v431 = vsub.f32 %v430, 1.0
        %v432 = vmul.f32 %v431, 1e+09
        %v433 = vld [vmem:[%s2] sm:$0xff]
        %v434 = vld [vmem:[%s2 + $0x8] sm:$0xff]
        %v435 = vld [vmem:[%s2 + $0x10] sm:$0xff]
        %v436 = vld [vmem:[%s2 + $0x18] sm:$0xff]
        %v437 = vld [vmem:[%s2 + $0x20] sm:$0xff]
        %v438 = vld [vmem:[%s2 + $0x28] sm:$0xff]
        %v439 = vld [vmem:[%s2 + $0x30] sm:$0xff]
        %v440 = vld [vmem:[%s2 + $0x38] sm:$0xff]
        %v441 = vld [vmem:[%s2 + $0x40] sm:$0xff]
        %v442 = vld [vmem:[%s2 + $0x48] sm:$0xff]
        %v443 = vld [vmem:[%s2 + $0x50] sm:$0xff]
        %v444 = vld [vmem:[%s2 + $0x58] sm:$0xff]
        %v445 = vld [vmem:[%s2 + $0x60] sm:$0xff]
        %v446 = vld [vmem:[%s2 + $0x68] sm:$0xff]
        %v447 = vld [vmem:[%s2 + $0x70] sm:$0xff]
        %v448 = vld [vmem:[%s2 + $0x78] sm:$0xff]
        %v449 = vld [vmem:[%s2 + $0x80] sm:$0xff]
        %v450 = vld [vmem:[%s2 + $0x88] sm:$0xff]
        %v451 = vld [vmem:[%s2 + $0x90] sm:$0xff]
        %v452 = vld [vmem:[%s2 + $0x98] sm:$0xff]
        %v453 = vld [vmem:[%s2 + $0xa0] sm:$0xff]
        %v454 = vld [vmem:[%s2 + $0xa8] sm:$0xff]
        %v455 = vld [vmem:[%s2 + $0xb0] sm:$0xff]
        %v456 = vld [vmem:[%s2 + $0xb8] sm:$0xff]
        %v457 = vld [vmem:[%s2 + $0xc0] sm:$0xff]
        %v458 = vld [vmem:[%s2 + $0xc8] sm:$0xff]
        %v459 = vld [vmem:[%s2 + $0xd0] sm:$0xff]
        %v460 = vld [vmem:[%s2 + $0xd8] sm:$0xff]
        %v461 = vld [vmem:[%s2 + $0xe0] sm:$0xff]
        %v462 = vld [vmem:[%s2 + $0xe8] sm:$0xff]
        %v463 = vld [vmem:[%s2 + $0xf0] sm:$0xff]
        %v464 = vld [vmem:[%s2 + $0xf8] sm:$0xff]
        %v465 = vld [vmem:[%s2 + $0x100] sm:$0xff]
        %v466 = vld [vmem:[%s2 + $0x108] sm:$0xff]
        %v467 = vld [vmem:[%s2 + $0x110] sm:$0xff]
        %v468 = vld [vmem:[%s2 + $0x118] sm:$0xff]
        %v469 = vld [vmem:[%s2 + $0x120] sm:$0xff]
        %v470 = vld [vmem:[%s2 + $0x128] sm:$0xff]
        %v471 = vld [vmem:[%s2 + $0x130] sm:$0xff]
        %v472 = vld [vmem:[%s2 + $0x138] sm:$0xff]
        %v473 = vld [vmem:[%s2 + $0x140] sm:$0xff]
        %v474 = vld [vmem:[%s2 + $0x148] sm:$0xff]
        %v475 = vld [vmem:[%s2 + $0x150] sm:$0xff]
        %v476 = vld [vmem:[%s2 + $0x158] sm:$0xff]
        %v477 = vld [vmem:[%s2 + $0x160] sm:$0xff]
        %v478 = vld [vmem:[%s2 + $0x168] sm:$0xff]
        %v479 = vld [vmem:[%s2 + $0x170] sm:$0xff]
        %v480 = vld [vmem:[%s2 + $0x178] sm:$0xff]
        %v481 = vld [vmem:[%s2 + $0x180] sm:$0xff]
        %v482 = vld [vmem:[%s2 + $0x188] sm:$0xff]
        %v483 = vld [vmem:[%s2 + $0x190] sm:$0xff]
        %v484 = vld [vmem:[%s2 + $0x198] sm:$0xff]
        %v485 = vld [vmem:[%s2 + $0x1a0] sm:$0xff]
        %v486 = vld [vmem:[%s2 + $0x1a8] sm:$0xff]
        %v487 = vld [vmem:[%s2 + $0x1b0] sm:$0xff]
        %v488 = vld [vmem:[%s2 + $0x1b8] sm:$0xff]
        %v489 = vld [vmem:[%s2 + $0x1c0] sm:$0xff]
        %v490 = vld [vmem:[%s2 + $0x1c8] sm:$0xff]
        %v491 = vld [vmem:[%s2 + $0x1d0] sm:$0xff]
        %v492 = vld [vmem:[%s2 + $0x1d8] sm:$0xff]
        %v493 = vld [vmem:[%s2 + $0x1e0] sm:$0xff]
        %v494 = vld [vmem:[%s2 + $0x1e8] sm:$0xff]
        %v495 = vld [vmem:[%s2 + $0x1f0] sm:$0xff]
        %v496 = vld [vmem:[%s2 + $0x1f8] sm:$0xff]
        %v497 = vld [vmem:[%s3] sm:$0xff]
        %498 = vmatprep.subr.mxu0 0.0
        %499 = vmatpush1.msra.mxu0 %v433
        %500 = vmatprep.subr.mxu0 0.0
        %501 = vmatpush1.msra.mxu0 %v434
        %502 = vmatprep.subr.mxu0 0.0
        %503 = vmatpush1.msra.mxu0 %v435
        %504 = vmatprep.subr.mxu0 0.0
        %505 = vmatpush1.msra.mxu0 %v436
        %506 = vmatprep.subr.mxu0 0.0
        %507 = vmatpush1.msra.mxu0 %v437
        %508 = vmatprep.subr.mxu0 0.0
        %509 = vmatpush1.msra.mxu0 %v438
        %510 = vmatprep.subr.mxu0 0.0
        %511 = vmatpush1.msra.mxu0 %v439
        %512 = vmatprep.subr.mxu0 0.0
        %513 = vmatpush1.msra.mxu0 %v440
        %514 = vmatprep.subr.mxu0 0.0
        %515 = vmatpush1.msra.mxu0 %v441
        %516 = vmatprep.subr.mxu0 0.0
        %517 = vmatpush1.msra.mxu0 %v442
        %518 = vmatprep.subr.mxu0 0.0
        %519 = vmatpush1.msra.mxu0 %v443
        %520 = vmatprep.subr.mxu0 0.0
        %521 = vmatpush1.msra.mxu0 %v444
        %522 = vmatprep.subr.mxu0 0.0
        %523 = vmatpush1.msra.mxu0 %v445
        %524 = vmatprep.subr.mxu0 0.0
        %525 = vmatpush1.msra.mxu0 %v446
        %526 = vmatprep.subr.mxu0 0.0
        %527 = vmatpush1.msra.mxu0 %v447
        %528 = vmatprep.subr.mxu0 0.0
        %529 = vmatpush1.msra.mxu0 %v448
        %530 = vmatprep.subr.mxu0 0.0
        %531 = vmatpush1.msra.mxu0 %v449
        %532 = vmatprep.subr.mxu0 0.0
        %533 = vmatpush1.msra.mxu0 %v450
        %534 = vmatprep.subr.mxu0 0.0
        %535 = vmatpush1.msra.mxu0 %v451
        %536 = vmatprep.subr.mxu0 0.0
        %537 = vmatpush1.msra.mxu0 %v452
        %538 = vmatprep.subr.mxu0 0.0
        %539 = vmatpush1.msra.mxu0 %v453
        %540 = vmatprep.subr.mxu0 0.0
        %541 = vmatpush1.msra.mxu0 %v454
        %542 = vmatprep.subr.mxu0 0.0
        %543 = vmatpush1.msra.mxu0 %v455
        %544 = vmatprep.subr.mxu0 0.0
        %545 = vmatpush1.msra.mxu0 %v456
        %546 = vmatprep.subr.mxu0 0.0
        %547 = vmatpush1.msra.mxu0 %v457
        %548 = vmatprep.subr.mxu0 0.0
        %549 = vmatpush1.msra.mxu0 %v458
        %550 = vmatprep.subr.mxu0 0.0
        %551 = vmatpush1.msra.mxu0 %v459
        %552 = vmatprep.subr.mxu0 0.0
        %553 = vmatpush1.msra.mxu0 %v460
        %554 = vmatprep.subr.mxu0 0.0
        %555 = vmatpush1.msra.mxu0 %v461
        %556 = vmatprep.subr.mxu0 0.0
        %557 = vmatpush1.msra.mxu0 %v462
        %558 = vmatprep.subr.mxu0 0.0
        %559 = vmatpush1.msra.mxu0 %v463
        %560 = vmatprep.subr.mxu0 0.0
        %561 = vmatpush1.msra.mxu0 %v464
        %562 = vmatprep.mubr.f32.mxu0 %v427
        %563 = vmatmul.mubr.f32.gmra.mrb[0].mxu0 %v426
        %v564 = vpop.f32.mrb[0].mxu0
        %v565 = vadd.f32 %v497, %v564
        %v566 = vpop.f32.mrb[0].mxu0
        %567 = vdwg.mxu0
        %568 = vmatprep.subr.mxu0 0.0
        %569 = vmatpush1.msra.mxu0 %v465
        %570 = vmatprep.subr.mxu0 0.0
        %571 = vmatpush1.msra.mxu0 %v466
        %572 = vmatprep.subr.mxu0 0.0
        %573 = vmatpush1.msra.mxu0 %v467
        %574 = vmatprep.subr.mxu0 0.0
        %575 = vmatpush1.msra.mxu0 %v468
        %576 = vmatprep.subr.mxu0 0.0
        %577 = vmatpush1.msra.mxu0 %v469
        %578 = vmatprep.subr.mxu0 0.0
        %579 = vmatpush1.msra.mxu0 %v470
        %580 = vmatprep.subr.mxu0 0.0
        %581 = vmatpush1.msra.mxu0 %v471
        %582 = vmatprep.subr.mxu0 0.0
        %583 = vmatpush1.msra.mxu0 %v472
        %584 = vmatprep.subr.mxu0 0.0
        %585 = vmatpush1.msra.mxu0 %v473
        %586 = vmatprep.subr.mxu0 0.0
        %587 = vmatpush1.msra.mxu0 %v474
        %588 = vmatprep.subr.mxu0 0.0
        %589 = vmatpush1.msra.mxu0 %v475
        %590 = vmatprep.subr.mxu0 0.0
        %591 = vmatpush1.msra.mxu0 %v476
        %592 = vmatprep.subr.mxu0 0.0
        %593 = vmatpush1.msra.mxu0 %v477
        %594 = vmatprep.subr.mxu0 0.0
        %595 = vmatpush1.msra.mxu0 %v478
        %596 = vmatprep.subr.mxu0 0.0
        %597 = vmatpush1.msra.mxu0 %v479
        %598 = vmatprep.subr.mxu0 0.0
        %599 = vmatpush1.msra.mxu0 %v480
        %600 = vmatprep.subr.mxu0 0.0
        %601 = vmatpush1.msra.mxu0 %v481
        %602 = vmatprep.subr.mxu0 0.0
        %603 = vmatpush1.msra.mxu0 %v482
        %604 = vmatprep.subr.mxu0 0.0
        %605 = vmatpush1.msra.mxu0 %v483
        %606 = vmatprep.subr.mxu0 0.0
        %607 = vmatpush1.msra.mxu0 %v484
        %608 = vmatprep.subr.mxu0 0.0
        %609 = vmatpush1.msra.mxu0 %v485
        %610 = vmatprep.subr.mxu0 0.0
        %611 = vmatpush1.msra.mxu0 %v486
        %612 = vmatprep.subr.mxu0 0.0
        %613 = vmatpush1.msra.mxu0 %v487
        %614 = vmatprep.subr.mxu0 0.0
        %615 = vmatpush1.msra.mxu0 %v488
        %616 = vmatprep.subr.mxu0 0.0
        %617 = vmatpush1.msra.mxu0 %v489
        %618 = vmatprep.subr.mxu0 0.0
        %619 = vmatpush1.msra.mxu0 %v490
        %620 = vmatprep.subr.mxu0 0.0
        %621 = vmatpush1.msra.mxu0 %v491
        %622 = vmatprep.subr.mxu0 0.0
        %623 = vmatpush1.msra.mxu0 %v492
        %624 = vmatprep.subr.mxu0 0.0
        %625 = vmatpush1.msra.mxu0 %v493
        %626 = vmatprep.subr.mxu0 0.0
        %627 = vmatpush1.msra.mxu0 %v494
        %628 = vmatprep.subr.mxu0 0.0
        %629 = vmatpush1.msra.mxu0 %v495
        %630 = vmatprep.subr.mxu0 0.0
        %631 = vmatpush1.msra.mxu0 %v496
        %632 = vmatprep.mubr.f32.mxu0 %v429
        %633 = vmatmul.mubr.f32.gmra.mrb[0].mxu0 %v428
        %v634 = vpop.f32.mrb[0].mxu0
        %v635 = vadd.f32 %v565, %v634
        %v636 = vpop.f32.mrb[0].mxu0
        %637 = vdwg.mxu0
        %v638 = vld [vmem:[%s10] sm:$0x3f]
        %v639 = vld [vmem:[%s6] sm:$0xff]
        %v640 = vld [vmem:[%s6 + $0x8] sm:$0xff]
        %v641 = vld [vmem:[%s6 + $0x10] sm:$0xff]
        %v642 = vld [vmem:[%s6 + $0x18] sm:$0xff]
        %vm643 = vcmask 261120
        %v644 = vsel %vm643, %v635, 0.0
        %645 = vadd.xlane.f32.xlu0 %v644
        %v646 = vpop.xlane.xlu0 %645
        %v647 = vrcp.pop 32.0
        %v648 = vmul.f32 %v646, %v647
        %v649 = vsub.f32 %v635, %v648
        %v650 = vmul.f32 %v649, %v649
        %v651 = vsel %vm643, %v650, 0.0
        %652 = vadd.xlane.f32.xlu0 %v651
        %v653 = vpop.xlane.xlu0 %652
        %v654 = vmul.f32 %v653, %v647
        %v655 = vadd.f32 %v654, 1e-12
        %v656 = vrsqrt.pop %v655
        %v657 = vmul.f32 %v649, %v656
        %v658 = vlaneseq
        %v659 = vshrl.u32 %v658, 7
        %v660 = vsub.s32 0, %v659
        %v661 = vrot.slane %v638, %v660
        %v662 = vmul.f32 %v657, %v661
        %v663 = vlaneseq
        %v664 = vshrl.u32 %v663, 7
        %v665 = vsub.s32 1, %v664
        %v666 = vrot.slane %v638, %v665
        %v667 = vadd.f32 %v662, %v666
        %v668 = vld [vmem:[%s4] sm:$0xff]
        %v669 = vld [vmem:[%s4 + $0x8] sm:$0xff]
        %v670 = vld [vmem:[%s4 + $0x10] sm:$0xff]
        %v671 = vld [vmem:[%s4 + $0x18] sm:$0xff]
        %v672 = vld [vmem:[%s5] sm:$0x1]
        %v674 = vlaneseq
        %v675 = vshrl.u32 %v674, 7
        %v676 = vsub.s32 0, %v675
        %v677 = vrot.slane %v672, %v676
        %v680 = vsel %vm643, %v667, 0
        %682 = vmatprep.subr.mxu0 0.0
        %683 = vmatpush1.msra.mxu0 %v668
        %684 = vmatprep.subr.mxu0 0.0
        %685 = vmatpush1.msra.mxu0 %v669
        %686 = vmatprep.subr.mxu0 0.0
        %687 = vmatpush1.msra.mxu0 %v670
        %688 = vmatprep.subr.mxu0 0.0
        %689 = vmatpush1.msra.mxu0 %v671
        %690 = vmatprep.subr.mxu0 0.0
        %691 = vmatpush1.msra.mxu0 0.0
        %692 = vmatprep.subr.mxu0 0.0
        %693 = vmatpush1.msra.mxu0 0.0
        %694 = vmatprep.subr.mxu0 0.0
        %695 = vmatpush1.msra.mxu0 0.0
        %696 = vmatprep.subr.mxu0 0.0
        %697 = vmatpush1.msra.mxu0 0.0
        %698 = vmatprep.subr.mxu0 0.0
        %699 = vmatpush1.msra.mxu0 0.0
        %700 = vmatprep.subr.mxu0 0.0
        %701 = vmatpush1.msra.mxu0 0.0
        %702 = vmatprep.subr.mxu0 0.0
        %703 = vmatpush1.msra.mxu0 0.0
        %704 = vmatprep.subr.mxu0 0.0
        %705 = vmatpush1.msra.mxu0 0.0
        %706 = vmatprep.subr.mxu0 0.0
        %707 = vmatpush1.msra.mxu0 0.0
        %708 = vmatprep.subr.mxu0 0.0
        %709 = vmatpush1.msra.mxu0 0.0
        %710 = vmatprep.subr.mxu0 0.0
        %711 = vmatpush1.msra.mxu0 0.0
        %712 = vmatprep.subr.mxu0 0.0
        %713 = vmatpush1.msra.mxu0 0.0
        %714 = vmatprep.subr.mxu0 0.0
        %715 = vmatpush1.msra.mxu0 0.0
        %716 = vmatprep.subr.mxu0 0.0
        %717 = vmatpush1.msra.mxu0 0.0
        %718 = vmatprep.subr.mxu0 0.0
        %719 = vmatpush1.msra.mxu0 0.0
        %720 = vmatprep.subr.mxu0 0.0
        %721 = vmatpush1.msra.mxu0 0.0
        %722 = vmatprep.subr.mxu0 0.0
        %723 = vmatpush1.msra.mxu0 0.0
        %724 = vmatprep.subr.mxu0 0.0
        %725 = vmatpush1.msra.mxu0 0.0
        %726 = vmatprep.subr.mxu0 0.0
        %727 = vmatpush1.msra.mxu0 0.0
        %728 = vmatprep.subr.mxu0 0.0
        %729 = vmatpush1.msra.mxu0 0.0
        %730 = vmatprep.subr.mxu0 0.0
        %731 = vmatpush1.msra.mxu0 0.0
        %732 = vmatprep.subr.mxu0 0.0
        %733 = vmatpush1.msra.mxu0 0.0
        %734 = vmatprep.subr.mxu0 0.0
        %735 = vmatpush1.msra.mxu0 0.0
        %736 = vmatprep.subr.mxu0 0.0
        %737 = vmatpush1.msra.mxu0 0.0
        %738 = vmatprep.subr.mxu0 0.0
        %739 = vmatpush1.msra.mxu0 0.0
        %740 = vmatprep.subr.mxu0 0.0
        %741 = vmatpush1.msra.mxu0 0.0
        %742 = vmatprep.subr.mxu0 0.0
        %743 = vmatpush1.msra.mxu0 0.0
        %744 = vmatprep.subr.mxu0 0.0
        %745 = vmatpush1.msra.mxu0 0.0
        %746 = vmatprep.mubr.f32.mxu0 0.0
        %747 = vmatmul.mubr.f32.gmra.mrb[0].mxu0 %v680
        %v748 = vpop.f32.mrb[0].mxu0
        %v749 = vadd.f32 %v677, %v748
        %v750 = vpop.f32.mrb[0].mxu0
        %751 = vdwg.mxu0
        %753 = vrot.lane.b32.xlu0 %v749, 96
        %v754 = vpop.permute.xlu0 %753
        %vm755 = vcmask 64512
        %v756 = vsel %vm755, %v749, 0
        %v758 = vsel %vm755, %v754, 0
        %760 = vmatprep.subr.mxu0 0.0
        %761 = vmatpush1.xpose.msra.mxu0 %v758
        %762 = vmatprep.subr.mxu0 0.0
        %763 = vmatpush1.xpose.msra.mxu0 0.0
        %764 = vmatprep.subr.mxu0 0.0
        %765 = vmatpush1.xpose.msra.mxu0 0.0
        %766 = vmatprep.subr.mxu0 0.0
        %767 = vmatpush1.xpose.msra.mxu0 0.0
        %768 = vmatprep.subr.mxu0 0.0
        %769 = vmatpush1.xpose.msra.mxu0 0.0
        %770 = vmatprep.subr.mxu0 0.0
        %771 = vmatpush1.xpose.msra.mxu0 0.0
        %772 = vmatprep.subr.mxu0 0.0
        %773 = vmatpush1.xpose.msra.mxu0 0.0
        %774 = vmatprep.subr.mxu0 0.0
        %775 = vmatpush1.xpose.msra.mxu0 0.0
        %776 = vmatprep.subr.mxu0 0.0
        %777 = vmatpush1.xpose.msra.mxu0 0.0
        %778 = vmatprep.subr.mxu0 0.0
        %779 = vmatpush1.xpose.msra.mxu0 0.0
        %780 = vmatprep.subr.mxu0 0.0
        %781 = vmatpush1.xpose.msra.mxu0 0.0
        %782 = vmatprep.subr.mxu0 0.0
        %783 = vmatpush1.xpose.msra.mxu0 0.0
        %784 = vmatprep.subr.mxu0 0.0
        %785 = vmatpush1.xpose.msra.mxu0 0.0
        %786 = vmatprep.subr.mxu0 0.0
        %787 = vmatpush1.xpose.msra.mxu0 0.0
        %788 = vmatprep.subr.mxu0 0.0
        %789 = vmatpush1.xpose.msra.mxu0 0.0
        %790 = vmatprep.subr.mxu0 0.0
        %791 = vmatpush1.xpose.msra.mxu0 0.0
        %792 = vmatprep.subr.mxu0 0.0
        %793 = vmatpush1.xpose.msra.mxu0 0.0
        %794 = vmatprep.subr.mxu0 0.0
        %795 = vmatpush1.xpose.msra.mxu0 0.0
        %796 = vmatprep.subr.mxu0 0.0
        %797 = vmatpush1.xpose.msra.mxu0 0.0
        %798 = vmatprep.subr.mxu0 0.0
        %799 = vmatpush1.xpose.msra.mxu0 0.0
        %800 = vmatprep.subr.mxu0 0.0
        %801 = vmatpush1.xpose.msra.mxu0 0.0
        %802 = vmatprep.subr.mxu0 0.0
        %803 = vmatpush1.xpose.msra.mxu0 0.0
        %804 = vmatprep.subr.mxu0 0.0
        %805 = vmatpush1.xpose.msra.mxu0 0.0
        %806 = vmatprep.subr.mxu0 0.0
        %807 = vmatpush1.xpose.msra.mxu0 0.0
        %808 = vmatprep.subr.mxu0 0.0
        %809 = vmatpush1.xpose.msra.mxu0 0.0
        %810 = vmatprep.subr.mxu0 0.0
        %811 = vmatpush1.xpose.msra.mxu0 0.0
        %812 = vmatprep.subr.mxu0 0.0
        %813 = vmatpush1.xpose.msra.mxu0 0.0
        %814 = vmatprep.subr.mxu0 0.0
        %815 = vmatpush1.xpose.msra.mxu0 0.0
        %816 = vmatprep.subr.mxu0 0.0
        %817 = vmatpush1.xpose.msra.mxu0 0.0
        %818 = vmatprep.subr.mxu0 0.0
        %819 = vmatpush1.xpose.msra.mxu0 0.0
        %820 = vmatprep.subr.mxu0 0.0
        %821 = vmatpush1.xpose.msra.mxu0 0.0
        %822 = vmatprep.subr.mxu0 0.0
        %823 = vmatpush1.xpose.msra.mxu0 0.0
        %824 = vmatprep.mubr.f32.mxu0 0.0
        %825 = vmatmul.mubr.f32.gmra.mrb[0].mxu0 %v756
        %v826 = vpop.f32.mrb[0].mxu0
        %v827 = vadd.f32 0.0, %v826
        %v828 = vpop.f32.mrb[0].mxu0
        %829 = vdwg.mxu0
        %v830 = vmul.f32 %v827, 0.35355338
        %v832 = vlaneseq
        %v833 = vshrl.u32 %v832, 7
        %v834 = vsub.s32 0, %v833
        %v835 = vrot.slane %v432, %v834
        %v837 = vadd.f32 %v830, %v835
        %v838 = vsel %vm755, %v837, -inf
        %839 = vmax.xlane.f32.xlu0 %v838
        %v840 = vpop.xlane.xlu0 %839
        %v841 = vsub.f32 %v837, %v840
        %v842 = vmul.f32 %v841, 1.442695
        %v843 = vpow.pop %v842
        %v844 = vsel %vm755, %v843, 0.0
        %845 = vadd.xlane.f32.xlu0 %v844
        %v846 = vpop.xlane.xlu0 %845
        %v847 = vrcp.pop %v846
        %v848 = vmul.f32 %v843, %v847
        %v850 = vlaneseq
        %v851 = vshrl.u32 %v850, 7
        %v852 = vsub.s32 0, %v851
        %v853 = vrot.slane %v430, %v852
        %v855 = vmul.f32 %v848, %v853
        %856 = vrot.lane.b32.xlu0 %v749, 64
        %v857 = vpop.permute.xlu0 %856
        %v860 = vsel %vm755, %v855, 0
        %862 = vmatprep.subr.mxu0 0.0
        %863 = vmatpush1.msra.mxu0 %v857
        %864 = vmatprep.subr.mxu0 0.0
        %865 = vmatpush1.msra.mxu0 0.0
        %866 = vmatprep.subr.mxu0 0.0
        %867 = vmatpush1.msra.mxu0 0.0
        %868 = vmatprep.subr.mxu0 0.0
        %869 = vmatpush1.msra.mxu0 0.0
        %870 = vmatprep.subr.mxu0 0.0
        %871 = vmatpush1.msra.mxu0 0.0
        %872 = vmatprep.subr.mxu0 0.0
        %873 = vmatpush1.msra.mxu0 0.0
        %874 = vmatprep.subr.mxu0 0.0
        %875 = vmatpush1.msra.mxu0 0.0
        %876 = vmatprep.subr.mxu0 0.0
        %877 = vmatpush1.msra.mxu0 0.0
        %878 = vmatprep.subr.mxu0 0.0
        %879 = vmatpush1.msra.mxu0 0.0
        %880 = vmatprep.subr.mxu0 0.0
        %881 = vmatpush1.msra.mxu0 0.0
        %882 = vmatprep.subr.mxu0 0.0
        %883 = vmatpush1.msra.mxu0 0.0
        %884 = vmatprep.subr.mxu0 0.0
        %885 = vmatpush1.msra.mxu0 0.0
        %886 = vmatprep.subr.mxu0 0.0
        %887 = vmatpush1.msra.mxu0 0.0
        %888 = vmatprep.subr.mxu0 0.0
        %889 = vmatpush1.msra.mxu0 0.0
        %890 = vmatprep.subr.mxu0 0.0
        %891 = vmatpush1.msra.mxu0 0.0
        %892 = vmatprep.subr.mxu0 0.0
        %893 = vmatpush1.msra.mxu0 0.0
        %894 = vmatprep.subr.mxu0 0.0
        %895 = vmatpush1.msra.mxu0 0.0
        %896 = vmatprep.subr.mxu0 0.0
        %897 = vmatpush1.msra.mxu0 0.0
        %898 = vmatprep.subr.mxu0 0.0
        %899 = vmatpush1.msra.mxu0 0.0
        %900 = vmatprep.subr.mxu0 0.0
        %901 = vmatpush1.msra.mxu0 0.0
        %902 = vmatprep.subr.mxu0 0.0
        %903 = vmatpush1.msra.mxu0 0.0
        %904 = vmatprep.subr.mxu0 0.0
        %905 = vmatpush1.msra.mxu0 0.0
        %906 = vmatprep.subr.mxu0 0.0
        %907 = vmatpush1.msra.mxu0 0.0
        %908 = vmatprep.subr.mxu0 0.0
        %909 = vmatpush1.msra.mxu0 0.0
        %910 = vmatprep.subr.mxu0 0.0
        %911 = vmatpush1.msra.mxu0 0.0
        %912 = vmatprep.subr.mxu0 0.0
        %913 = vmatpush1.msra.mxu0 0.0
        %914 = vmatprep.subr.mxu0 0.0
        %915 = vmatpush1.msra.mxu0 0.0
        %916 = vmatprep.subr.mxu0 0.0
        %917 = vmatpush1.msra.mxu0 0.0
        %918 = vmatprep.subr.mxu0 0.0
        %919 = vmatpush1.msra.mxu0 0.0
        %920 = vmatprep.subr.mxu0 0.0
        %921 = vmatpush1.msra.mxu0 0.0
        %922 = vmatprep.subr.mxu0 0.0
        %923 = vmatpush1.msra.mxu0 0.0
        %924 = vmatprep.subr.mxu0 0.0
        %925 = vmatpush1.msra.mxu0 0.0
        %926 = vmatprep.mubr.f32.mxu0 0.0
        %927 = vmatmul.mubr.f32.gmra.mrb[0].mxu0 %v860
        %v928 = vpop.f32.mrb[0].mxu0
        %v929 = vadd.f32 0.0, %v928
        %v930 = vpop.f32.mrb[0].mxu0
        %931 = vdwg.mxu0
        %932 = vrot.lane.b32.xlu0 %v749, 120
        %v933 = vpop.permute.xlu0 %932
        %934 = vrot.lane.b32.xlu0 %v749, 88
        %v935 = vpop.permute.xlu0 %934
        %v936 = vsel %vm755, %v933, 0
        %v938 = vsel %vm755, %v935, 0
        %940 = vmatprep.subr.mxu0 0.0
        %941 = vmatpush1.xpose.msra.mxu0 %v938
        %942 = vmatprep.subr.mxu0 0.0
        %943 = vmatpush1.xpose.msra.mxu0 0.0
        %944 = vmatprep.subr.mxu0 0.0
        %945 = vmatpush1.xpose.msra.mxu0 0.0
        %946 = vmatprep.subr.mxu0 0.0
        %947 = vmatpush1.xpose.msra.mxu0 0.0
        %948 = vmatprep.subr.mxu0 0.0
        %949 = vmatpush1.xpose.msra.mxu0 0.0
        %950 = vmatprep.subr.mxu0 0.0
        %951 = vmatpush1.xpose.msra.mxu0 0.0
        %952 = vmatprep.subr.mxu0 0.0
        %953 = vmatpush1.xpose.msra.mxu0 0.0
        %954 = vmatprep.subr.mxu0 0.0
        %955 = vmatpush1.xpose.msra.mxu0 0.0
        %956 = vmatprep.subr.mxu0 0.0
        %957 = vmatpush1.xpose.msra.mxu0 0.0
        %958 = vmatprep.subr.mxu0 0.0
        %959 = vmatpush1.xpose.msra.mxu0 0.0
        %960 = vmatprep.subr.mxu0 0.0
        %961 = vmatpush1.xpose.msra.mxu0 0.0
        %962 = vmatprep.subr.mxu0 0.0
        %963 = vmatpush1.xpose.msra.mxu0 0.0
        %964 = vmatprep.subr.mxu0 0.0
        %965 = vmatpush1.xpose.msra.mxu0 0.0
        %966 = vmatprep.subr.mxu0 0.0
        %967 = vmatpush1.xpose.msra.mxu0 0.0
        %968 = vmatprep.subr.mxu0 0.0
        %969 = vmatpush1.xpose.msra.mxu0 0.0
        %970 = vmatprep.subr.mxu0 0.0
        %971 = vmatpush1.xpose.msra.mxu0 0.0
        %972 = vmatprep.subr.mxu0 0.0
        %973 = vmatpush1.xpose.msra.mxu0 0.0
        %974 = vmatprep.subr.mxu0 0.0
        %975 = vmatpush1.xpose.msra.mxu0 0.0
        %976 = vmatprep.subr.mxu0 0.0
        %977 = vmatpush1.xpose.msra.mxu0 0.0
        %978 = vmatprep.subr.mxu0 0.0
        %979 = vmatpush1.xpose.msra.mxu0 0.0
        %980 = vmatprep.subr.mxu0 0.0
        %981 = vmatpush1.xpose.msra.mxu0 0.0
        %982 = vmatprep.subr.mxu0 0.0
        %983 = vmatpush1.xpose.msra.mxu0 0.0
        %984 = vmatprep.subr.mxu0 0.0
        %985 = vmatpush1.xpose.msra.mxu0 0.0
        %986 = vmatprep.subr.mxu0 0.0
        %987 = vmatpush1.xpose.msra.mxu0 0.0
        %988 = vmatprep.subr.mxu0 0.0
        %989 = vmatpush1.xpose.msra.mxu0 0.0
        %990 = vmatprep.subr.mxu0 0.0
        %991 = vmatpush1.xpose.msra.mxu0 0.0
        %992 = vmatprep.subr.mxu0 0.0
        %993 = vmatpush1.xpose.msra.mxu0 0.0
        %994 = vmatprep.subr.mxu0 0.0
        %995 = vmatpush1.xpose.msra.mxu0 0.0
        %996 = vmatprep.subr.mxu0 0.0
        %997 = vmatpush1.xpose.msra.mxu0 0.0
        %998 = vmatprep.subr.mxu0 0.0
        %999 = vmatpush1.xpose.msra.mxu0 0.0
        %1000 = vmatprep.subr.mxu0 0.0
        %1001 = vmatpush1.xpose.msra.mxu0 0.0
        %1002 = vmatprep.subr.mxu0 0.0
        %1003 = vmatpush1.xpose.msra.mxu0 0.0
        %1004 = vmatprep.mubr.f32.mxu0 0.0
        %1005 = vmatmul.mubr.f32.gmra.mrb[0].mxu0 %v936
        %v1006 = vpop.f32.mrb[0].mxu0
        %v1007 = vadd.f32 0.0, %v1006
        %v1008 = vpop.f32.mrb[0].mxu0
        %1009 = vdwg.mxu0
        %v1010 = vmul.f32 %v1007, 0.35355338
        %v1011 = vadd.f32 %v1010, %v835
        %v1012 = vsel %vm755, %v1011, -inf
        %1013 = vmax.xlane.f32.xlu0 %v1012
        %v1014 = vpop.xlane.xlu0 %1013
        %v1015 = vsub.f32 %v1011, %v1014
        %v1016 = vmul.f32 %v1015, 1.442695
        %v1017 = vpow.pop %v1016
        %v1018 = vsel %vm755, %v1017, 0.0
        %1019 = vadd.xlane.f32.xlu0 %v1018
        %v1020 = vpop.xlane.xlu0 %1019
        %v1021 = vrcp.pop %v1020
        %v1022 = vmul.f32 %v1017, %v1021
        %v1023 = vmul.f32 %v1022, %v853
        %1024 = vrot.lane.b32.xlu0 %v749, 56
        %v1025 = vpop.permute.xlu0 %1024
        %v1028 = vsel %vm755, %v1023, 0
        %1030 = vmatprep.subr.mxu0 0.0
        %1031 = vmatpush1.msra.mxu0 %v1025
        %1032 = vmatprep.subr.mxu0 0.0
        %1033 = vmatpush1.msra.mxu0 0.0
        %1034 = vmatprep.subr.mxu0 0.0
        %1035 = vmatpush1.msra.mxu0 0.0
        %1036 = vmatprep.subr.mxu0 0.0
        %1037 = vmatpush1.msra.mxu0 0.0
        %1038 = vmatprep.subr.mxu0 0.0
        %1039 = vmatpush1.msra.mxu0 0.0
        %1040 = vmatprep.subr.mxu0 0.0
        %1041 = vmatpush1.msra.mxu0 0.0
        %1042 = vmatprep.subr.mxu0 0.0
        %1043 = vmatpush1.msra.mxu0 0.0
        %1044 = vmatprep.subr.mxu0 0.0
        %1045 = vmatpush1.msra.mxu0 0.0
        %1046 = vmatprep.subr.mxu0 0.0
        %1047 = vmatpush1.msra.mxu0 0.0
        %1048 = vmatprep.subr.mxu0 0.0
        %1049 = vmatpush1.msra.mxu0 0.0
        %1050 = vmatprep.subr.mxu0 0.0
        %1051 = vmatpush1.msra.mxu0 0.0
        %1052 = vmatprep.subr.mxu0 0.0
        %1053 = vmatpush1.msra.mxu0 0.0
        %1054 = vmatprep.subr.mxu0 0.0
        %1055 = vmatpush1.msra.mxu0 0.0
        %1056 = vmatprep.subr.mxu0 0.0
        %1057 = vmatpush1.msra.mxu0 0.0
        %1058 = vmatprep.subr.mxu0 0.0
        %1059 = vmatpush1.msra.mxu0 0.0
        %1060 = vmatprep.subr.mxu0 0.0
        %1061 = vmatpush1.msra.mxu0 0.0
        %1062 = vmatprep.subr.mxu0 0.0
        %1063 = vmatpush1.msra.mxu0 0.0
        %1064 = vmatprep.subr.mxu0 0.0
        %1065 = vmatpush1.msra.mxu0 0.0
        %1066 = vmatprep.subr.mxu0 0.0
        %1067 = vmatpush1.msra.mxu0 0.0
        %1068 = vmatprep.subr.mxu0 0.0
        %1069 = vmatpush1.msra.mxu0 0.0
        %1070 = vmatprep.subr.mxu0 0.0
        %1071 = vmatpush1.msra.mxu0 0.0
        %1072 = vmatprep.subr.mxu0 0.0
        %1073 = vmatpush1.msra.mxu0 0.0
        %1074 = vmatprep.subr.mxu0 0.0
        %1075 = vmatpush1.msra.mxu0 0.0
        %1076 = vmatprep.subr.mxu0 0.0
        %1077 = vmatpush1.msra.mxu0 0.0
        %1078 = vmatprep.subr.mxu0 0.0
        %1079 = vmatpush1.msra.mxu0 0.0
        %1080 = vmatprep.subr.mxu0 0.0
        %1081 = vmatpush1.msra.mxu0 0.0
        %1082 = vmatprep.subr.mxu0 0.0
        %1083 = vmatpush1.msra.mxu0 0.0
        %1084 = vmatprep.subr.mxu0 0.0
        %1085 = vmatpush1.msra.mxu0 0.0
        %1086 = vmatprep.subr.mxu0 0.0
        %1087 = vmatpush1.msra.mxu0 0.0
        %1088 = vmatprep.subr.mxu0 0.0
        %1089 = vmatpush1.msra.mxu0 0.0
        %1090 = vmatprep.subr.mxu0 0.0
        %1091 = vmatpush1.msra.mxu0 0.0
        %1092 = vmatprep.subr.mxu0 0.0
        %1093 = vmatpush1.msra.mxu0 0.0
        %1094 = vmatprep.mubr.f32.mxu0 0.0
        %1095 = vmatmul.mubr.f32.gmra.mrb[0].mxu0 %v1028
        %v1096 = vpop.f32.mrb[0].mxu0
        %v1097 = vadd.f32 0.0, %v1096
        %v1098 = vpop.f32.mrb[0].mxu0
        %1099 = vdwg.mxu0
        %v1101 = vsel %vm755, %v1097, 0
        %1103 = vmatprep.subr.mxu0 0.0
        %1104 = vmatpush1.msra.mxu0 %v640
        %1105 = vmatprep.subr.mxu0 0.0
        %1106 = vmatpush1.msra.mxu0 0.0
        %1107 = vmatprep.subr.mxu0 0.0
        %1108 = vmatpush1.msra.mxu0 0.0
        %1109 = vmatprep.subr.mxu0 0.0
        %1110 = vmatpush1.msra.mxu0 0.0
        %1111 = vmatprep.subr.mxu0 0.0
        %1112 = vmatpush1.msra.mxu0 0.0
        %1113 = vmatprep.subr.mxu0 0.0
        %1114 = vmatpush1.msra.mxu0 0.0
        %1115 = vmatprep.subr.mxu0 0.0
        %1116 = vmatpush1.msra.mxu0 0.0
        %1117 = vmatprep.subr.mxu0 0.0
        %1118 = vmatpush1.msra.mxu0 0.0
        %1119 = vmatprep.subr.mxu0 0.0
        %1120 = vmatpush1.msra.mxu0 0.0
        %1121 = vmatprep.subr.mxu0 0.0
        %1122 = vmatpush1.msra.mxu0 0.0
        %1123 = vmatprep.subr.mxu0 0.0
        %1124 = vmatpush1.msra.mxu0 0.0
        %1125 = vmatprep.subr.mxu0 0.0
        %1126 = vmatpush1.msra.mxu0 0.0
        %1127 = vmatprep.subr.mxu0 0.0
        %1128 = vmatpush1.msra.mxu0 0.0
        %1129 = vmatprep.subr.mxu0 0.0
        %1130 = vmatpush1.msra.mxu0 0.0
        %1131 = vmatprep.subr.mxu0 0.0
        %1132 = vmatpush1.msra.mxu0 0.0
        %1133 = vmatprep.subr.mxu0 0.0
        %1134 = vmatpush1.msra.mxu0 0.0
        %1135 = vmatprep.subr.mxu0 0.0
        %1136 = vmatpush1.msra.mxu0 0.0
        %1137 = vmatprep.subr.mxu0 0.0
        %1138 = vmatpush1.msra.mxu0 0.0
        %1139 = vmatprep.subr.mxu0 0.0
        %1140 = vmatpush1.msra.mxu0 0.0
        %1141 = vmatprep.subr.mxu0 0.0
        %1142 = vmatpush1.msra.mxu0 0.0
        %1143 = vmatprep.subr.mxu0 0.0
        %1144 = vmatpush1.msra.mxu0 0.0
        %1145 = vmatprep.subr.mxu0 0.0
        %1146 = vmatpush1.msra.mxu0 0.0
        %1147 = vmatprep.subr.mxu0 0.0
        %1148 = vmatpush1.msra.mxu0 0.0
        %1149 = vmatprep.subr.mxu0 0.0
        %1150 = vmatpush1.msra.mxu0 0.0
        %1151 = vmatprep.subr.mxu0 0.0
        %1152 = vmatpush1.msra.mxu0 0.0
        %1153 = vmatprep.subr.mxu0 0.0
        %1154 = vmatpush1.msra.mxu0 0.0
        %1155 = vmatprep.subr.mxu0 0.0
        %1156 = vmatpush1.msra.mxu0 0.0
        %1157 = vmatprep.subr.mxu0 0.0
        %1158 = vmatpush1.msra.mxu0 0.0
        %1159 = vmatprep.subr.mxu0 0.0
        %1160 = vmatpush1.msra.mxu0 0.0
        %1161 = vmatprep.subr.mxu0 0.0
        %1162 = vmatpush1.msra.mxu0 0.0
        %1163 = vmatprep.subr.mxu0 0.0
        %1164 = vmatpush1.msra.mxu0 0.0
        %1165 = vmatprep.subr.mxu0 0.0
        %1166 = vmatpush1.msra.mxu0 0.0
        %1167 = vmatprep.mubr.f32.mxu0 0.0
        %1168 = vmatmul.mubr.f32.gmra.mrb[0].mxu0 %v1101
        %v1169 = vpop.f32.mrb[0].mxu0
        %v1170 = vadd.f32 0.0, %v1169
        %v1171 = vpop.f32.mrb[0].mxu0
        %1172 = vdwg.mxu0
        %v1174 = vsel %vm755, %v929, 0
        %1176 = vmatprep.subr.mxu0 0.0
        %1177 = vmatpush1.msra.mxu0 %v639
        %1178 = vmatprep.subr.mxu0 0.0
        %1179 = vmatpush1.msra.mxu0 0.0
        %1180 = vmatprep.subr.mxu0 0.0
        %1181 = vmatpush1.msra.mxu0 0.0
        %1182 = vmatprep.subr.mxu0 0.0
        %1183 = vmatpush1.msra.mxu0 0.0
        %1184 = vmatprep.subr.mxu0 0.0
        %1185 = vmatpush1.msra.mxu0 0.0
        %1186 = vmatprep.subr.mxu0 0.0
        %1187 = vmatpush1.msra.mxu0 0.0
        %1188 = vmatprep.subr.mxu0 0.0
        %1189 = vmatpush1.msra.mxu0 0.0
        %1190 = vmatprep.subr.mxu0 0.0
        %1191 = vmatpush1.msra.mxu0 0.0
        %1192 = vmatprep.subr.mxu0 0.0
        %1193 = vmatpush1.msra.mxu0 0.0
        %1194 = vmatprep.subr.mxu0 0.0
        %1195 = vmatpush1.msra.mxu0 0.0
        %1196 = vmatprep.subr.mxu0 0.0
        %1197 = vmatpush1.msra.mxu0 0.0
        %1198 = vmatprep.subr.mxu0 0.0
        %1199 = vmatpush1.msra.mxu0 0.0
        %1200 = vmatprep.subr.mxu0 0.0
        %1201 = vmatpush1.msra.mxu0 0.0
        %1202 = vmatprep.subr.mxu0 0.0
        %1203 = vmatpush1.msra.mxu0 0.0
        %1204 = vmatprep.subr.mxu0 0.0
        %1205 = vmatpush1.msra.mxu0 0.0
        %1206 = vmatprep.subr.mxu0 0.0
        %1207 = vmatpush1.msra.mxu0 0.0
        %1208 = vmatprep.subr.mxu0 0.0
        %1209 = vmatpush1.msra.mxu0 0.0
        %1210 = vmatprep.subr.mxu0 0.0
        %1211 = vmatpush1.msra.mxu0 0.0
        %1212 = vmatprep.subr.mxu0 0.0
        %1213 = vmatpush1.msra.mxu0 0.0
        %1214 = vmatprep.subr.mxu0 0.0
        %1215 = vmatpush1.msra.mxu0 0.0
        %1216 = vmatprep.subr.mxu0 0.0
        %1217 = vmatpush1.msra.mxu0 0.0
        %1218 = vmatprep.subr.mxu0 0.0
        %1219 = vmatpush1.msra.mxu0 0.0
        %1220 = vmatprep.subr.mxu0 0.0
        %1221 = vmatpush1.msra.mxu0 0.0
        %1222 = vmatprep.subr.mxu0 0.0
        %1223 = vmatpush1.msra.mxu0 0.0
        %1224 = vmatprep.subr.mxu0 0.0
        %1225 = vmatpush1.msra.mxu0 0.0
        %1226 = vmatprep.subr.mxu0 0.0
        %1227 = vmatpush1.msra.mxu0 0.0
        %1228 = vmatprep.subr.mxu0 0.0
        %1229 = vmatpush1.msra.mxu0 0.0
        %1230 = vmatprep.subr.mxu0 0.0
        %1231 = vmatpush1.msra.mxu0 0.0
        %1232 = vmatprep.subr.mxu0 0.0
        %1233 = vmatpush1.msra.mxu0 0.0
        %1234 = vmatprep.subr.mxu0 0.0
        %1235 = vmatpush1.msra.mxu0 0.0
        %1236 = vmatprep.subr.mxu0 0.0
        %1237 = vmatpush1.msra.mxu0 0.0
        %1238 = vmatprep.subr.mxu0 0.0
        %1239 = vmatpush1.msra.mxu0 0.0
        %1240 = vmatprep.mubr.f32.mxu0 0.0
        %1241 = vmatmul.mubr.f32.gmra.mrb[0].mxu0 %v1174
        %v1242 = vpop.f32.mrb[0].mxu0
        %v1243 = vadd.f32 %v1170, %v1242
        %v1244 = vpop.f32.mrb[0].mxu0
        %1245 = vdwg.mxu0
        %1246 = vrot.lane.b32.xlu0 %v749, 112
        %v1247 = vpop.permute.xlu0 %1246
        %1248 = vrot.lane.b32.xlu0 %v749, 80
        %v1249 = vpop.permute.xlu0 %1248
        %v1250 = vsel %vm755, %v1247, 0
        %v1252 = vsel %vm755, %v1249, 0
        %1254 = vmatprep.subr.mxu0 0.0
        %1255 = vmatpush1.xpose.msra.mxu0 %v1252
        %1256 = vmatprep.subr.mxu0 0.0
        %1257 = vmatpush1.xpose.msra.mxu0 0.0
        %1258 = vmatprep.subr.mxu0 0.0
        %1259 = vmatpush1.xpose.msra.mxu0 0.0
        %1260 = vmatprep.subr.mxu0 0.0
        %1261 = vmatpush1.xpose.msra.mxu0 0.0
        %1262 = vmatprep.subr.mxu0 0.0
        %1263 = vmatpush1.xpose.msra.mxu0 0.0
        %1264 = vmatprep.subr.mxu0 0.0
        %1265 = vmatpush1.xpose.msra.mxu0 0.0
        %1266 = vmatprep.subr.mxu0 0.0
        %1267 = vmatpush1.xpose.msra.mxu0 0.0
        %1268 = vmatprep.subr.mxu0 0.0
        %1269 = vmatpush1.xpose.msra.mxu0 0.0
        %1270 = vmatprep.subr.mxu0 0.0
        %1271 = vmatpush1.xpose.msra.mxu0 0.0
        %1272 = vmatprep.subr.mxu0 0.0
        %1273 = vmatpush1.xpose.msra.mxu0 0.0
        %1274 = vmatprep.subr.mxu0 0.0
        %1275 = vmatpush1.xpose.msra.mxu0 0.0
        %1276 = vmatprep.subr.mxu0 0.0
        %1277 = vmatpush1.xpose.msra.mxu0 0.0
        %1278 = vmatprep.subr.mxu0 0.0
        %1279 = vmatpush1.xpose.msra.mxu0 0.0
        %1280 = vmatprep.subr.mxu0 0.0
        %1281 = vmatpush1.xpose.msra.mxu0 0.0
        %1282 = vmatprep.subr.mxu0 0.0
        %1283 = vmatpush1.xpose.msra.mxu0 0.0
        %1284 = vmatprep.subr.mxu0 0.0
        %1285 = vmatpush1.xpose.msra.mxu0 0.0
        %1286 = vmatprep.subr.mxu0 0.0
        %1287 = vmatpush1.xpose.msra.mxu0 0.0
        %1288 = vmatprep.subr.mxu0 0.0
        %1289 = vmatpush1.xpose.msra.mxu0 0.0
        %1290 = vmatprep.subr.mxu0 0.0
        %1291 = vmatpush1.xpose.msra.mxu0 0.0
        %1292 = vmatprep.subr.mxu0 0.0
        %1293 = vmatpush1.xpose.msra.mxu0 0.0
        %1294 = vmatprep.subr.mxu0 0.0
        %1295 = vmatpush1.xpose.msra.mxu0 0.0
        %1296 = vmatprep.subr.mxu0 0.0
        %1297 = vmatpush1.xpose.msra.mxu0 0.0
        %1298 = vmatprep.subr.mxu0 0.0
        %1299 = vmatpush1.xpose.msra.mxu0 0.0
        %1300 = vmatprep.subr.mxu0 0.0
        %1301 = vmatpush1.xpose.msra.mxu0 0.0
        %1302 = vmatprep.subr.mxu0 0.0
        %1303 = vmatpush1.xpose.msra.mxu0 0.0
        %1304 = vmatprep.subr.mxu0 0.0
        %1305 = vmatpush1.xpose.msra.mxu0 0.0
        %1306 = vmatprep.subr.mxu0 0.0
        %1307 = vmatpush1.xpose.msra.mxu0 0.0
        %1308 = vmatprep.subr.mxu0 0.0
        %1309 = vmatpush1.xpose.msra.mxu0 0.0
        %1310 = vmatprep.subr.mxu0 0.0
        %1311 = vmatpush1.xpose.msra.mxu0 0.0
        %1312 = vmatprep.subr.mxu0 0.0
        %1313 = vmatpush1.xpose.msra.mxu0 0.0
        %1314 = vmatprep.subr.mxu0 0.0
        %1315 = vmatpush1.xpose.msra.mxu0 0.0
        %1316 = vmatprep.subr.mxu0 0.0
        %1317 = vmatpush1.xpose.msra.mxu0 0.0
        %1318 = vmatprep.mubr.f32.mxu0 0.0
        %1319 = vmatmul.mubr.f32.gmra.mrb[0].mxu0 %v1250
        %v1320 = vpop.f32.mrb[0].mxu0
        %v1321 = vadd.f32 0.0, %v1320
        %v1322 = vpop.f32.mrb[0].mxu0
        %1323 = vdwg.mxu0
        %v1324 = vmul.f32 %v1321, 0.35355338
        %v1325 = vadd.f32 %v1324, %v835
        %v1326 = vsel %vm755, %v1325, -inf
        %1327 = vmax.xlane.f32.xlu0 %v1326
        %v1328 = vpop.xlane.xlu0 %1327
        %v1329 = vsub.f32 %v1325, %v1328
        %v1330 = vmul.f32 %v1329, 1.442695
        %v1331 = vpow.pop %v1330
        %v1332 = vsel %vm755, %v1331, 0.0
        %1333 = vadd.xlane.f32.xlu0 %v1332
        %v1334 = vpop.xlane.xlu0 %1333
        %v1335 = vrcp.pop %v1334
        %v1336 = vmul.f32 %v1331, %v1335
        %v1337 = vmul.f32 %v1336, %v853
        %1338 = vrot.lane.b32.xlu0 %v749, 48
        %v1339 = vpop.permute.xlu0 %1338
        %v1342 = vsel %vm755, %v1337, 0
        %1344 = vmatprep.subr.mxu0 0.0
        %1345 = vmatpush1.msra.mxu0 %v1339
        %1346 = vmatprep.subr.mxu0 0.0
        %1347 = vmatpush1.msra.mxu0 0.0
        %1348 = vmatprep.subr.mxu0 0.0
        %1349 = vmatpush1.msra.mxu0 0.0
        %1350 = vmatprep.subr.mxu0 0.0
        %1351 = vmatpush1.msra.mxu0 0.0
        %1352 = vmatprep.subr.mxu0 0.0
        %1353 = vmatpush1.msra.mxu0 0.0
        %1354 = vmatprep.subr.mxu0 0.0
        %1355 = vmatpush1.msra.mxu0 0.0
        %1356 = vmatprep.subr.mxu0 0.0
        %1357 = vmatpush1.msra.mxu0 0.0
        %1358 = vmatprep.subr.mxu0 0.0
        %1359 = vmatpush1.msra.mxu0 0.0
        %1360 = vmatprep.subr.mxu0 0.0
        %1361 = vmatpush1.msra.mxu0 0.0
        %1362 = vmatprep.subr.mxu0 0.0
        %1363 = vmatpush1.msra.mxu0 0.0
        %1364 = vmatprep.subr.mxu0 0.0
        %1365 = vmatpush1.msra.mxu0 0.0
        %1366 = vmatprep.subr.mxu0 0.0
        %1367 = vmatpush1.msra.mxu0 0.0
        %1368 = vmatprep.subr.mxu0 0.0
        %1369 = vmatpush1.msra.mxu0 0.0
        %1370 = vmatprep.subr.mxu0 0.0
        %1371 = vmatpush1.msra.mxu0 0.0
        %1372 = vmatprep.subr.mxu0 0.0
        %1373 = vmatpush1.msra.mxu0 0.0
        %1374 = vmatprep.subr.mxu0 0.0
        %1375 = vmatpush1.msra.mxu0 0.0
        %1376 = vmatprep.subr.mxu0 0.0
        %1377 = vmatpush1.msra.mxu0 0.0
        %1378 = vmatprep.subr.mxu0 0.0
        %1379 = vmatpush1.msra.mxu0 0.0
        %1380 = vmatprep.subr.mxu0 0.0
        %1381 = vmatpush1.msra.mxu0 0.0
        %1382 = vmatprep.subr.mxu0 0.0
        %1383 = vmatpush1.msra.mxu0 0.0
        %1384 = vmatprep.subr.mxu0 0.0
        %1385 = vmatpush1.msra.mxu0 0.0
        %1386 = vmatprep.subr.mxu0 0.0
        %1387 = vmatpush1.msra.mxu0 0.0
        %1388 = vmatprep.subr.mxu0 0.0
        %1389 = vmatpush1.msra.mxu0 0.0
        %1390 = vmatprep.subr.mxu0 0.0
        %1391 = vmatpush1.msra.mxu0 0.0
        %1392 = vmatprep.subr.mxu0 0.0
        %1393 = vmatpush1.msra.mxu0 0.0
        %1394 = vmatprep.subr.mxu0 0.0
        %1395 = vmatpush1.msra.mxu0 0.0
        %1396 = vmatprep.subr.mxu0 0.0
        %1397 = vmatpush1.msra.mxu0 0.0
        %1398 = vmatprep.subr.mxu0 0.0
        %1399 = vmatpush1.msra.mxu0 0.0
        %1400 = vmatprep.subr.mxu0 0.0
        %1401 = vmatpush1.msra.mxu0 0.0
        %1402 = vmatprep.subr.mxu0 0.0
        %1403 = vmatpush1.msra.mxu0 0.0
        %1404 = vmatprep.subr.mxu0 0.0
        %1405 = vmatpush1.msra.mxu0 0.0
        %1406 = vmatprep.subr.mxu0 0.0
        %1407 = vmatpush1.msra.mxu0 0.0
        %1408 = vmatprep.mubr.f32.mxu0 0.0
        %1409 = vmatmul.mubr.f32.gmra.mrb[0].mxu0 %v1342
        %v1410 = vpop.f32.mrb[0].mxu0
        %v1411 = vadd.f32 0.0, %v1410
        %v1412 = vpop.f32.mrb[0].mxu0
        %1413 = vdwg.mxu0
        %v1415 = vsel %vm755, %v1411, 0
        %1417 = vmatprep.subr.mxu0 0.0
        %1418 = vmatpush1.msra.mxu0 %v641
        %1419 = vmatprep.subr.mxu0 0.0
        %1420 = vmatpush1.msra.mxu0 0.0
        %1421 = vmatprep.subr.mxu0 0.0
        %1422 = vmatpush1.msra.mxu0 0.0
        %1423 = vmatprep.subr.mxu0 0.0
        %1424 = vmatpush1.msra.mxu0 0.0
        %1425 = vmatprep.subr.mxu0 0.0
        %1426 = vmatpush1.msra.mxu0 0.0
        %1427 = vmatprep.subr.mxu0 0.0
        %1428 = vmatpush1.msra.mxu0 0.0
        %1429 = vmatprep.subr.mxu0 0.0
        %1430 = vmatpush1.msra.mxu0 0.0
        %1431 = vmatprep.subr.mxu0 0.0
        %1432 = vmatpush1.msra.mxu0 0.0
        %1433 = vmatprep.subr.mxu0 0.0
        %1434 = vmatpush1.msra.mxu0 0.0
        %1435 = vmatprep.subr.mxu0 0.0
        %1436 = vmatpush1.msra.mxu0 0.0
        %1437 = vmatprep.subr.mxu0 0.0
        %1438 = vmatpush1.msra.mxu0 0.0
        %1439 = vmatprep.subr.mxu0 0.0
        %1440 = vmatpush1.msra.mxu0 0.0
        %1441 = vmatprep.subr.mxu0 0.0
        %1442 = vmatpush1.msra.mxu0 0.0
        %1443 = vmatprep.subr.mxu0 0.0
        %1444 = vmatpush1.msra.mxu0 0.0
        %1445 = vmatprep.subr.mxu0 0.0
        %1446 = vmatpush1.msra.mxu0 0.0
        %1447 = vmatprep.subr.mxu0 0.0
        %1448 = vmatpush1.msra.mxu0 0.0
        %1449 = vmatprep.subr.mxu0 0.0
        %1450 = vmatpush1.msra.mxu0 0.0
        %1451 = vmatprep.subr.mxu0 0.0
        %1452 = vmatpush1.msra.mxu0 0.0
        %1453 = vmatprep.subr.mxu0 0.0
        %1454 = vmatpush1.msra.mxu0 0.0
        %1455 = vmatprep.subr.mxu0 0.0
        %1456 = vmatpush1.msra.mxu0 0.0
        %1457 = vmatprep.subr.mxu0 0.0
        %1458 = vmatpush1.msra.mxu0 0.0
        %1459 = vmatprep.subr.mxu0 0.0
        %1460 = vmatpush1.msra.mxu0 0.0
        %1461 = vmatprep.subr.mxu0 0.0
        %1462 = vmatpush1.msra.mxu0 0.0
        %1463 = vmatprep.subr.mxu0 0.0
        %1464 = vmatpush1.msra.mxu0 0.0
        %1465 = vmatprep.subr.mxu0 0.0
        %1466 = vmatpush1.msra.mxu0 0.0
        %1467 = vmatprep.subr.mxu0 0.0
        %1468 = vmatpush1.msra.mxu0 0.0
        %1469 = vmatprep.subr.mxu0 0.0
        %1470 = vmatpush1.msra.mxu0 0.0
        %1471 = vmatprep.subr.mxu0 0.0
        %1472 = vmatpush1.msra.mxu0 0.0
        %1473 = vmatprep.subr.mxu0 0.0
        %1474 = vmatpush1.msra.mxu0 0.0
        %1475 = vmatprep.subr.mxu0 0.0
        %1476 = vmatpush1.msra.mxu0 0.0
        %1477 = vmatprep.subr.mxu0 0.0
        %1478 = vmatpush1.msra.mxu0 0.0
        %1479 = vmatprep.subr.mxu0 0.0
        %1480 = vmatpush1.msra.mxu0 0.0
        %1481 = vmatprep.mubr.f32.mxu0 0.0
        %1482 = vmatmul.mubr.f32.gmra.mrb[0].mxu0 %v1415
        %v1483 = vpop.f32.mrb[0].mxu0
        %v1484 = vadd.f32 0.0, %v1483
        %v1485 = vpop.f32.mrb[0].mxu0
        %1486 = vdwg.mxu0
        %v1487 = vadd.f32 %v1243, %v1484
        %1488 = vrot.lane.b32.xlu0 %v749, 104
        %v1489 = vpop.permute.xlu0 %1488
        %1490 = vrot.lane.b32.xlu0 %v749, 72
        %v1491 = vpop.permute.xlu0 %1490
        %v1492 = vsel %vm755, %v1489, 0
        %v1494 = vsel %vm755, %v1491, 0
        %1496 = vmatprep.subr.mxu0 0.0
        %1497 = vmatpush1.xpose.msra.mxu0 %v1494
        %1498 = vmatprep.subr.mxu0 0.0
        %1499 = vmatpush1.xpose.msra.mxu0 0.0
        %1500 = vmatprep.subr.mxu0 0.0
        %1501 = vmatpush1.xpose.msra.mxu0 0.0
        %1502 = vmatprep.subr.mxu0 0.0
        %1503 = vmatpush1.xpose.msra.mxu0 0.0
        %1504 = vmatprep.subr.mxu0 0.0
        %1505 = vmatpush1.xpose.msra.mxu0 0.0
        %1506 = vmatprep.subr.mxu0 0.0
        %1507 = vmatpush1.xpose.msra.mxu0 0.0
        %1508 = vmatprep.subr.mxu0 0.0
        %1509 = vmatpush1.xpose.msra.mxu0 0.0
        %1510 = vmatprep.subr.mxu0 0.0
        %1511 = vmatpush1.xpose.msra.mxu0 0.0
        %1512 = vmatprep.subr.mxu0 0.0
        %1513 = vmatpush1.xpose.msra.mxu0 0.0
        %1514 = vmatprep.subr.mxu0 0.0
        %1515 = vmatpush1.xpose.msra.mxu0 0.0
        %1516 = vmatprep.subr.mxu0 0.0
        %1517 = vmatpush1.xpose.msra.mxu0 0.0
        %1518 = vmatprep.subr.mxu0 0.0
        %1519 = vmatpush1.xpose.msra.mxu0 0.0
        %1520 = vmatprep.subr.mxu0 0.0
        %1521 = vmatpush1.xpose.msra.mxu0 0.0
        %1522 = vmatprep.subr.mxu0 0.0
        %1523 = vmatpush1.xpose.msra.mxu0 0.0
        %1524 = vmatprep.subr.mxu0 0.0
        %1525 = vmatpush1.xpose.msra.mxu0 0.0
        %1526 = vmatprep.subr.mxu0 0.0
        %1527 = vmatpush1.xpose.msra.mxu0 0.0
        %1528 = vmatprep.subr.mxu0 0.0
        %1529 = vmatpush1.xpose.msra.mxu0 0.0
        %1530 = vmatprep.subr.mxu0 0.0
        %1531 = vmatpush1.xpose.msra.mxu0 0.0
        %1532 = vmatprep.subr.mxu0 0.0
        %1533 = vmatpush1.xpose.msra.mxu0 0.0
        %1534 = vmatprep.subr.mxu0 0.0
        %1535 = vmatpush1.xpose.msra.mxu0 0.0
        %1536 = vmatprep.subr.mxu0 0.0
        %1537 = vmatpush1.xpose.msra.mxu0 0.0
        %1538 = vmatprep.subr.mxu0 0.0
        %1539 = vmatpush1.xpose.msra.mxu0 0.0
        %1540 = vmatprep.subr.mxu0 0.0
        %1541 = vmatpush1.xpose.msra.mxu0 0.0
        %1542 = vmatprep.subr.mxu0 0.0
        %1543 = vmatpush1.xpose.msra.mxu0 0.0
        %1544 = vmatprep.subr.mxu0 0.0
        %1545 = vmatpush1.xpose.msra.mxu0 0.0
        %1546 = vmatprep.subr.mxu0 0.0
        %1547 = vmatpush1.xpose.msra.mxu0 0.0
        %1548 = vmatprep.subr.mxu0 0.0
        %1549 = vmatpush1.xpose.msra.mxu0 0.0
        %1550 = vmatprep.subr.mxu0 0.0
        %1551 = vmatpush1.xpose.msra.mxu0 0.0
        %1552 = vmatprep.subr.mxu0 0.0
        %1553 = vmatpush1.xpose.msra.mxu0 0.0
        %1554 = vmatprep.subr.mxu0 0.0
        %1555 = vmatpush1.xpose.msra.mxu0 0.0
        %1556 = vmatprep.subr.mxu0 0.0
        %1557 = vmatpush1.xpose.msra.mxu0 0.0
        %1558 = vmatprep.subr.mxu0 0.0
        %1559 = vmatpush1.xpose.msra.mxu0 0.0
        %1560 = vmatprep.mubr.f32.mxu0 0.0
        %1561 = vmatmul.mubr.f32.gmra.mrb[0].mxu0 %v1492
        %v1562 = vpop.f32.mrb[0].mxu0
        %v1563 = vadd.f32 0.0, %v1562
        %v1564 = vpop.f32.mrb[0].mxu0
        %1565 = vdwg.mxu0
        %v1566 = vmul.f32 %v1563, 0.35355338
        %v1567 = vadd.f32 %v1566, %v835
        %v1568 = vsel %vm755, %v1567, -inf
        %1569 = vmax.xlane.f32.xlu0 %v1568
        %v1570 = vpop.xlane.xlu0 %1569
        %v1571 = vsub.f32 %v1567, %v1570
        %v1572 = vmul.f32 %v1571, 1.442695
        %v1573 = vpow.pop %v1572
        %v1574 = vsel %vm755, %v1573, 0.0
        %1575 = vadd.xlane.f32.xlu0 %v1574
        %v1576 = vpop.xlane.xlu0 %1575
        %v1577 = vrcp.pop %v1576
        %v1578 = vmul.f32 %v1573, %v1577
        %v1579 = vmul.f32 %v1578, %v853
        %1580 = vrot.lane.b32.xlu0 %v749, 40
        %v1581 = vpop.permute.xlu0 %1580
        %v1584 = vsel %vm755, %v1579, 0
        %1586 = vmatprep.subr.mxu0 0.0
        %1587 = vmatpush1.msra.mxu0 %v1581
        %1588 = vmatprep.subr.mxu0 0.0
        %1589 = vmatpush1.msra.mxu0 0.0
        %1590 = vmatprep.subr.mxu0 0.0
        %1591 = vmatpush1.msra.mxu0 0.0
        %1592 = vmatprep.subr.mxu0 0.0
        %1593 = vmatpush1.msra.mxu0 0.0
        %1594 = vmatprep.subr.mxu0 0.0
        %1595 = vmatpush1.msra.mxu0 0.0
        %1596 = vmatprep.subr.mxu0 0.0
        %1597 = vmatpush1.msra.mxu0 0.0
        %1598 = vmatprep.subr.mxu0 0.0
        %1599 = vmatpush1.msra.mxu0 0.0
        %1600 = vmatprep.subr.mxu0 0.0
        %1601 = vmatpush1.msra.mxu0 0.0
        %1602 = vmatprep.subr.mxu0 0.0
        %1603 = vmatpush1.msra.mxu0 0.0
        %1604 = vmatprep.subr.mxu0 0.0
        %1605 = vmatpush1.msra.mxu0 0.0
        %1606 = vmatprep.subr.mxu0 0.0
        %1607 = vmatpush1.msra.mxu0 0.0
        %1608 = vmatprep.subr.mxu0 0.0
        %1609 = vmatpush1.msra.mxu0 0.0
        %1610 = vmatprep.subr.mxu0 0.0
        %1611 = vmatpush1.msra.mxu0 0.0
        %1612 = vmatprep.subr.mxu0 0.0
        %1613 = vmatpush1.msra.mxu0 0.0
        %1614 = vmatprep.subr.mxu0 0.0
        %1615 = vmatpush1.msra.mxu0 0.0
        %1616 = vmatprep.subr.mxu0 0.0
        %1617 = vmatpush1.msra.mxu0 0.0
        %1618 = vmatprep.subr.mxu0 0.0
        %1619 = vmatpush1.msra.mxu0 0.0
        %1620 = vmatprep.subr.mxu0 0.0
        %1621 = vmatpush1.msra.mxu0 0.0
        %1622 = vmatprep.subr.mxu0 0.0
        %1623 = vmatpush1.msra.mxu0 0.0
        %1624 = vmatprep.subr.mxu0 0.0
        %1625 = vmatpush1.msra.mxu0 0.0
        %1626 = vmatprep.subr.mxu0 0.0
        %1627 = vmatpush1.msra.mxu0 0.0
        %1628 = vmatprep.subr.mxu0 0.0
        %1629 = vmatpush1.msra.mxu0 0.0
        %1630 = vmatprep.subr.mxu0 0.0
        %1631 = vmatpush1.msra.mxu0 0.0
        %1632 = vmatprep.subr.mxu0 0.0
        %1633 = vmatpush1.msra.mxu0 0.0
        %1634 = vmatprep.subr.mxu0 0.0
        %1635 = vmatpush1.msra.mxu0 0.0
        %1636 = vmatprep.subr.mxu0 0.0
        %1637 = vmatpush1.msra.mxu0 0.0
        %1638 = vmatprep.subr.mxu0 0.0
        %1639 = vmatpush1.msra.mxu0 0.0
        %1640 = vmatprep.subr.mxu0 0.0
        %1641 = vmatpush1.msra.mxu0 0.0
        %1642 = vmatprep.subr.mxu0 0.0
        %1643 = vmatpush1.msra.mxu0 0.0
        %1644 = vmatprep.subr.mxu0 0.0
        %1645 = vmatpush1.msra.mxu0 0.0
        %1646 = vmatprep.subr.mxu0 0.0
        %1647 = vmatpush1.msra.mxu0 0.0
        %1648 = vmatprep.subr.mxu0 0.0
        %1649 = vmatpush1.msra.mxu0 0.0
        %1650 = vmatprep.mubr.f32.mxu0 0.0
        %1651 = vmatmul.mubr.f32.gmra.mrb[0].mxu0 %v1584
        %v1652 = vpop.f32.mrb[0].mxu0
        %v1653 = vadd.f32 0.0, %v1652
        %v1654 = vpop.f32.mrb[0].mxu0
        %1655 = vdwg.mxu0
        %v1657 = vsel %vm755, %v1653, 0
        %1659 = vmatprep.subr.mxu0 0.0
        %1660 = vmatpush1.msra.mxu0 %v642
        %1661 = vmatprep.subr.mxu0 0.0
        %1662 = vmatpush1.msra.mxu0 0.0
        %1663 = vmatprep.subr.mxu0 0.0
        %1664 = vmatpush1.msra.mxu0 0.0
        %1665 = vmatprep.subr.mxu0 0.0
        %1666 = vmatpush1.msra.mxu0 0.0
        %1667 = vmatprep.subr.mxu0 0.0
        %1668 = vmatpush1.msra.mxu0 0.0
        %1669 = vmatprep.subr.mxu0 0.0
        %1670 = vmatpush1.msra.mxu0 0.0
        %1671 = vmatprep.subr.mxu0 0.0
        %1672 = vmatpush1.msra.mxu0 0.0
        %1673 = vmatprep.subr.mxu0 0.0
        %1674 = vmatpush1.msra.mxu0 0.0
        %1675 = vmatprep.subr.mxu0 0.0
        %1676 = vmatpush1.msra.mxu0 0.0
        %1677 = vmatprep.subr.mxu0 0.0
        %1678 = vmatpush1.msra.mxu0 0.0
        %1679 = vmatprep.subr.mxu0 0.0
        %1680 = vmatpush1.msra.mxu0 0.0
        %1681 = vmatprep.subr.mxu0 0.0
        %1682 = vmatpush1.msra.mxu0 0.0
        %1683 = vmatprep.subr.mxu0 0.0
        %1684 = vmatpush1.msra.mxu0 0.0
        %1685 = vmatprep.subr.mxu0 0.0
        %1686 = vmatpush1.msra.mxu0 0.0
        %1687 = vmatprep.subr.mxu0 0.0
        %1688 = vmatpush1.msra.mxu0 0.0
        %1689 = vmatprep.subr.mxu0 0.0
        %1690 = vmatpush1.msra.mxu0 0.0
        %1691 = vmatprep.subr.mxu0 0.0
        %1692 = vmatpush1.msra.mxu0 0.0
        %1693 = vmatprep.subr.mxu0 0.0
        %1694 = vmatpush1.msra.mxu0 0.0
        %1695 = vmatprep.subr.mxu0 0.0
        %1696 = vmatpush1.msra.mxu0 0.0
        %1697 = vmatprep.subr.mxu0 0.0
        %1698 = vmatpush1.msra.mxu0 0.0
        %1699 = vmatprep.subr.mxu0 0.0
        %1700 = vmatpush1.msra.mxu0 0.0
        %1701 = vmatprep.subr.mxu0 0.0
        %1702 = vmatpush1.msra.mxu0 0.0
        %1703 = vmatprep.subr.mxu0 0.0
        %1704 = vmatpush1.msra.mxu0 0.0
        %1705 = vmatprep.subr.mxu0 0.0
        %1706 = vmatpush1.msra.mxu0 0.0
        %1707 = vmatprep.subr.mxu0 0.0
        %1708 = vmatpush1.msra.mxu0 0.0
        %1709 = vmatprep.subr.mxu0 0.0
        %1710 = vmatpush1.msra.mxu0 0.0
        %1711 = vmatprep.subr.mxu0 0.0
        %1712 = vmatpush1.msra.mxu0 0.0
        %1713 = vmatprep.subr.mxu0 0.0
        %1714 = vmatpush1.msra.mxu0 0.0
        %1715 = vmatprep.subr.mxu0 0.0
        %1716 = vmatpush1.msra.mxu0 0.0
        %1717 = vmatprep.subr.mxu0 0.0
        %1718 = vmatpush1.msra.mxu0 0.0
        %1719 = vmatprep.subr.mxu0 0.0
        %1720 = vmatpush1.msra.mxu0 0.0
        %1721 = vmatprep.subr.mxu0 0.0
        %1722 = vmatpush1.msra.mxu0 0.0
        %1723 = vmatprep.mubr.f32.mxu0 0.0
        %1724 = vmatmul.mubr.f32.gmra.mrb[0].mxu0 %v1657
        %v1725 = vpop.f32.mrb[0].mxu0
        %v1726 = vadd.f32 0.0, %v1725
        %v1727 = vpop.f32.mrb[0].mxu0
        %1728 = vdwg.mxu0
        %v1729 = vadd.f32 %v1487, %v1726
        %v1730 = vadd.f32 %v635, %v1729
        %v1731 = vlaneseq
        %v1732 = vshrl.u32 %v1731, 7
        %v1733 = vsub.s32 4, %v1732
        %v1734 = vrot.slane %v638, %v1733
        %v1735 = vadd.f32 %v1730, %v1734
        %v1736 = vsel %vm643, %v1735, 0.0
        %1737 = vadd.xlane.f32.xlu0 %v1736
        %v1738 = vpop.xlane.xlu0 %1737
        %v1739 = vmul.f32 %v1738, %v647
        %v1740 = vsub.f32 %v1735, %v1739
        %v1741 = vmul.f32 %v1740, %v1740
        %v1742 = vsel %vm643, %v1741, 0.0
        %1743 = vadd.xlane.f32.xlu0 %v1742
        %v1744 = vpop.xlane.xlu0 %1743
        %v1745 = vmul.f32 %v1744, %v647
        %v1746 = vadd.f32 %v1745, 1e-12
        %v1747 = vrsqrt.pop %v1746
        %v1748 = vmul.f32 %v1740, %v1747
        %v1749 = vlaneseq
        %v1750 = vshrl.u32 %v1749, 7
        %v1751 = vsub.s32 2, %v1750
        %v1752 = vrot.slane %v638, %v1751
        %v1753 = vmul.f32 %v1748, %v1752
        %v1754 = vlaneseq
        %v1755 = vshrl.u32 %v1754, 7
        %v1756 = vsub.s32 3, %v1755
        %v1757 = vrot.slane %v638, %v1756
        %v1758 = vadd.f32 %v1753, %v1757
        %v1759 = vld [vmem:[%s7] sm:$0xff]
        %v1760 = vld [vmem:[%s7 + $0x8] sm:$0xff]
        %v1761 = vld [vmem:[%s7 + $0x10] sm:$0xff]
        %v1762 = vld [vmem:[%s7 + $0x18] sm:$0xff]
        %v1763 = vld [vmem:[%s8] sm:$0x1]
        %v1765 = vlaneseq
        %v1766 = vshrl.u32 %v1765, 7
        %v1767 = vsub.s32 0, %v1766
        %v1768 = vrot.slane %v1763, %v1767
        %v1771 = vsel %vm643, %v1758, 0
        %1773 = vmatprep.subr.mxu0 0.0
        %1774 = vmatpush1.msra.mxu0 %v1759
        %1775 = vmatprep.subr.mxu0 0.0
        %1776 = vmatpush1.msra.mxu0 %v1760
        %1777 = vmatprep.subr.mxu0 0.0
        %1778 = vmatpush1.msra.mxu0 %v1761
        %1779 = vmatprep.subr.mxu0 0.0
        %1780 = vmatpush1.msra.mxu0 %v1762
        %1781 = vmatprep.subr.mxu0 0.0
        %1782 = vmatpush1.msra.mxu0 0.0
        %1783 = vmatprep.subr.mxu0 0.0
        %1784 = vmatpush1.msra.mxu0 0.0
        %1785 = vmatprep.subr.mxu0 0.0
        %1786 = vmatpush1.msra.mxu0 0.0
        %1787 = vmatprep.subr.mxu0 0.0
        %1788 = vmatpush1.msra.mxu0 0.0
        %1789 = vmatprep.subr.mxu0 0.0
        %1790 = vmatpush1.msra.mxu0 0.0
        %1791 = vmatprep.subr.mxu0 0.0
        %1792 = vmatpush1.msra.mxu0 0.0
        %1793 = vmatprep.subr.mxu0 0.0
        %1794 = vmatpush1.msra.mxu0 0.0
        %1795 = vmatprep.subr.mxu0 0.0
        %1796 = vmatpush1.msra.mxu0 0.0
        %1797 = vmatprep.subr.mxu0 0.0
        %1798 = vmatpush1.msra.mxu0 0.0
        %1799 = vmatprep.subr.mxu0 0.0
        %1800 = vmatpush1.msra.mxu0 0.0
        %1801 = vmatprep.subr.mxu0 0.0
        %1802 = vmatpush1.msra.mxu0 0.0
        %1803 = vmatprep.subr.mxu0 0.0
        %1804 = vmatpush1.msra.mxu0 0.0
        %1805 = vmatprep.subr.mxu0 0.0
        %1806 = vmatpush1.msra.mxu0 0.0
        %1807 = vmatprep.subr.mxu0 0.0
        %1808 = vmatpush1.msra.mxu0 0.0
        %1809 = vmatprep.subr.mxu0 0.0
        %1810 = vmatpush1.msra.mxu0 0.0
        %1811 = vmatprep.subr.mxu0 0.0
        %1812 = vmatpush1.msra.mxu0 0.0
        %1813 = vmatprep.subr.mxu0 0.0
        %1814 = vmatpush1.msra.mxu0 0.0
        %1815 = vmatprep.subr.mxu0 0.0
        %1816 = vmatpush1.msra.mxu0 0.0
        %1817 = vmatprep.subr.mxu0 0.0
        %1818 = vmatpush1.msra.mxu0 0.0
        %1819 = vmatprep.subr.mxu0 0.0
        %1820 = vmatpush1.msra.mxu0 0.0
        %1821 = vmatprep.subr.mxu0 0.0
        %1822 = vmatpush1.msra.mxu0 0.0
        %1823 = vmatprep.subr.mxu0 0.0
        %1824 = vmatpush1.msra.mxu0 0.0
        %1825 = vmatprep.subr.mxu0 0.0
        %1826 = vmatpush1.msra.mxu0 0.0
        %1827 = vmatprep.subr.mxu0 0.0
        %1828 = vmatpush1.msra.mxu0 0.0
        %1829 = vmatprep.subr.mxu0 0.0
        %1830 = vmatpush1.msra.mxu0 0.0
        %1831 = vmatprep.subr.mxu0 0.0
        %1832 = vmatpush1.msra.mxu0 0.0
        %1833 = vmatprep.subr.mxu0 0.0
        %1834 = vmatpush1.msra.mxu0 0.0
        %1835 = vmatprep.subr.mxu0 0.0
        %1836 = vmatpush1.msra.mxu0 0.0
        %1837 = vmatprep.mubr.f32.mxu0 0.0
        %1838 = vmatmul.mubr.f32.gmra.mrb[0].mxu0 %v1771
        %v1839 = vpop.f32.mrb[0].mxu0
        %v1840 = vadd.f32 %v1768, %v1839
        %v1841 = vpop.f32.mrb[0].mxu0
        %1842 = vdwg.mxu0
        %v1843 = vmax.f32 %v1840, 0.0
        %v1844 = vld [vmem:[%s9] sm:$0xff]
        %v1845 = vld [vmem:[%s9 + $0x8] sm:$0xff]
        %v1846 = vld [vmem:[%s9 + $0x10] sm:$0xff]
        %v1847 = vld [vmem:[%s9 + $0x18] sm:$0xff]
        %v1848 = vld [vmem:[%s9 + $0x20] sm:$0xff]
        %v1849 = vld [vmem:[%s9 + $0x28] sm:$0xff]
        %v1850 = vld [vmem:[%s9 + $0x30] sm:$0xff]
        %v1851 = vld [vmem:[%s9 + $0x38] sm:$0xff]
        %vm1852 = vcmask 523264
        %v1854 = vsel %vm1852, %v1843, 0
        %1856 = vmatprep.subr.mxu0 0.0
        %1857 = vmatpush1.msra.mxu0 %v1844
        %1858 = vmatprep.subr.mxu0 0.0
        %1859 = vmatpush1.msra.mxu0 %v1845
        %1860 = vmatprep.subr.mxu0 0.0
        %1861 = vmatpush1.msra.mxu0 %v1846
        %1862 = vmatprep.subr.mxu0 0.0
        %1863 = vmatpush1.msra.mxu0 %v1847
        %1864 = vmatprep.subr.mxu0 0.0
        %1865 = vmatpush1.msra.mxu0 %v1848
        %1866 = vmatprep.subr.mxu0 0.0
        %1867 = vmatpush1.msra.mxu0 %v1849
        %1868 = vmatprep.subr.mxu0 0.0
        %1869 = vmatpush1.msra.mxu0 %v1850
        %1870 = vmatprep.subr.mxu0 0.0
        %1871 = vmatpush1.msra.mxu0 %v1851
        %1872 = vmatprep.subr.mxu0 0.0
        %1873 = vmatpush1.msra.mxu0 0.0
        %1874 = vmatprep.subr.mxu0 0.0
        %1875 = vmatpush1.msra.mxu0 0.0
        %1876 = vmatprep.subr.mxu0 0.0
        %1877 = vmatpush1.msra.mxu0 0.0
        %1878 = vmatprep.subr.mxu0 0.0
        %1879 = vmatpush1.msra.mxu0 0.0
        %1880 = vmatprep.subr.mxu0 0.0
        %1881 = vmatpush1.msra.mxu0 0.0
        %1882 = vmatprep.subr.mxu0 0.0
        %1883 = vmatpush1.msra.mxu0 0.0
        %1884 = vmatprep.subr.mxu0 0.0
        %1885 = vmatpush1.msra.mxu0 0.0
        %1886 = vmatprep.subr.mxu0 0.0
        %1887 = vmatpush1.msra.mxu0 0.0
        %1888 = vmatprep.subr.mxu0 0.0
        %1889 = vmatpush1.msra.mxu0 0.0
        %1890 = vmatprep.subr.mxu0 0.0
        %1891 = vmatpush1.msra.mxu0 0.0
        %1892 = vmatprep.subr.mxu0 0.0
        %1893 = vmatpush1.msra.mxu0 0.0
        %1894 = vmatprep.subr.mxu0 0.0
        %1895 = vmatpush1.msra.mxu0 0.0
        %1896 = vmatprep.subr.mxu0 0.0
        %1897 = vmatpush1.msra.mxu0 0.0
        %1898 = vmatprep.subr.mxu0 0.0
        %1899 = vmatpush1.msra.mxu0 0.0
        %1900 = vmatprep.subr.mxu0 0.0
        %1901 = vmatpush1.msra.mxu0 0.0
        %1902 = vmatprep.subr.mxu0 0.0
        %1903 = vmatpush1.msra.mxu0 0.0
        %1904 = vmatprep.subr.mxu0 0.0
        %1905 = vmatpush1.msra.mxu0 0.0
        %1906 = vmatprep.subr.mxu0 0.0
        %1907 = vmatpush1.msra.mxu0 0.0
        %1908 = vmatprep.subr.mxu0 0.0
        %1909 = vmatpush1.msra.mxu0 0.0
        %1910 = vmatprep.subr.mxu0 0.0
        %1911 = vmatpush1.msra.mxu0 0.0
        %1912 = vmatprep.subr.mxu0 0.0
        %1913 = vmatpush1.msra.mxu0 0.0
        %1914 = vmatprep.subr.mxu0 0.0
        %1915 = vmatpush1.msra.mxu0 0.0
        %1916 = vmatprep.subr.mxu0 0.0
        %1917 = vmatpush1.msra.mxu0 0.0
        %1918 = vmatprep.subr.mxu0 0.0
        %1919 = vmatpush1.msra.mxu0 0.0
        %1920 = vmatprep.mubr.f32.mxu0 0.0
        %1921 = vmatmul.mubr.f32.gmra.mrb[0].mxu0 %v1854
        %v1922 = vpop.f32.mrb[0].mxu0
        %v1923 = vadd.f32 0.0, %v1922
        %v1924 = vpop.f32.mrb[0].mxu0
        %1925 = vdwg.mxu0
        %v1926 = vadd.f32 %v1735, %v1923
        %v1927 = vlaneseq
        %v1928 = vshrl.u32 %v1927, 7
        %v1929 = vsub.s32 5, %v1928
        %v1930 = vrot.slane %v638, %v1929
        %v1931 = vadd.f32 %v1926, %v1930
        %s1932 = scalar_lea.vmem %s10, 8
        %v1933 = vld [vmem:[%s1932] sm:$0x3f]
        %s1934 = scalar_lea.vmem %s6, 32
        %v1935 = vld [vmem:[%s1934] sm:$0xff]
        %v1936 = vld [vmem:[%s1934 + $0x8] sm:$0xff]
        %v1937 = vld [vmem:[%s1934 + $0x10] sm:$0xff]
        %v1938 = vld [vmem:[%s1934 + $0x18] sm:$0xff]
        %v1939 = vsel %vm643, %v1931, 0.0
        %1940 = vadd.xlane.f32.xlu0 %v1939
        %v1941 = vpop.xlane.xlu0 %1940
        %v1942 = vmul.f32 %v1941, %v647
        %v1943 = vsub.f32 %v1931, %v1942
        %v1944 = vmul.f32 %v1943, %v1943
        %v1945 = vsel %vm643, %v1944, 0.0
        %1946 = vadd.xlane.f32.xlu0 %v1945
        %v1947 = vpop.xlane.xlu0 %1946
        %v1948 = vmul.f32 %v1947, %v647
        %v1949 = vadd.f32 %v1948, 1e-12
        %v1950 = vrsqrt.pop %v1949
        %v1951 = vmul.f32 %v1943, %v1950
        %v1952 = vlaneseq
        %v1953 = vshrl.u32 %v1952, 7
        %v1954 = vsub.s32 0, %v1953
        %v1955 = vrot.slane %v1933, %v1954
        %v1956 = vmul.f32 %v1951, %v1955
        %v1957 = vlaneseq
        %v1958 = vshrl.u32 %v1957, 7
        %v1959 = vsub.s32 1, %v1958
        %v1960 = vrot.slane %v1933, %v1959
        %v1961 = vadd.f32 %v1956, %v1960
        %s1962 = scalar_lea.vmem %s4, 32
        %v1963 = vld [vmem:[%s1962] sm:$0xff]
        %v1964 = vld [vmem:[%s1962 + $0x8] sm:$0xff]
        %v1965 = vld [vmem:[%s1962 + $0x10] sm:$0xff]
        %v1966 = vld [vmem:[%s1962 + $0x18] sm:$0xff]
        %s1967 = scalar_lea.vmem %s5, 1
        %v1968 = vld [vmem:[%s1967] sm:$0x1]
        %v1970 = vlaneseq
        %v1971 = vshrl.u32 %v1970, 7
        %v1972 = vsub.s32 0, %v1971
        %v1973 = vrot.slane %v1968, %v1972
        %v1976 = vsel %vm643, %v1961, 0
        %1978 = vmatprep.subr.mxu0 0.0
        %1979 = vmatpush1.msra.mxu0 %v1963
        %1980 = vmatprep.subr.mxu0 0.0
        %1981 = vmatpush1.msra.mxu0 %v1964
        %1982 = vmatprep.subr.mxu0 0.0
        %1983 = vmatpush1.msra.mxu0 %v1965
        %1984 = vmatprep.subr.mxu0 0.0
        %1985 = vmatpush1.msra.mxu0 %v1966
        %1986 = vmatprep.subr.mxu0 0.0
        %1987 = vmatpush1.msra.mxu0 0.0
        %1988 = vmatprep.subr.mxu0 0.0
        %1989 = vmatpush1.msra.mxu0 0.0
        %1990 = vmatprep.subr.mxu0 0.0
        %1991 = vmatpush1.msra.mxu0 0.0
        %1992 = vmatprep.subr.mxu0 0.0
        %1993 = vmatpush1.msra.mxu0 0.0
        %1994 = vmatprep.subr.mxu0 0.0
        %1995 = vmatpush1.msra.mxu0 0.0
        %1996 = vmatprep.subr.mxu0 0.0
        %1997 = vmatpush1.msra.mxu0 0.0
        %1998 = vmatprep.subr.mxu0 0.0
        %1999 = vmatpush1.msra.mxu0 0.0
        %2000 = vmatprep.subr.mxu0 0.0
        %2001 = vmatpush1.msra.mxu0 0.0
        %2002 = vmatprep.subr.mxu0 0.0
        %2003 = vmatpush1.msra.mxu0 0.0
        %2004 = vmatprep.subr.mxu0 0.0
        %2005 = vmatpush1.msra.mxu0 0.0
        %2006 = vmatprep.subr.mxu0 0.0
        %2007 = vmatpush1.msra.mxu0 0.0
        %2008 = vmatprep.subr.mxu0 0.0
        %2009 = vmatpush1.msra.mxu0 0.0
        %2010 = vmatprep.subr.mxu0 0.0
        %2011 = vmatpush1.msra.mxu0 0.0
        %2012 = vmatprep.subr.mxu0 0.0
        %2013 = vmatpush1.msra.mxu0 0.0
        %2014 = vmatprep.subr.mxu0 0.0
        %2015 = vmatpush1.msra.mxu0 0.0
        %2016 = vmatprep.subr.mxu0 0.0
        %2017 = vmatpush1.msra.mxu0 0.0
        %2018 = vmatprep.subr.mxu0 0.0
        %2019 = vmatpush1.msra.mxu0 0.0
        %2020 = vmatprep.subr.mxu0 0.0
        %2021 = vmatpush1.msra.mxu0 0.0
        %2022 = vmatprep.subr.mxu0 0.0
        %2023 = vmatpush1.msra.mxu0 0.0
        %2024 = vmatprep.subr.mxu0 0.0
        %2025 = vmatpush1.msra.mxu0 0.0
        %2026 = vmatprep.subr.mxu0 0.0
        %2027 = vmatpush1.msra.mxu0 0.0
        %2028 = vmatprep.subr.mxu0 0.0
        %2029 = vmatpush1.msra.mxu0 0.0
        %2030 = vmatprep.subr.mxu0 0.0
        %2031 = vmatpush1.msra.mxu0 0.0
        %2032 = vmatprep.subr.mxu0 0.0
        %2033 = vmatpush1.msra.mxu0 0.0
        %2034 = vmatprep.subr.mxu0 0.0
        %2035 = vmatpush1.msra.mxu0 0.0
        %2036 = vmatprep.subr.mxu0 0.0
        %2037 = vmatpush1.msra.mxu0 0.0
        %2038 = vmatprep.subr.mxu0 0.0
        %2039 = vmatpush1.msra.mxu0 0.0
        %2040 = vmatprep.subr.mxu0 0.0
        %2041 = vmatpush1.msra.mxu0 0.0
        %2042 = vmatprep.mubr.f32.mxu0 0.0
        %2043 = vmatmul.mubr.f32.gmra.mrb[0].mxu0 %v1976
        %v2044 = vpop.f32.mrb[0].mxu0
        %v2045 = vadd.f32 %v1973, %v2044
        %v2046 = vpop.f32.mrb[0].mxu0
        %2047 = vdwg.mxu0
        %2049 = vrot.lane.b32.xlu0 %v2045, 96
        %v2050 = vpop.permute.xlu0 %2049
        %v2051 = vsel %vm755, %v2045, 0
        %v2053 = vsel %vm755, %v2050, 0
        %2055 = vmatprep.subr.mxu0 0.0
        %2056 = vmatpush1.xpose.msra.mxu0 %v2053
        %2057 = vmatprep.subr.mxu0 0.0
        %2058 = vmatpush1.xpose.msra.mxu0 0.0
        %2059 = vmatprep.subr.mxu0 0.0
        %2060 = vmatpush1.xpose.msra.mxu0 0.0
        %2061 = vmatprep.subr.mxu0 0.0
        %2062 = vmatpush1.xpose.msra.mxu0 0.0
        %2063 = vmatprep.subr.mxu0 0.0
        %2064 = vmatpush1.xpose.msra.mxu0 0.0
        %2065 = vmatprep.subr.mxu0 0.0
        %2066 = vmatpush1.xpose.msra.mxu0 0.0
        %2067 = vmatprep.subr.mxu0 0.0
        %2068 = vmatpush1.xpose.msra.mxu0 0.0
        %2069 = vmatprep.subr.mxu0 0.0
        %2070 = vmatpush1.xpose.msra.mxu0 0.0
        %2071 = vmatprep.subr.mxu0 0.0
        %2072 = vmatpush1.xpose.msra.mxu0 0.0
        %2073 = vmatprep.subr.mxu0 0.0
        %2074 = vmatpush1.xpose.msra.mxu0 0.0
        %2075 = vmatprep.subr.mxu0 0.0
        %2076 = vmatpush1.xpose.msra.mxu0 0.0
        %2077 = vmatprep.subr.mxu0 0.0
        %2078 = vmatpush1.xpose.msra.mxu0 0.0
        %2079 = vmatprep.subr.mxu0 0.0
        %2080 = vmatpush1.xpose.msra.mxu0 0.0
        %2081 = vmatprep.subr.mxu0 0.0
        %2082 = vmatpush1.xpose.msra.mxu0 0.0
        %2083 = vmatprep.subr.mxu0 0.0
        %2084 = vmatpush1.xpose.msra.mxu0 0.0
        %2085 = vmatprep.subr.mxu0 0.0
        %2086 = vmatpush1.xpose.msra.mxu0 0.0
        %2087 = vmatprep.subr.mxu0 0.0
        %2088 = vmatpush1.xpose.msra.mxu0 0.0
        %2089 = vmatprep.subr.mxu0 0.0
        %2090 = vmatpush1.xpose.msra.mxu0 0.0
        %2091 = vmatprep.subr.mxu0 0.0
        %2092 = vmatpush1.xpose.msra.mxu0 0.0
        %2093 = vmatprep.subr.mxu0 0.0
        %2094 = vmatpush1.xpose.msra.mxu0 0.0
        %2095 = vmatprep.subr.mxu0 0.0
        %2096 = vmatpush1.xpose.msra.mxu0 0.0
        %2097 = vmatprep.subr.mxu0 0.0
        %2098 = vmatpush1.xpose.msra.mxu0 0.0
        %2099 = vmatprep.subr.mxu0 0.0
        %2100 = vmatpush1.xpose.msra.mxu0 0.0
        %2101 = vmatprep.subr.mxu0 0.0
        %2102 = vmatpush1.xpose.msra.mxu0 0.0
        %2103 = vmatprep.subr.mxu0 0.0
        %2104 = vmatpush1.xpose.msra.mxu0 0.0
        %2105 = vmatprep.subr.mxu0 0.0
        %2106 = vmatpush1.xpose.msra.mxu0 0.0
        %2107 = vmatprep.subr.mxu0 0.0
        %2108 = vmatpush1.xpose.msra.mxu0 0.0
        %2109 = vmatprep.subr.mxu0 0.0
        %2110 = vmatpush1.xpose.msra.mxu0 0.0
        %2111 = vmatprep.subr.mxu0 0.0
        %2112 = vmatpush1.xpose.msra.mxu0 0.0
        %2113 = vmatprep.subr.mxu0 0.0
        %2114 = vmatpush1.xpose.msra.mxu0 0.0
        %2115 = vmatprep.subr.mxu0 0.0
        %2116 = vmatpush1.xpose.msra.mxu0 0.0
        %2117 = vmatprep.subr.mxu0 0.0
        %2118 = vmatpush1.xpose.msra.mxu0 0.0
        %2119 = vmatprep.mubr.f32.mxu0 0.0
        %2120 = vmatmul.mubr.f32.gmra.mrb[0].mxu0 %v2051
        %v2121 = vpop.f32.mrb[0].mxu0
        %v2122 = vadd.f32 0.0, %v2121
        %v2123 = vpop.f32.mrb[0].mxu0
        %2124 = vdwg.mxu0
        %v2125 = vmul.f32 %v2122, 0.35355338
        %v2126 = vadd.f32 %v2125, %v835
        %v2127 = vsel %vm755, %v2126, -inf
        %2128 = vmax.xlane.f32.xlu0 %v2127
        %v2129 = vpop.xlane.xlu0 %2128
        %v2130 = vsub.f32 %v2126, %v2129
        %v2131 = vmul.f32 %v2130, 1.442695
        %v2132 = vpow.pop %v2131
        %v2133 = vsel %vm755, %v2132, 0.0
        %2134 = vadd.xlane.f32.xlu0 %v2133
        %v2135 = vpop.xlane.xlu0 %2134
        %v2136 = vrcp.pop %v2135
        %v2137 = vmul.f32 %v2132, %v2136
        %v2138 = vmul.f32 %v2137, %v853
        %2139 = vrot.lane.b32.xlu0 %v2045, 64
        %v2140 = vpop.permute.xlu0 %2139
        %v2143 = vsel %vm755, %v2138, 0
        %2145 = vmatprep.subr.mxu0 0.0
        %2146 = vmatpush1.msra.mxu0 %v2140
        %2147 = vmatprep.subr.mxu0 0.0
        %2148 = vmatpush1.msra.mxu0 0.0
        %2149 = vmatprep.subr.mxu0 0.0
        %2150 = vmatpush1.msra.mxu0 0.0
        %2151 = vmatprep.subr.mxu0 0.0
        %2152 = vmatpush1.msra.mxu0 0.0
        %2153 = vmatprep.subr.mxu0 0.0
        %2154 = vmatpush1.msra.mxu0 0.0
        %2155 = vmatprep.subr.mxu0 0.0
        %2156 = vmatpush1.msra.mxu0 0.0
        %2157 = vmatprep.subr.mxu0 0.0
        %2158 = vmatpush1.msra.mxu0 0.0
        %2159 = vmatprep.subr.mxu0 0.0
        %2160 = vmatpush1.msra.mxu0 0.0
        %2161 = vmatprep.subr.mxu0 0.0
        %2162 = vmatpush1.msra.mxu0 0.0
        %2163 = vmatprep.subr.mxu0 0.0
        %2164 = vmatpush1.msra.mxu0 0.0
        %2165 = vmatprep.subr.mxu0 0.0
        %2166 = vmatpush1.msra.mxu0 0.0
        %2167 = vmatprep.subr.mxu0 0.0
        %2168 = vmatpush1.msra.mxu0 0.0
        %2169 = vmatprep.subr.mxu0 0.0
        %2170 = vmatpush1.msra.mxu0 0.0
        %2171 = vmatprep.subr.mxu0 0.0
        %2172 = vmatpush1.msra.mxu0 0.0
        %2173 = vmatprep.subr.mxu0 0.0
        %2174 = vmatpush1.msra.mxu0 0.0
        %2175 = vmatprep.subr.mxu0 0.0
        %2176 = vmatpush1.msra.mxu0 0.0
        %2177 = vmatprep.subr.mxu0 0.0
        %2178 = vmatpush1.msra.mxu0 0.0
        %2179 = vmatprep.subr.mxu0 0.0
        %2180 = vmatpush1.msra.mxu0 0.0
        %2181 = vmatprep.subr.mxu0 0.0
        %2182 = vmatpush1.msra.mxu0 0.0
        %2183 = vmatprep.subr.mxu0 0.0
        %2184 = vmatpush1.msra.mxu0 0.0
        %2185 = vmatprep.subr.mxu0 0.0
        %2186 = vmatpush1.msra.mxu0 0.0
        %2187 = vmatprep.subr.mxu0 0.0
        %2188 = vmatpush1.msra.mxu0 0.0
        %2189 = vmatprep.subr.mxu0 0.0
        %2190 = vmatpush1.msra.mxu0 0.0
        %2191 = vmatprep.subr.mxu0 0.0
        %2192 = vmatpush1.msra.mxu0 0.0
        %2193 = vmatprep.subr.mxu0 0.0
        %2194 = vmatpush1.msra.mxu0 0.0
        %2195 = vmatprep.subr.mxu0 0.0
        %2196 = vmatpush1.msra.mxu0 0.0
        %2197 = vmatprep.subr.mxu0 0.0
        %2198 = vmatpush1.msra.mxu0 0.0
        %2199 = vmatprep.subr.mxu0 0.0
        %2200 = vmatpush1.msra.mxu0 0.0
        %2201 = vmatprep.subr.mxu0 0.0
        %2202 = vmatpush1.msra.mxu0 0.0
        %2203 = vmatprep.subr.mxu0 0.0
        %2204 = vmatpush1.msra.mxu0 0.0
        %2205 = vmatprep.subr.mxu0 0.0
        %2206 = vmatpush1.msra.mxu0 0.0
        %2207 = vmatprep.subr.mxu0 0.0
        %2208 = vmatpush1.msra.mxu0 0.0
        %2209 = vmatprep.mubr.f32.mxu0 0.0
        %2210 = vmatmul.mubr.f32.gmra.mrb[0].mxu0 %v2143
        %v2211 = vpop.f32.mrb[0].mxu0
        %v2212 = vadd.f32 0.0, %v2211
        %v2213 = vpop.f32.mrb[0].mxu0
        %2214 = vdwg.mxu0
        %2215 = vrot.lane.b32.xlu0 %v2045, 120
        %v2216 = vpop.permute.xlu0 %2215
        %2217 = vrot.lane.b32.xlu0 %v2045, 88
        %v2218 = vpop.permute.xlu0 %2217
        %v2219 = vsel %vm755, %v2216, 0
        %v2221 = vsel %vm755, %v2218, 0
        %2223 = vmatprep.subr.mxu0 0.0
        %2224 = vmatpush1.xpose.msra.mxu0 %v2221
        %2225 = vmatprep.subr.mxu0 0.0
        %2226 = vmatpush1.xpose.msra.mxu0 0.0
        %2227 = vmatprep.subr.mxu0 0.0
        %2228 = vmatpush1.xpose.msra.mxu0 0.0
        %2229 = vmatprep.subr.mxu0 0.0
        %2230 = vmatpush1.xpose.msra.mxu0 0.0
        %2231 = vmatprep.subr.mxu0 0.0
        %2232 = vmatpush1.xpose.msra.mxu0 0.0
        %2233 = vmatprep.subr.mxu0 0.0
        %2234 = vmatpush1.xpose.msra.mxu0 0.0
        %2235 = vmatprep.subr.mxu0 0.0
        %2236 = vmatpush1.xpose.msra.mxu0 0.0
        %2237 = vmatprep.subr.mxu0 0.0
        %2238 = vmatpush1.xpose.msra.mxu0 0.0
        %2239 = vmatprep.subr.mxu0 0.0
        %2240 = vmatpush1.xpose.msra.mxu0 0.0
        %2241 = vmatprep.subr.mxu0 0.0
        %2242 = vmatpush1.xpose.msra.mxu0 0.0
        %2243 = vmatprep.subr.mxu0 0.0
        %2244 = vmatpush1.xpose.msra.mxu0 0.0
        %2245 = vmatprep.subr.mxu0 0.0
        %2246 = vmatpush1.xpose.msra.mxu0 0.0
        %2247 = vmatprep.subr.mxu0 0.0
        %2248 = vmatpush1.xpose.msra.mxu0 0.0
        %2249 = vmatprep.subr.mxu0 0.0
        %2250 = vmatpush1.xpose.msra.mxu0 0.0
        %2251 = vmatprep.subr.mxu0 0.0
        %2252 = vmatpush1.xpose.msra.mxu0 0.0
        %2253 = vmatprep.subr.mxu0 0.0
        %2254 = vmatpush1.xpose.msra.mxu0 0.0
        %2255 = vmatprep.subr.mxu0 0.0
        %2256 = vmatpush1.xpose.msra.mxu0 0.0
        %2257 = vmatprep.subr.mxu0 0.0
        %2258 = vmatpush1.xpose.msra.mxu0 0.0
        %2259 = vmatprep.subr.mxu0 0.0
        %2260 = vmatpush1.xpose.msra.mxu0 0.0
        %2261 = vmatprep.subr.mxu0 0.0
        %2262 = vmatpush1.xpose.msra.mxu0 0.0
        %2263 = vmatprep.subr.mxu0 0.0
        %2264 = vmatpush1.xpose.msra.mxu0 0.0
        %2265 = vmatprep.subr.mxu0 0.0
        %2266 = vmatpush1.xpose.msra.mxu0 0.0
        %2267 = vmatprep.subr.mxu0 0.0
        %2268 = vmatpush1.xpose.msra.mxu0 0.0
        %2269 = vmatprep.subr.mxu0 0.0
        %2270 = vmatpush1.xpose.msra.mxu0 0.0
        %2271 = vmatprep.subr.mxu0 0.0
        %2272 = vmatpush1.xpose.msra.mxu0 0.0
        %2273 = vmatprep.subr.mxu0 0.0
        %2274 = vmatpush1.xpose.msra.mxu0 0.0
        %2275 = vmatprep.subr.mxu0 0.0
        %2276 = vmatpush1.xpose.msra.mxu0 0.0
        %2277 = vmatprep.subr.mxu0 0.0
        %2278 = vmatpush1.xpose.msra.mxu0 0.0
        %2279 = vmatprep.subr.mxu0 0.0
        %2280 = vmatpush1.xpose.msra.mxu0 0.0
        %2281 = vmatprep.subr.mxu0 0.0
        %2282 = vmatpush1.xpose.msra.mxu0 0.0
        %2283 = vmatprep.subr.mxu0 0.0
        %2284 = vmatpush1.xpose.msra.mxu0 0.0
        %2285 = vmatprep.subr.mxu0 0.0
        %2286 = vmatpush1.xpose.msra.mxu0 0.0
        %2287 = vmatprep.mubr.f32.mxu0 0.0
        %2288 = vmatmul.mubr.f32.gmra.mrb[0].mxu0 %v2219
        %v2289 = vpop.f32.mrb[0].mxu0
        %v2290 = vadd.f32 0.0, %v2289
        %v2291 = vpop.f32.mrb[0].mxu0
        %2292 = vdwg.mxu0
        %v2293 = vmul.f32 %v2290, 0.35355338
        %v2294 = vadd.f32 %v2293, %v835
        %v2295 = vsel %vm755, %v2294, -inf
        %2296 = vmax.xlane.f32.xlu0 %v2295
        %v2297 = vpop.xlane.xlu0 %2296
        %v2298 = vsub.f32 %v2294, %v2297
        %v2299 = vmul.f32 %v2298, 1.442695
        %v2300 = vpow.pop %v2299
        %v2301 = vsel %vm755, %v2300, 0.0
        %2302 = vadd.xlane.f32.xlu0 %v2301
        %v2303 = vpop.xlane.xlu0 %2302
        %v2304 = vrcp.pop %v2303
        %v2305 = vmul.f32 %v2300, %v2304
        %v2306 = vmul.f32 %v2305, %v853
        %2307 = vrot.lane.b32.xlu0 %v2045, 56
        %v2308 = vpop.permute.xlu0 %2307
        %v2311 = vsel %vm755, %v2306, 0
        %2313 = vmatprep.subr.mxu0 0.0
        %2314 = vmatpush1.msra.mxu0 %v2308
        %2315 = vmatprep.subr.mxu0 0.0
        %2316 = vmatpush1.msra.mxu0 0.0
        %2317 = vmatprep.subr.mxu0 0.0
        %2318 = vmatpush1.msra.mxu0 0.0
        %2319 = vmatprep.subr.mxu0 0.0
        %2320 = vmatpush1.msra.mxu0 0.0
        %2321 = vmatprep.subr.mxu0 0.0
        %2322 = vmatpush1.msra.mxu0 0.0
        %2323 = vmatprep.subr.mxu0 0.0
        %2324 = vmatpush1.msra.mxu0 0.0
        %2325 = vmatprep.subr.mxu0 0.0
        %2326 = vmatpush1.msra.mxu0 0.0
        %2327 = vmatprep.subr.mxu0 0.0
        %2328 = vmatpush1.msra.mxu0 0.0
        %2329 = vmatprep.subr.mxu0 0.0
        %2330 = vmatpush1.msra.mxu0 0.0
        %2331 = vmatprep.subr.mxu0 0.0
        %2332 = vmatpush1.msra.mxu0 0.0
        %2333 = vmatprep.subr.mxu0 0.0
        %2334 = vmatpush1.msra.mxu0 0.0
        %2335 = vmatprep.subr.mxu0 0.0
        %2336 = vmatpush1.msra.mxu0 0.0
        %2337 = vmatprep.subr.mxu0 0.0
        %2338 = vmatpush1.msra.mxu0 0.0
        %2339 = vmatprep.subr.mxu0 0.0
        %2340 = vmatpush1.msra.mxu0 0.0
        %2341 = vmatprep.subr.mxu0 0.0
        %2342 = vmatpush1.msra.mxu0 0.0
        %2343 = vmatprep.subr.mxu0 0.0
        %2344 = vmatpush1.msra.mxu0 0.0
        %2345 = vmatprep.subr.mxu0 0.0
        %2346 = vmatpush1.msra.mxu0 0.0
        %2347 = vmatprep.subr.mxu0 0.0
        %2348 = vmatpush1.msra.mxu0 0.0
        %2349 = vmatprep.subr.mxu0 0.0
        %2350 = vmatpush1.msra.mxu0 0.0
        %2351 = vmatprep.subr.mxu0 0.0
        %2352 = vmatpush1.msra.mxu0 0.0
        %2353 = vmatprep.subr.mxu0 0.0
        %2354 = vmatpush1.msra.mxu0 0.0
        %2355 = vmatprep.subr.mxu0 0.0
        %2356 = vmatpush1.msra.mxu0 0.0
        %2357 = vmatprep.subr.mxu0 0.0
        %2358 = vmatpush1.msra.mxu0 0.0
        %2359 = vmatprep.subr.mxu0 0.0
        %2360 = vmatpush1.msra.mxu0 0.0
        %2361 = vmatprep.subr.mxu0 0.0
        %2362 = vmatpush1.msra.mxu0 0.0
        %2363 = vmatprep.subr.mxu0 0.0
        %2364 = vmatpush1.msra.mxu0 0.0
        %2365 = vmatprep.subr.mxu0 0.0
        %2366 = vmatpush1.msra.mxu0 0.0
        %2367 = vmatprep.subr.mxu0 0.0
        %2368 = vmatpush1.msra.mxu0 0.0
        %2369 = vmatprep.subr.mxu0 0.0
        %2370 = vmatpush1.msra.mxu0 0.0
        %2371 = vmatprep.subr.mxu0 0.0
        %2372 = vmatpush1.msra.mxu0 0.0
        %2373 = vmatprep.subr.mxu0 0.0
        %2374 = vmatpush1.msra.mxu0 0.0
        %2375 = vmatprep.subr.mxu0 0.0
        %2376 = vmatpush1.msra.mxu0 0.0
        %2377 = vmatprep.mubr.f32.mxu0 0.0
        %2378 = vmatmul.mubr.f32.gmra.mrb[0].mxu0 %v2311
        %v2379 = vpop.f32.mrb[0].mxu0
        %v2380 = vadd.f32 0.0, %v2379
        %v2381 = vpop.f32.mrb[0].mxu0
        %2382 = vdwg.mxu0
        %v2384 = vsel %vm755, %v2380, 0
        %2386 = vmatprep.subr.mxu0 0.0
        %2387 = vmatpush1.msra.mxu0 %v1936
        %2388 = vmatprep.subr.mxu0 0.0
        %2389 = vmatpush1.msra.mxu0 0.0
        %2390 = vmatprep.subr.mxu0 0.0
        %2391 = vmatpush1.msra.mxu0 0.0
        %2392 = vmatprep.subr.mxu0 0.0
        %2393 = vmatpush1.msra.mxu0 0.0
        %2394 = vmatprep.subr.mxu0 0.0
        %2395 = vmatpush1.msra.mxu0 0.0
        %2396 = vmatprep.subr.mxu0 0.0
        %2397 = vmatpush1.msra.mxu0 0.0
        %2398 = vmatprep.subr.mxu0 0.0
        %2399 = vmatpush1.msra.mxu0 0.0
        %2400 = vmatprep.subr.mxu0 0.0
        %2401 = vmatpush1.msra.mxu0 0.0
        %2402 = vmatprep.subr.mxu0 0.0
        %2403 = vmatpush1.msra.mxu0 0.0
        %2404 = vmatprep.subr.mxu0 0.0
        %2405 = vmatpush1.msra.mxu0 0.0
        %2406 = vmatprep.subr.mxu0 0.0
        %2407 = vmatpush1.msra.mxu0 0.0
        %2408 = vmatprep.subr.mxu0 0.0
        %2409 = vmatpush1.msra.mxu0 0.0
        %2410 = vmatprep.subr.mxu0 0.0
        %2411 = vmatpush1.msra.mxu0 0.0
        %2412 = vmatprep.subr.mxu0 0.0
        %2413 = vmatpush1.msra.mxu0 0.0
        %2414 = vmatprep.subr.mxu0 0.0
        %2415 = vmatpush1.msra.mxu0 0.0
        %2416 = vmatprep.subr.mxu0 0.0
        %2417 = vmatpush1.msra.mxu0 0.0
        %2418 = vmatprep.subr.mxu0 0.0
        %2419 = vmatpush1.msra.mxu0 0.0
        %2420 = vmatprep.subr.mxu0 0.0
        %2421 = vmatpush1.msra.mxu0 0.0
        %2422 = vmatprep.subr.mxu0 0.0
        %2423 = vmatpush1.msra.mxu0 0.0
        %2424 = vmatprep.subr.mxu0 0.0
        %2425 = vmatpush1.msra.mxu0 0.0
        %2426 = vmatprep.subr.mxu0 0.0
        %2427 = vmatpush1.msra.mxu0 0.0
        %2428 = vmatprep.subr.mxu0 0.0
        %2429 = vmatpush1.msra.mxu0 0.0
        %2430 = vmatprep.subr.mxu0 0.0
        %2431 = vmatpush1.msra.mxu0 0.0
        %2432 = vmatprep.subr.mxu0 0.0
        %2433 = vmatpush1.msra.mxu0 0.0
        %2434 = vmatprep.subr.mxu0 0.0
        %2435 = vmatpush1.msra.mxu0 0.0
        %2436 = vmatprep.subr.mxu0 0.0
        %2437 = vmatpush1.msra.mxu0 0.0
        %2438 = vmatprep.subr.mxu0 0.0
        %2439 = vmatpush1.msra.mxu0 0.0
        %2440 = vmatprep.subr.mxu0 0.0
        %2441 = vmatpush1.msra.mxu0 0.0
        %2442 = vmatprep.subr.mxu0 0.0
        %2443 = vmatpush1.msra.mxu0 0.0
        %2444 = vmatprep.subr.mxu0 0.0
        %2445 = vmatpush1.msra.mxu0 0.0
        %2446 = vmatprep.subr.mxu0 0.0
        %2447 = vmatpush1.msra.mxu0 0.0
        %2448 = vmatprep.subr.mxu0 0.0
        %2449 = vmatpush1.msra.mxu0 0.0
        %2450 = vmatprep.mubr.f32.mxu0 0.0
        %2451 = vmatmul.mubr.f32.gmra.mrb[0].mxu0 %v2384
        %v2452 = vpop.f32.mrb[0].mxu0
        %v2453 = vadd.f32 0.0, %v2452
        %v2454 = vpop.f32.mrb[0].mxu0
        %2455 = vdwg.mxu0
        %v2457 = vsel %vm755, %v2212, 0
        %2459 = vmatprep.subr.mxu0 0.0
        %2460 = vmatpush1.msra.mxu0 %v1935
        %2461 = vmatprep.subr.mxu0 0.0
        %2462 = vmatpush1.msra.mxu0 0.0
        %2463 = vmatprep.subr.mxu0 0.0
        %2464 = vmatpush1.msra.mxu0 0.0
        %2465 = vmatprep.subr.mxu0 0.0
        %2466 = vmatpush1.msra.mxu0 0.0
        %2467 = vmatprep.subr.mxu0 0.0
        %2468 = vmatpush1.msra.mxu0 0.0
        %2469 = vmatprep.subr.mxu0 0.0
        %2470 = vmatpush1.msra.mxu0 0.0
        %2471 = vmatprep.subr.mxu0 0.0
        %2472 = vmatpush1.msra.mxu0 0.0
        %2473 = vmatprep.subr.mxu0 0.0
        %2474 = vmatpush1.msra.mxu0 0.0
        %2475 = vmatprep.subr.mxu0 0.0
        %2476 = vmatpush1.msra.mxu0 0.0
        %2477 = vmatprep.subr.mxu0 0.0
        %2478 = vmatpush1.msra.mxu0 0.0
        %2479 = vmatprep.subr.mxu0 0.0
        %2480 = vmatpush1.msra.mxu0 0.0
        %2481 = vmatprep.subr.mxu0 0.0
        %2482 = vmatpush1.msra.mxu0 0.0
        %2483 = vmatprep.subr.mxu0 0.0
        %2484 = vmatpush1.msra.mxu0 0.0
        %2485 = vmatprep.subr.mxu0 0.0
        %2486 = vmatpush1.msra.mxu0 0.0
        %2487 = vmatprep.subr.mxu0 0.0
        %2488 = vmatpush1.msra.mxu0 0.0
        %2489 = vmatprep.subr.mxu0 0.0
        %2490 = vmatpush1.msra.mxu0 0.0
        %2491 = vmatprep.subr.mxu0 0.0
        %2492 = vmatpush1.msra.mxu0 0.0
        %2493 = vmatprep.subr.mxu0 0.0
        %2494 = vmatpush1.msra.mxu0 0.0
        %2495 = vmatprep.subr.mxu0 0.0
        %2496 = vmatpush1.msra.mxu0 0.0
        %2497 = vmatprep.subr.mxu0 0.0
        %2498 = vmatpush1.msra.mxu0 0.0
        %2499 = vmatprep.subr.mxu0 0.0
        %2500 = vmatpush1.msra.mxu0 0.0
        %2501 = vmatprep.subr.mxu0 0.0
        %2502 = vmatpush1.msra.mxu0 0.0
        %2503 = vmatprep.subr.mxu0 0.0
        %2504 = vmatpush1.msra.mxu0 0.0
        %2505 = vmatprep.subr.mxu0 0.0
        %2506 = vmatpush1.msra.mxu0 0.0
        %2507 = vmatprep.subr.mxu0 0.0
        %2508 = vmatpush1.msra.mxu0 0.0
        %2509 = vmatprep.subr.mxu0 0.0
        %2510 = vmatpush1.msra.mxu0 0.0
        %2511 = vmatprep.subr.mxu0 0.0
        %2512 = vmatpush1.msra.mxu0 0.0
        %2513 = vmatprep.subr.mxu0 0.0
        %2514 = vmatpush1.msra.mxu0 0.0
        %2515 = vmatprep.subr.mxu0 0.0
        %2516 = vmatpush1.msra.mxu0 0.0
        %2517 = vmatprep.subr.mxu0 0.0
        %2518 = vmatpush1.msra.mxu0 0.0
        %2519 = vmatprep.subr.mxu0 0.0
        %2520 = vmatpush1.msra.mxu0 0.0
        %2521 = vmatprep.subr.mxu0 0.0
        %2522 = vmatpush1.msra.mxu0 0.0
        %2523 = vmatprep.mubr.f32.mxu0 0.0
        %2524 = vmatmul.mubr.f32.gmra.mrb[0].mxu0 %v2457
        %v2525 = vpop.f32.mrb[0].mxu0
        %v2526 = vadd.f32 %v2453, %v2525
        %v2527 = vpop.f32.mrb[0].mxu0
        %2528 = vdwg.mxu0
        %2529 = vrot.lane.b32.xlu0 %v2045, 112
        %v2530 = vpop.permute.xlu0 %2529
        %2531 = vrot.lane.b32.xlu0 %v2045, 80
        %v2532 = vpop.permute.xlu0 %2531
        %v2533 = vsel %vm755, %v2530, 0
        %v2535 = vsel %vm755, %v2532, 0
        %2537 = vmatprep.subr.mxu0 0.0
        %2538 = vmatpush1.xpose.msra.mxu0 %v2535
        %2539 = vmatprep.subr.mxu0 0.0
        %2540 = vmatpush1.xpose.msra.mxu0 0.0
        %2541 = vmatprep.subr.mxu0 0.0
        %2542 = vmatpush1.xpose.msra.mxu0 0.0
        %2543 = vmatprep.subr.mxu0 0.0
        %2544 = vmatpush1.xpose.msra.mxu0 0.0
        %2545 = vmatprep.subr.mxu0 0.0
        %2546 = vmatpush1.xpose.msra.mxu0 0.0
        %2547 = vmatprep.subr.mxu0 0.0
        %2548 = vmatpush1.xpose.msra.mxu0 0.0
        %2549 = vmatprep.subr.mxu0 0.0
        %2550 = vmatpush1.xpose.msra.mxu0 0.0
        %2551 = vmatprep.subr.mxu0 0.0
        %2552 = vmatpush1.xpose.msra.mxu0 0.0
        %2553 = vmatprep.subr.mxu0 0.0
        %2554 = vmatpush1.xpose.msra.mxu0 0.0
        %2555 = vmatprep.subr.mxu0 0.0
        %2556 = vmatpush1.xpose.msra.mxu0 0.0
        %2557 = vmatprep.subr.mxu0 0.0
        %2558 = vmatpush1.xpose.msra.mxu0 0.0
        %2559 = vmatprep.subr.mxu0 0.0
        %2560 = vmatpush1.xpose.msra.mxu0 0.0
        %2561 = vmatprep.subr.mxu0 0.0
        %2562 = vmatpush1.xpose.msra.mxu0 0.0
        %2563 = vmatprep.subr.mxu0 0.0
        %2564 = vmatpush1.xpose.msra.mxu0 0.0
        %2565 = vmatprep.subr.mxu0 0.0
        %2566 = vmatpush1.xpose.msra.mxu0 0.0
        %2567 = vmatprep.subr.mxu0 0.0
        %2568 = vmatpush1.xpose.msra.mxu0 0.0
        %2569 = vmatprep.subr.mxu0 0.0
        %2570 = vmatpush1.xpose.msra.mxu0 0.0
        %2571 = vmatprep.subr.mxu0 0.0
        %2572 = vmatpush1.xpose.msra.mxu0 0.0
        %2573 = vmatprep.subr.mxu0 0.0
        %2574 = vmatpush1.xpose.msra.mxu0 0.0
        %2575 = vmatprep.subr.mxu0 0.0
        %2576 = vmatpush1.xpose.msra.mxu0 0.0
        %2577 = vmatprep.subr.mxu0 0.0
        %2578 = vmatpush1.xpose.msra.mxu0 0.0
        %2579 = vmatprep.subr.mxu0 0.0
        %2580 = vmatpush1.xpose.msra.mxu0 0.0
        %2581 = vmatprep.subr.mxu0 0.0
        %2582 = vmatpush1.xpose.msra.mxu0 0.0
        %2583 = vmatprep.subr.mxu0 0.0
        %2584 = vmatpush1.xpose.msra.mxu0 0.0
        %2585 = vmatprep.subr.mxu0 0.0
        %2586 = vmatpush1.xpose.msra.mxu0 0.0
        %2587 = vmatprep.subr.mxu0 0.0
        %2588 = vmatpush1.xpose.msra.mxu0 0.0
        %2589 = vmatprep.subr.mxu0 0.0
        %2590 = vmatpush1.xpose.msra.mxu0 0.0
        %2591 = vmatprep.subr.mxu0 0.0
        %2592 = vmatpush1.xpose.msra.mxu0 0.0
        %2593 = vmatprep.subr.mxu0 0.0
        %2594 = vmatpush1.xpose.msra.mxu0 0.0
        %2595 = vmatprep.subr.mxu0 0.0
        %2596 = vmatpush1.xpose.msra.mxu0 0.0
        %2597 = vmatprep.subr.mxu0 0.0
        %2598 = vmatpush1.xpose.msra.mxu0 0.0
        %2599 = vmatprep.subr.mxu0 0.0
        %2600 = vmatpush1.xpose.msra.mxu0 0.0
        %2601 = vmatprep.mubr.f32.mxu0 0.0
        %2602 = vmatmul.mubr.f32.gmra.mrb[0].mxu0 %v2533
        %v2603 = vpop.f32.mrb[0].mxu0
        %v2604 = vadd.f32 0.0, %v2603
        %v2605 = vpop.f32.mrb[0].mxu0
        %2606 = vdwg.mxu0
        %v2607 = vmul.f32 %v2604, 0.35355338
        %v2608 = vadd.f32 %v2607, %v835
        %v2609 = vsel %vm755, %v2608, -inf
        %2610 = vmax.xlane.f32.xlu0 %v2609
        %v2611 = vpop.xlane.xlu0 %2610
        %v2612 = vsub.f32 %v2608, %v2611
        %v2613 = vmul.f32 %v2612, 1.442695
        %v2614 = vpow.pop %v2613
        %v2615 = vsel %vm755, %v2614, 0.0
        %2616 = vadd.xlane.f32.xlu0 %v2615
        %v2617 = vpop.xlane.xlu0 %2616
        %v2618 = vrcp.pop %v2617
        %v2619 = vmul.f32 %v2614, %v2618
        %v2620 = vmul.f32 %v2619, %v853
        %2621 = vrot.lane.b32.xlu0 %v2045, 48
        %v2622 = vpop.permute.xlu0 %2621
        %v2625 = vsel %vm755, %v2620, 0
        %2627 = vmatprep.subr.mxu0 0.0
        %2628 = vmatpush1.msra.mxu0 %v2622
        %2629 = vmatprep.subr.mxu0 0.0
        %2630 = vmatpush1.msra.mxu0 0.0
        %2631 = vmatprep.subr.mxu0 0.0
        %2632 = vmatpush1.msra.mxu0 0.0
        %2633 = vmatprep.subr.mxu0 0.0
        %2634 = vmatpush1.msra.mxu0 0.0
        %2635 = vmatprep.subr.mxu0 0.0
        %2636 = vmatpush1.msra.mxu0 0.0
        %2637 = vmatprep.subr.mxu0 0.0
        %2638 = vmatpush1.msra.mxu0 0.0
        %2639 = vmatprep.subr.mxu0 0.0
        %2640 = vmatpush1.msra.mxu0 0.0
        %2641 = vmatprep.subr.mxu0 0.0
        %2642 = vmatpush1.msra.mxu0 0.0
        %2643 = vmatprep.subr.mxu0 0.0
        %2644 = vmatpush1.msra.mxu0 0.0
        %2645 = vmatprep.subr.mxu0 0.0
        %2646 = vmatpush1.msra.mxu0 0.0
        %2647 = vmatprep.subr.mxu0 0.0
        %2648 = vmatpush1.msra.mxu0 0.0
        %2649 = vmatprep.subr.mxu0 0.0
        %2650 = vmatpush1.msra.mxu0 0.0
        %2651 = vmatprep.subr.mxu0 0.0
        %2652 = vmatpush1.msra.mxu0 0.0
        %2653 = vmatprep.subr.mxu0 0.0
        %2654 = vmatpush1.msra.mxu0 0.0
        %2655 = vmatprep.subr.mxu0 0.0
        %2656 = vmatpush1.msra.mxu0 0.0
        %2657 = vmatprep.subr.mxu0 0.0
        %2658 = vmatpush1.msra.mxu0 0.0
        %2659 = vmatprep.subr.mxu0 0.0
        %2660 = vmatpush1.msra.mxu0 0.0
        %2661 = vmatprep.subr.mxu0 0.0
        %2662 = vmatpush1.msra.mxu0 0.0
        %2663 = vmatprep.subr.mxu0 0.0
        %2664 = vmatpush1.msra.mxu0 0.0
        %2665 = vmatprep.subr.mxu0 0.0
        %2666 = vmatpush1.msra.mxu0 0.0
        %2667 = vmatprep.subr.mxu0 0.0
        %2668 = vmatpush1.msra.mxu0 0.0
        %2669 = vmatprep.subr.mxu0 0.0
        %2670 = vmatpush1.msra.mxu0 0.0
        %2671 = vmatprep.subr.mxu0 0.0
        %2672 = vmatpush1.msra.mxu0 0.0
        %2673 = vmatprep.subr.mxu0 0.0
        %2674 = vmatpush1.msra.mxu0 0.0
        %2675 = vmatprep.subr.mxu0 0.0
        %2676 = vmatpush1.msra.mxu0 0.0
        %2677 = vmatprep.subr.mxu0 0.0
        %2678 = vmatpush1.msra.mxu0 0.0
        %2679 = vmatprep.subr.mxu0 0.0
        %2680 = vmatpush1.msra.mxu0 0.0
        %2681 = vmatprep.subr.mxu0 0.0
        %2682 = vmatpush1.msra.mxu0 0.0
        %2683 = vmatprep.subr.mxu0 0.0
        %2684 = vmatpush1.msra.mxu0 0.0
        %2685 = vmatprep.subr.mxu0 0.0
        %2686 = vmatpush1.msra.mxu0 0.0
        %2687 = vmatprep.subr.mxu0 0.0
        %2688 = vmatpush1.msra.mxu0 0.0
        %2689 = vmatprep.subr.mxu0 0.0
        %2690 = vmatpush1.msra.mxu0 0.0
        %2691 = vmatprep.mubr.f32.mxu0 0.0
        %2692 = vmatmul.mubr.f32.gmra.mrb[0].mxu0 %v2625
        %v2693 = vpop.f32.mrb[0].mxu0
        %v2694 = vadd.f32 0.0, %v2693
        %v2695 = vpop.f32.mrb[0].mxu0
        %2696 = vdwg.mxu0
        %v2698 = vsel %vm755, %v2694, 0
        %2700 = vmatprep.subr.mxu0 0.0
        %2701 = vmatpush1.msra.mxu0 %v1937
        %2702 = vmatprep.subr.mxu0 0.0
        %2703 = vmatpush1.msra.mxu0 0.0
        %2704 = vmatprep.subr.mxu0 0.0
        %2705 = vmatpush1.msra.mxu0 0.0
        %2706 = vmatprep.subr.mxu0 0.0
        %2707 = vmatpush1.msra.mxu0 0.0
        %2708 = vmatprep.subr.mxu0 0.0
        %2709 = vmatpush1.msra.mxu0 0.0
        %2710 = vmatprep.subr.mxu0 0.0
        %2711 = vmatpush1.msra.mxu0 0.0
        %2712 = vmatprep.subr.mxu0 0.0
        %2713 = vmatpush1.msra.mxu0 0.0
        %2714 = vmatprep.subr.mxu0 0.0
        %2715 = vmatpush1.msra.mxu0 0.0
        %2716 = vmatprep.subr.mxu0 0.0
        %2717 = vmatpush1.msra.mxu0 0.0
        %2718 = vmatprep.subr.mxu0 0.0
        %2719 = vmatpush1.msra.mxu0 0.0
        %2720 = vmatprep.subr.mxu0 0.0
        %2721 = vmatpush1.msra.mxu0 0.0
        %2722 = vmatprep.subr.mxu0 0.0
        %2723 = vmatpush1.msra.mxu0 0.0
        %2724 = vmatprep.subr.mxu0 0.0
        %2725 = vmatpush1.msra.mxu0 0.0
        %2726 = vmatprep.subr.mxu0 0.0
        %2727 = vmatpush1.msra.mxu0 0.0
        %2728 = vmatprep.subr.mxu0 0.0
        %2729 = vmatpush1.msra.mxu0 0.0
        %2730 = vmatprep.subr.mxu0 0.0
        %2731 = vmatpush1.msra.mxu0 0.0
        %2732 = vmatprep.subr.mxu0 0.0
        %2733 = vmatpush1.msra.mxu0 0.0
        %2734 = vmatprep.subr.mxu0 0.0
        %2735 = vmatpush1.msra.mxu0 0.0
        %2736 = vmatprep.subr.mxu0 0.0
        %2737 = vmatpush1.msra.mxu0 0.0
        %2738 = vmatprep.subr.mxu0 0.0
        %2739 = vmatpush1.msra.mxu0 0.0
        %2740 = vmatprep.subr.mxu0 0.0
        %2741 = vmatpush1.msra.mxu0 0.0
        %2742 = vmatprep.subr.mxu0 0.0
        %2743 = vmatpush1.msra.mxu0 0.0
        %2744 = vmatprep.subr.mxu0 0.0
        %2745 = vmatpush1.msra.mxu0 0.0
        %2746 = vmatprep.subr.mxu0 0.0
        %2747 = vmatpush1.msra.mxu0 0.0
        %2748 = vmatprep.subr.mxu0 0.0
        %2749 = vmatpush1.msra.mxu0 0.0
        %2750 = vmatprep.subr.mxu0 0.0
        %2751 = vmatpush1.msra.mxu0 0.0
        %2752 = vmatprep.subr.mxu0 0.0
        %2753 = vmatpush1.msra.mxu0 0.0
        %2754 = vmatprep.subr.mxu0 0.0
        %2755 = vmatpush1.msra.mxu0 0.0
        %2756 = vmatprep.subr.mxu0 0.0
        %2757 = vmatpush1.msra.mxu0 0.0
        %2758 = vmatprep.subr.mxu0 0.0
        %2759 = vmatpush1.msra.mxu0 0.0
        %2760 = vmatprep.subr.mxu0 0.0
        %2761 = vmatpush1.msra.mxu0 0.0
        %2762 = vmatprep.subr.mxu0 0.0
        %2763 = vmatpush1.msra.mxu0 0.0
        %2764 = vmatprep.mubr.f32.mxu0 0.0
        %2765 = vmatmul.mubr.f32.gmra.mrb[0].mxu0 %v2698
        %v2766 = vpop.f32.mrb[0].mxu0
        %v2767 = vadd.f32 0.0, %v2766
        %v2768 = vpop.f32.mrb[0].mxu0
        %2769 = vdwg.mxu0
        %v2770 = vadd.f32 %v2526, %v2767
        %2771 = vrot.lane.b32.xlu0 %v2045, 104
        %v2772 = vpop.permute.xlu0 %2771
        %2773 = vrot.lane.b32.xlu0 %v2045, 72
        %v2774 = vpop.permute.xlu0 %2773
        %v2775 = vsel %vm755, %v2772, 0
        %v2777 = vsel %vm755, %v2774, 0
        %2779 = vmatprep.subr.mxu0 0.0
        %2780 = vmatpush1.xpose.msra.mxu0 %v2777
        %2781 = vmatprep.subr.mxu0 0.0
        %2782 = vmatpush1.xpose.msra.mxu0 0.0
        %2783 = vmatprep.subr.mxu0 0.0
        %2784 = vmatpush1.xpose.msra.mxu0 0.0
        %2785 = vmatprep.subr.mxu0 0.0
        %2786 = vmatpush1.xpose.msra.mxu0 0.0
        %2787 = vmatprep.subr.mxu0 0.0
        %2788 = vmatpush1.xpose.msra.mxu0 0.0
        %2789 = vmatprep.subr.mxu0 0.0
        %2790 = vmatpush1.xpose.msra.mxu0 0.0
        %2791 = vmatprep.subr.mxu0 0.0
        %2792 = vmatpush1.xpose.msra.mxu0 0.0
        %2793 = vmatprep.subr.mxu0 0.0
        %2794 = vmatpush1.xpose.msra.mxu0 0.0
        %2795 = vmatprep.subr.mxu0 0.0
        %2796 = vmatpush1.xpose.msra.mxu0 0.0
        %2797 = vmatprep.subr.mxu0 0.0
        %2798 = vmatpush1.xpose.msra.mxu0 0.0
        %2799 = vmatprep.subr.mxu0 0.0
        %2800 = vmatpush1.xpose.msra.mxu0 0.0
        %2801 = vmatprep.subr.mxu0 0.0
        %2802 = vmatpush1.xpose.msra.mxu0 0.0
        %2803 = vmatprep.subr.mxu0 0.0
        %2804 = vmatpush1.xpose.msra.mxu0 0.0
        %2805 = vmatprep.subr.mxu0 0.0
        %2806 = vmatpush1.xpose.msra.mxu0 0.0
        %2807 = vmatprep.subr.mxu0 0.0
        %2808 = vmatpush1.xpose.msra.mxu0 0.0
        %2809 = vmatprep.subr.mxu0 0.0
        %2810 = vmatpush1.xpose.msra.mxu0 0.0
        %2811 = vmatprep.subr.mxu0 0.0
        %2812 = vmatpush1.xpose.msra.mxu0 0.0
        %2813 = vmatprep.subr.mxu0 0.0
        %2814 = vmatpush1.xpose.msra.mxu0 0.0
        %2815 = vmatprep.subr.mxu0 0.0
        %2816 = vmatpush1.xpose.msra.mxu0 0.0
        %2817 = vmatprep.subr.mxu0 0.0
        %2818 = vmatpush1.xpose.msra.mxu0 0.0
        %2819 = vmatprep.subr.mxu0 0.0
        %2820 = vmatpush1.xpose.msra.mxu0 0.0
        %2821 = vmatprep.subr.mxu0 0.0
        %2822 = vmatpush1.xpose.msra.mxu0 0.0
        %2823 = vmatprep.subr.mxu0 0.0
        %2824 = vmatpush1.xpose.msra.mxu0 0.0
        %2825 = vmatprep.subr.mxu0 0.0
        %2826 = vmatpush1.xpose.msra.mxu0 0.0
        %2827 = vmatprep.subr.mxu0 0.0
        %2828 = vmatpush1.xpose.msra.mxu0 0.0
        %2829 = vmatprep.subr.mxu0 0.0
        %2830 = vmatpush1.xpose.msra.mxu0 0.0
        %2831 = vmatprep.subr.mxu0 0.0
        %2832 = vmatpush1.xpose.msra.mxu0 0.0
        %2833 = vmatprep.subr.mxu0 0.0
        %2834 = vmatpush1.xpose.msra.mxu0 0.0
        %2835 = vmatprep.subr.mxu0 0.0
        %2836 = vmatpush1.xpose.msra.mxu0 0.0
        %2837 = vmatprep.subr.mxu0 0.0
        %2838 = vmatpush1.xpose.msra.mxu0 0.0
        %2839 = vmatprep.subr.mxu0 0.0
        %2840 = vmatpush1.xpose.msra.mxu0 0.0
        %2841 = vmatprep.subr.mxu0 0.0
        %2842 = vmatpush1.xpose.msra.mxu0 0.0
        %2843 = vmatprep.mubr.f32.mxu0 0.0
        %2844 = vmatmul.mubr.f32.gmra.mrb[0].mxu0 %v2775
        %v2845 = vpop.f32.mrb[0].mxu0
        %v2846 = vadd.f32 0.0, %v2845
        %v2847 = vpop.f32.mrb[0].mxu0
        %2848 = vdwg.mxu0
        %v2849 = vmul.f32 %v2846, 0.35355338
        %v2850 = vadd.f32 %v2849, %v835
        %v2851 = vsel %vm755, %v2850, -inf
        %2852 = vmax.xlane.f32.xlu0 %v2851
        %v2853 = vpop.xlane.xlu0 %2852
        %v2854 = vsub.f32 %v2850, %v2853
        %v2855 = vmul.f32 %v2854, 1.442695
        %v2856 = vpow.pop %v2855
        %v2857 = vsel %vm755, %v2856, 0.0
        %2858 = vadd.xlane.f32.xlu0 %v2857
        %v2859 = vpop.xlane.xlu0 %2858
        %v2860 = vrcp.pop %v2859
        %v2861 = vmul.f32 %v2856, %v2860
        %v2862 = vmul.f32 %v2861, %v853
        %2863 = vrot.lane.b32.xlu0 %v2045, 40
        %v2864 = vpop.permute.xlu0 %2863
        %v2867 = vsel %vm755, %v2862, 0
        %2869 = vmatprep.subr.mxu0 0.0
        %2870 = vmatpush1.msra.mxu0 %v2864
        %2871 = vmatprep.subr.mxu0 0.0
        %2872 = vmatpush1.msra.mxu0 0.0
        %2873 = vmatprep.subr.mxu0 0.0
        %2874 = vmatpush1.msra.mxu0 0.0
        %2875 = vmatprep.subr.mxu0 0.0
        %2876 = vmatpush1.msra.mxu0 0.0
        %2877 = vmatprep.subr.mxu0 0.0
        %2878 = vmatpush1.msra.mxu0 0.0
        %2879 = vmatprep.subr.mxu0 0.0
        %2880 = vmatpush1.msra.mxu0 0.0
        %2881 = vmatprep.subr.mxu0 0.0
        %2882 = vmatpush1.msra.mxu0 0.0
        %2883 = vmatprep.subr.mxu0 0.0
        %2884 = vmatpush1.msra.mxu0 0.0
        %2885 = vmatprep.subr.mxu0 0.0
        %2886 = vmatpush1.msra.mxu0 0.0
        %2887 = vmatprep.subr.mxu0 0.0
        %2888 = vmatpush1.msra.mxu0 0.0
        %2889 = vmatprep.subr.mxu0 0.0
        %2890 = vmatpush1.msra.mxu0 0.0
        %2891 = vmatprep.subr.mxu0 0.0
        %2892 = vmatpush1.msra.mxu0 0.0
        %2893 = vmatprep.subr.mxu0 0.0
        %2894 = vmatpush1.msra.mxu0 0.0
        %2895 = vmatprep.subr.mxu0 0.0
        %2896 = vmatpush1.msra.mxu0 0.0
        %2897 = vmatprep.subr.mxu0 0.0
        %2898 = vmatpush1.msra.mxu0 0.0
        %2899 = vmatprep.subr.mxu0 0.0
        %2900 = vmatpush1.msra.mxu0 0.0
        %2901 = vmatprep.subr.mxu0 0.0
        %2902 = vmatpush1.msra.mxu0 0.0
        %2903 = vmatprep.subr.mxu0 0.0
        %2904 = vmatpush1.msra.mxu0 0.0
        %2905 = vmatprep.subr.mxu0 0.0
        %2906 = vmatpush1.msra.mxu0 0.0
        %2907 = vmatprep.subr.mxu0 0.0
        %2908 = vmatpush1.msra.mxu0 0.0
        %2909 = vmatprep.subr.mxu0 0.0
        %2910 = vmatpush1.msra.mxu0 0.0
        %2911 = vmatprep.subr.mxu0 0.0
        %2912 = vmatpush1.msra.mxu0 0.0
        %2913 = vmatprep.subr.mxu0 0.0
        %2914 = vmatpush1.msra.mxu0 0.0
        %2915 = vmatprep.subr.mxu0 0.0
        %2916 = vmatpush1.msra.mxu0 0.0
        %2917 = vmatprep.subr.mxu0 0.0
        %2918 = vmatpush1.msra.mxu0 0.0
        %2919 = vmatprep.subr.mxu0 0.0
        %2920 = vmatpush1.msra.mxu0 0.0
        %2921 = vmatprep.subr.mxu0 0.0
        %2922 = vmatpush1.msra.mxu0 0.0
        %2923 = vmatprep.subr.mxu0 0.0
        %2924 = vmatpush1.msra.mxu0 0.0
        %2925 = vmatprep.subr.mxu0 0.0
        %2926 = vmatpush1.msra.mxu0 0.0
        %2927 = vmatprep.subr.mxu0 0.0
        %2928 = vmatpush1.msra.mxu0 0.0
        %2929 = vmatprep.subr.mxu0 0.0
        %2930 = vmatpush1.msra.mxu0 0.0
        %2931 = vmatprep.subr.mxu0 0.0
        %2932 = vmatpush1.msra.mxu0 0.0
        %2933 = vmatprep.mubr.f32.mxu0 0.0
        %2934 = vmatmul.mubr.f32.gmra.mrb[0].mxu0 %v2867
        %v2935 = vpop.f32.mrb[0].mxu0
        %v2936 = vadd.f32 0.0, %v2935
        %v2937 = vpop.f32.mrb[0].mxu0
        %2938 = vdwg.mxu0
        %v2940 = vsel %vm755, %v2936, 0
        %2942 = vmatprep.subr.mxu0 0.0
        %2943 = vmatpush1.msra.mxu0 %v1938
        %2944 = vmatprep.subr.mxu0 0.0
        %2945 = vmatpush1.msra.mxu0 0.0
        %2946 = vmatprep.subr.mxu0 0.0
        %2947 = vmatpush1.msra.mxu0 0.0
        %2948 = vmatprep.subr.mxu0 0.0
        %2949 = vmatpush1.msra.mxu0 0.0
        %2950 = vmatprep.subr.mxu0 0.0
        %2951 = vmatpush1.msra.mxu0 0.0
        %2952 = vmatprep.subr.mxu0 0.0
        %2953 = vmatpush1.msra.mxu0 0.0
        %2954 = vmatprep.subr.mxu0 0.0
        %2955 = vmatpush1.msra.mxu0 0.0
        %2956 = vmatprep.subr.mxu0 0.0
        %2957 = vmatpush1.msra.mxu0 0.0
        %2958 = vmatprep.subr.mxu0 0.0
        %2959 = vmatpush1.msra.mxu0 0.0
        %2960 = vmatprep.subr.mxu0 0.0
        %2961 = vmatpush1.msra.mxu0 0.0
        %2962 = vmatprep.subr.mxu0 0.0
        %2963 = vmatpush1.msra.mxu0 0.0
        %2964 = vmatprep.subr.mxu0 0.0
        %2965 = vmatpush1.msra.mxu0 0.0
        %2966 = vmatprep.subr.mxu0 0.0
        %2967 = vmatpush1.msra.mxu0 0.0
        %2968 = vmatprep.subr.mxu0 0.0
        %2969 = vmatpush1.msra.mxu0 0.0
        %2970 = vmatprep.subr.mxu0 0.0
        %2971 = vmatpush1.msra.mxu0 0.0
        %2972 = vmatprep.subr.mxu0 0.0
        %2973 = vmatpush1.msra.mxu0 0.0
        %2974 = vmatprep.subr.mxu0 0.0
        %2975 = vmatpush1.msra.mxu0 0.0
        %2976 = vmatprep.subr.mxu0 0.0
        %2977 = vmatpush1.msra.mxu0 0.0
        %2978 = vmatprep.subr.mxu0 0.0
        %2979 = vmatpush1.msra.mxu0 0.0
        %2980 = vmatprep.subr.mxu0 0.0
        %2981 = vmatpush1.msra.mxu0 0.0
        %2982 = vmatprep.subr.mxu0 0.0
        %2983 = vmatpush1.msra.mxu0 0.0
        %2984 = vmatprep.subr.mxu0 0.0
        %2985 = vmatpush1.msra.mxu0 0.0
        %2986 = vmatprep.subr.mxu0 0.0
        %2987 = vmatpush1.msra.mxu0 0.0
        %2988 = vmatprep.subr.mxu0 0.0
        %2989 = vmatpush1.msra.mxu0 0.0
        %2990 = vmatprep.subr.mxu0 0.0
        %2991 = vmatpush1.msra.mxu0 0.0
        %2992 = vmatprep.subr.mxu0 0.0
        %2993 = vmatpush1.msra.mxu0 0.0
        %2994 = vmatprep.subr.mxu0 0.0
        %2995 = vmatpush1.msra.mxu0 0.0
        %2996 = vmatprep.subr.mxu0 0.0
        %2997 = vmatpush1.msra.mxu0 0.0
        %2998 = vmatprep.subr.mxu0 0.0
        %2999 = vmatpush1.msra.mxu0 0.0
        %3000 = vmatprep.subr.mxu0 0.0
        %3001 = vmatpush1.msra.mxu0 0.0
        %3002 = vmatprep.subr.mxu0 0.0
        %3003 = vmatpush1.msra.mxu0 0.0
        %3004 = vmatprep.subr.mxu0 0.0
        %3005 = vmatpush1.msra.mxu0 0.0
        %3006 = vmatprep.mubr.f32.mxu0 0.0
        %3007 = vmatmul.mubr.f32.gmra.mrb[0].mxu0 %v2940
        %v3008 = vpop.f32.mrb[0].mxu0
        %v3009 = vadd.f32 0.0, %v3008
        %v3010 = vpop.f32.mrb[0].mxu0
        %3011 = vdwg.mxu0
        %v3012 = vadd.f32 %v2770, %v3009
        %v3013 = vadd.f32 %v1931, %v3012
        %v3014 = vlaneseq
        %v3015 = vshrl.u32 %v3014, 7
        %v3016 = vsub.s32 4, %v3015
        %v3017 = vrot.slane %v1933, %v3016
        %v3018 = vadd.f32 %v3013, %v3017
        %v3019 = vsel %vm643, %v3018, 0.0
        %3020 = vadd.xlane.f32.xlu0 %v3019
        %v3021 = vpop.xlane.xlu0 %3020
        %v3022 = vmul.f32 %v3021, %v647
        %v3023 = vsub.f32 %v3018, %v3022
        %v3024 = vmul.f32 %v3023, %v3023
        %v3025 = vsel %vm643, %v3024, 0.0
        %3026 = vadd.xlane.f32.xlu0 %v3025
        %v3027 = vpop.xlane.xlu0 %3026
        %v3028 = vmul.f32 %v3027, %v647
        %v3029 = vadd.f32 %v3028, 1e-12
        %v3030 = vrsqrt.pop %v3029
        %v3031 = vmul.f32 %v3023, %v3030
        %v3032 = vlaneseq
        %v3033 = vshrl.u32 %v3032, 7
        %v3034 = vsub.s32 2, %v3033
        %v3035 = vrot.slane %v1933, %v3034
        %v3036 = vmul.f32 %v3031, %v3035
        %v3037 = vlaneseq
        %v3038 = vshrl.u32 %v3037, 7
        %v3039 = vsub.s32 3, %v3038
        %v3040 = vrot.slane %v1933, %v3039
        %v3041 = vadd.f32 %v3036, %v3040
        %s3042 = scalar_lea.vmem %s7, 32
        %v3043 = vld [vmem:[%s3042] sm:$0xff]
        %v3044 = vld [vmem:[%s3042 + $0x8] sm:$0xff]
        %v3045 = vld [vmem:[%s3042 + $0x10] sm:$0xff]
        %v3046 = vld [vmem:[%s3042 + $0x18] sm:$0xff]
        %s3047 = scalar_lea.vmem %s8, 1
        %v3048 = vld [vmem:[%s3047] sm:$0x1]
        %v3050 = vlaneseq
        %v3051 = vshrl.u32 %v3050, 7
        %v3052 = vsub.s32 0, %v3051
        %v3053 = vrot.slane %v3048, %v3052
        %v3056 = vsel %vm643, %v3041, 0
        %3058 = vmatprep.subr.mxu0 0.0
        %3059 = vmatpush1.msra.mxu0 %v3043
        %3060 = vmatprep.subr.mxu0 0.0
        %3061 = vmatpush1.msra.mxu0 %v3044
        %3062 = vmatprep.subr.mxu0 0.0
        %3063 = vmatpush1.msra.mxu0 %v3045
        %3064 = vmatprep.subr.mxu0 0.0
        %3065 = vmatpush1.msra.mxu0 %v3046
        %3066 = vmatprep.subr.mxu0 0.0
        %3067 = vmatpush1.msra.mxu0 0.0
        %3068 = vmatprep.subr.mxu0 0.0
        %3069 = vmatpush1.msra.mxu0 0.0
        %3070 = vmatprep.subr.mxu0 0.0
        %3071 = vmatpush1.msra.mxu0 0.0
        %3072 = vmatprep.subr.mxu0 0.0
        %3073 = vmatpush1.msra.mxu0 0.0
        %3074 = vmatprep.subr.mxu0 0.0
        %3075 = vmatpush1.msra.mxu0 0.0
        %3076 = vmatprep.subr.mxu0 0.0
        %3077 = vmatpush1.msra.mxu0 0.0
        %3078 = vmatprep.subr.mxu0 0.0
        %3079 = vmatpush1.msra.mxu0 0.0
        %3080 = vmatprep.subr.mxu0 0.0
        %3081 = vmatpush1.msra.mxu0 0.0
        %3082 = vmatprep.subr.mxu0 0.0
        %3083 = vmatpush1.msra.mxu0 0.0
        %3084 = vmatprep.subr.mxu0 0.0
        %3085 = vmatpush1.msra.mxu0 0.0
        %3086 = vmatprep.subr.mxu0 0.0
        %3087 = vmatpush1.msra.mxu0 0.0
        %3088 = vmatprep.subr.mxu0 0.0
        %3089 = vmatpush1.msra.mxu0 0.0
        %3090 = vmatprep.subr.mxu0 0.0
        %3091 = vmatpush1.msra.mxu0 0.0
        %3092 = vmatprep.subr.mxu0 0.0
        %3093 = vmatpush1.msra.mxu0 0.0
        %3094 = vmatprep.subr.mxu0 0.0
        %3095 = vmatpush1.msra.mxu0 0.0
        %3096 = vmatprep.subr.mxu0 0.0
        %3097 = vmatpush1.msra.mxu0 0.0
        %3098 = vmatprep.subr.mxu0 0.0
        %3099 = vmatpush1.msra.mxu0 0.0
        %3100 = vmatprep.subr.mxu0 0.0
        %3101 = vmatpush1.msra.mxu0 0.0
        %3102 = vmatprep.subr.mxu0 0.0
        %3103 = vmatpush1.msra.mxu0 0.0
        %3104 = vmatprep.subr.mxu0 0.0
        %3105 = vmatpush1.msra.mxu0 0.0
        %3106 = vmatprep.subr.mxu0 0.0
        %3107 = vmatpush1.msra.mxu0 0.0
        %3108 = vmatprep.subr.mxu0 0.0
        %3109 = vmatpush1.msra.mxu0 0.0
        %3110 = vmatprep.subr.mxu0 0.0
        %3111 = vmatpush1.msra.mxu0 0.0
        %3112 = vmatprep.subr.mxu0 0.0
        %3113 = vmatpush1.msra.mxu0 0.0
        %3114 = vmatprep.subr.mxu0 0.0
        %3115 = vmatpush1.msra.mxu0 0.0
        %3116 = vmatprep.subr.mxu0 0.0
        %3117 = vmatpush1.msra.mxu0 0.0
        %3118 = vmatprep.subr.mxu0 0.0
        %3119 = vmatpush1.msra.mxu0 0.0
        %3120 = vmatprep.subr.mxu0 0.0
        %3121 = vmatpush1.msra.mxu0 0.0
        %3122 = vmatprep.mubr.f32.mxu0 0.0
        %3123 = vmatmul.mubr.f32.gmra.mrb[0].mxu0 %v3056
        %v3124 = vpop.f32.mrb[0].mxu0
        %v3125 = vadd.f32 %v3053, %v3124
        %v3126 = vpop.f32.mrb[0].mxu0
        %3127 = vdwg.mxu0
        %v3128 = vmax.f32 %v3125, 0.0
        %s3129 = scalar_lea.vmem %s9, 64
        %v3130 = vld [vmem:[%s3129] sm:$0xff]
        %v3131 = vld [vmem:[%s3129 + $0x8] sm:$0xff]
        %v3132 = vld [vmem:[%s3129 + $0x10] sm:$0xff]
        %v3133 = vld [vmem:[%s3129 + $0x18] sm:$0xff]
        %v3134 = vld [vmem:[%s3129 + $0x20] sm:$0xff]
        %v3135 = vld [vmem:[%s3129 + $0x28] sm:$0xff]
        %v3136 = vld [vmem:[%s3129 + $0x30] sm:$0xff]
        %v3137 = vld [vmem:[%s3129 + $0x38] sm:$0xff]
        %v3139 = vsel %vm1852, %v3128, 0
        %3141 = vmatprep.subr.mxu0 0.0
        %3142 = vmatpush1.msra.mxu0 %v3130
        %3143 = vmatprep.subr.mxu0 0.0
        %3144 = vmatpush1.msra.mxu0 %v3131
        %3145 = vmatprep.subr.mxu0 0.0
        %3146 = vmatpush1.msra.mxu0 %v3132
        %3147 = vmatprep.subr.mxu0 0.0
        %3148 = vmatpush1.msra.mxu0 %v3133
        %3149 = vmatprep.subr.mxu0 0.0
        %3150 = vmatpush1.msra.mxu0 %v3134
        %3151 = vmatprep.subr.mxu0 0.0
        %3152 = vmatpush1.msra.mxu0 %v3135
        %3153 = vmatprep.subr.mxu0 0.0
        %3154 = vmatpush1.msra.mxu0 %v3136
        %3155 = vmatprep.subr.mxu0 0.0
        %3156 = vmatpush1.msra.mxu0 %v3137
        %3157 = vmatprep.subr.mxu0 0.0
        %3158 = vmatpush1.msra.mxu0 0.0
        %3159 = vmatprep.subr.mxu0 0.0
        %3160 = vmatpush1.msra.mxu0 0.0
        %3161 = vmatprep.subr.mxu0 0.0
        %3162 = vmatpush1.msra.mxu0 0.0
        %3163 = vmatprep.subr.mxu0 0.0
        %3164 = vmatpush1.msra.mxu0 0.0
        %3165 = vmatprep.subr.mxu0 0.0
        %3166 = vmatpush1.msra.mxu0 0.0
        %3167 = vmatprep.subr.mxu0 0.0
        %3168 = vmatpush1.msra.mxu0 0.0
        %3169 = vmatprep.subr.mxu0 0.0
        %3170 = vmatpush1.msra.mxu0 0.0
        %3171 = vmatprep.subr.mxu0 0.0
        %3172 = vmatpush1.msra.mxu0 0.0
        %3173 = vmatprep.subr.mxu0 0.0
        %3174 = vmatpush1.msra.mxu0 0.0
        %3175 = vmatprep.subr.mxu0 0.0
        %3176 = vmatpush1.msra.mxu0 0.0
        %3177 = vmatprep.subr.mxu0 0.0
        %3178 = vmatpush1.msra.mxu0 0.0
        %3179 = vmatprep.subr.mxu0 0.0
        %3180 = vmatpush1.msra.mxu0 0.0
        %3181 = vmatprep.subr.mxu0 0.0
        %3182 = vmatpush1.msra.mxu0 0.0
        %3183 = vmatprep.subr.mxu0 0.0
        %3184 = vmatpush1.msra.mxu0 0.0
        %3185 = vmatprep.subr.mxu0 0.0
        %3186 = vmatpush1.msra.mxu0 0.0
        %3187 = vmatprep.subr.mxu0 0.0
        %3188 = vmatpush1.msra.mxu0 0.0
        %3189 = vmatprep.subr.mxu0 0.0
        %3190 = vmatpush1.msra.mxu0 0.0
        %3191 = vmatprep.subr.mxu0 0.0
        %3192 = vmatpush1.msra.mxu0 0.0
        %3193 = vmatprep.subr.mxu0 0.0
        %3194 = vmatpush1.msra.mxu0 0.0
        %3195 = vmatprep.subr.mxu0 0.0
        %3196 = vmatpush1.msra.mxu0 0.0
        %3197 = vmatprep.subr.mxu0 0.0
        %3198 = vmatpush1.msra.mxu0 0.0
        %3199 = vmatprep.subr.mxu0 0.0
        %3200 = vmatpush1.msra.mxu0 0.0
        %3201 = vmatprep.subr.mxu0 0.0
        %3202 = vmatpush1.msra.mxu0 0.0
        %3203 = vmatprep.subr.mxu0 0.0
        %3204 = vmatpush1.msra.mxu0 0.0
        %3205 = vmatprep.mubr.f32.mxu0 0.0
        %3206 = vmatmul.mubr.f32.gmra.mrb[0].mxu0 %v3139
        %v3207 = vpop.f32.mrb[0].mxu0
        %v3208 = vadd.f32 0.0, %v3207
        %v3209 = vpop.f32.mrb[0].mxu0
        %3210 = vdwg.mxu0
        %v3211 = vadd.f32 %v3018, %v3208
        %v3212 = vlaneseq
        %v3213 = vshrl.u32 %v3212, 7
        %v3214 = vsub.s32 5, %v3213
        %v3215 = vrot.slane %v1933, %v3214
        %v3216 = vadd.f32 %v3211, %v3215
        %v3217 = vld [vmem:[%s11] sm:$0x1]
        %v3218 = vld [vmem:[%s11 + $0x1] sm:$0x1]
        %v3219 = vsel %vm643, %v3216, 0.0
        %3220 = vadd.xlane.f32.xlu0 %v3219
        %v3221 = vpop.xlane.xlu0 %3220
        %v3222 = vmul.f32 %v3221, %v647
        %v3223 = vsub.f32 %v3216, %v3222
        %v3224 = vmul.f32 %v3223, %v3223
        %v3225 = vsel %vm643, %v3224, 0.0
        %3226 = vadd.xlane.f32.xlu0 %v3225
        %v3227 = vpop.xlane.xlu0 %3226
        %v3228 = vmul.f32 %v3227, %v647
        %v3229 = vadd.f32 %v3228, 1e-12
        %v3230 = vrsqrt.pop %v3229
        %v3231 = vmul.f32 %v3223, %v3230
        %v3232 = vlaneseq
        %v3233 = vshrl.u32 %v3232, 7
        %v3234 = vsub.s32 0, %v3233
        %v3235 = vrot.slane %v3217, %v3234
        %v3236 = vmul.f32 %v3231, %v3235
        %v3237 = vlaneseq
        %v3238 = vshrl.u32 %v3237, 7
        %v3239 = vsub.s32 0, %v3238
        %v3240 = vrot.slane %v3218, %v3239
        %v3241 = vadd.f32 %v3236, %v3240
        %3242 = vst.msk [vmem:[%s417] sm:$0xff] %vm643, %v3241
        %s3243 = sand.u32 %s296, 1
        %s3244 = scalar_lea.sflag [#allocation3], %s3243
        %s3245 = sand.u32 %s296, 1
        %s3246 = smul.addr %s3245, 8
        %s3247 = scalar_lea.vmem [#allocation2], %s3246
        // Predicated region
        $region69: #{tpu_custom_call.1} parent=67 // pred_check
          %p3248 = pneg %p306
        $region70: #{tpu_custom_call.1} parent=67 // pred_check_branch
          %3250 = sbr.rel (%p3248) target = $region72
        $region71: #{tpu_custom_call.1} parent=67 // pred_region
          %s3252 = ssub.s32 128, 128
          %3253 = vsyncadd %s3244, %s3252
          %s3254 = smul.addr %s26, 128
          %s3255 = scalar_lea.hbm %s12, %s3254
          %s3257 = sshll.u32 %s3247, 4
          %s3258 = int_to_ptr.vmem [resolvable:$true] %s3257
          %3260 = dma.vmem_to_hbm [thread:$0]  %s3258, 128, %s3255, %s3244
        $region72: #{tpu_custom_call.1} parent=67 // pred_fallthru
          _
      $region68: #{tpu_custom_call.1} parent=5 // pred_fallthru
        _
      %p3261 = scmp.le.s32.totalorder 2, %s21
      // Predicated region
      $region73: #{tpu_custom_call.1} parent=5 // pred_check
        %p3262 = pneg %p3261
      $region74: #{tpu_custom_call.1} parent=5 // pred_check_branch
        %3264 = sbr.rel (%p3262) target = $region76
      $region75: #{tpu_custom_call.1} parent=5 // pred_region
        %s3265 = ssub.s32 %s21, 2
        // Predicated region
        $region77: #{tpu_custom_call.1} parent=75 // pred_check
          %p3266 = pneg %p312
        $region78: #{tpu_custom_call.1} parent=75 // pred_check_branch
          %3268 = sbr.rel (%p3266) target = $region80
        $region79: #{tpu_custom_call.1} parent=75 // pred_region
          %s3269 = sand.u32 %s297, 1
          %s3270 = scalar_lea.sflag [#allocation3], %s3269
          %s3271 = sand.u32 %s297, 1
          %s3272 = smul.addr %s3271, 8
          %s3273 = scalar_lea.vmem [#allocation2], %s3272
          %3274 = dma.done %s3270, 128
        $region80: #{tpu_custom_call.1} parent=75 // pred_fallthru
          _
      $region76: #{tpu_custom_call.1} parent=5 // pred_fallthru
        _
    $region6: #{tpu_custom_call.1} parent=1 // loop_footer
      %s25 = sadd.s32 1, %s21
    $region7: #{tpu_custom_call.1} parent=1 // loop_footer_branch
      %20 = sbr.rel target = $region3
    $region8: #{tpu_custom_call.1} parent=1 // loop_exit
      _
    %3275 = vsyncpa [#allocation3], 1
    %s3276 = scalar_lea.sflag [#allocation3], 1
    %3277 = vsyncpa %s3276, 1

</llo_original>
